<compile_context>
chip_gen: v7x
topology: tpu7x:2x2x1
jax: 0.10.0
libtpu: 0.0.40
codegen_flags: <defaults>
</compile_context>

<pallas_src>
import functools

import jax
import jax.numpy as jnp
from jax.experimental import pallas as pl
from jax.experimental.pallas import tpu as pltpu

LANE = 128  # TPU lane width


def mlp_kernel(x_ref,
               w1_ref, b1_ref,
               w2_ref, b2_ref,
               w3_ref, b3_ref,
               w4_ref, b4_ref,
               w5_ref, b5_ref,
               o_ref):
    """Fused MLP: 4x (Linear + ReLU) + final Linear.

    x arrives in its native dtype and is cast to bf16 in-kernel; all weights
    are bf16 (MXU-native); accumulation and the bias/ReLU chain are f32.
    Dropout = identity (eval).
    """
    # Layer 1: in-kernel bf16 cast (VPU) -> bf16 @ bf16 -> f32 on the MXU.
    h = jnp.dot(x_ref[...].astype(jnp.bfloat16), w1_ref[...],
                preferred_element_type=jnp.float32) + b1_ref[...]
    h = jnp.maximum(h, 0.0)

    # Layer 2
    h = jnp.dot(h.astype(jnp.bfloat16), w2_ref[...],
                preferred_element_type=jnp.float32) + b2_ref[...]
    h = jnp.maximum(h, 0.0)

    # Layer 3
    h = jnp.dot(h.astype(jnp.bfloat16), w3_ref[...],
                preferred_element_type=jnp.float32) + b3_ref[...]
    h = jnp.maximum(h, 0.0)

    # Layer 4
    h = jnp.dot(h.astype(jnp.bfloat16), w4_ref[...],
                preferred_element_type=jnp.float32) + b4_ref[...]
    h = jnp.maximum(h, 0.0)

    # Layer 5 (no activation); lane-dense (128-padded) bf16 store.
    out = jnp.dot(h.astype(jnp.bfloat16), w5_ref[...],
                  preferred_element_type=jnp.float32) + b5_ref[...]
    o_ref[...] = out.astype(o_ref.dtype)

    # TODO(synk): training-mode Dropout (Bernoulli mask + 1/(1-p) scaling via
    # pltpu.prng_random_bits) is omitted; forward here matches model.eval().


def _round_up(n, m):
    return ((n + m - 1) // m) * m


def _vmem_capacity_bytes():
    """Generation-aware VMEM capacity (128 MiB v5e/v6e, 64 MiB per-TC v7x)."""
    try:
        info = pltpu.get_tpu_info()
        cap = getattr(info, "vmem_capacity_bytes", None)
        if cap:
            return int(cap)
    except Exception:
        pass
    return 64 << 20  # conservative fallback (v7x per-TC)


def _pick_batch_tile(batch):
    """Small B: one grid step (per-step ~0.35us overhead dominates; x/out DMA
    is a few KB, nothing to hide). Large B: prefer 128-row multiples giving
    >= 4 steps (>= 2 per TensorCore on v7x megacore) so the pipeline overlaps."""
    if batch <= 512:
        return batch
    for t in (1024, 512, 384, 256, 128):
        if batch % t == 0 and batch // t >= 4:
            return t
    for t in (1024, 512, 256, 128):
        if batch % t == 0:
            return t
    return batch


def prepare_params(params, lane=LANE):
    """Cast weights to bf16 and zero-pad each layer's output width to a
    multiple of `lane`. Exact: padded activations are 0 and the next layer's
    padded weight rows are 0, so they contribute nothing."""
    prepped = []
    prev_dim = params[0][0].shape[0]  # input feature dim (left unpadded)
    for w, b in params:
        fan_in, fan_out = w.shape
        out_pad = _round_up(fan_out, lane)
        w_p = jnp.zeros((prev_dim, out_pad), jnp.bfloat16)
        w_p = w_p.at[:fan_in, :fan_out].set(w.astype(jnp.bfloat16))
        b_p = jnp.zeros((1, out_pad), jnp.float32)
        b_p = b_p.at[:, :fan_out].set(b.astype(jnp.float32))
        prepped.append((w_p, b_p))
        prev_dim = out_pad
    return prepped


@functools.partial(jax.jit,
                   static_argnames=("batch_tile", "single_buffer_weights"))
def mlp_forward(x, prepped_params, *, batch_tile=None,
                single_buffer_weights=True):
    """x: (B, input_size), native dtype. prepped_params: from prepare_params().

    Returns the lane-padded (B, out_pad) bf16 output; slice [:, :out_dim]
    (ideally fused into the consumer) to recover the true output width.
    """
    B, in_dim = x.shape
    out_pad = prepped_params[-1][0].shape[1]
    if batch_tile is None:
        batch_tile = _pick_batch_tile(B)
    assert B % batch_tile == 0, "batch must be divisible by batch_tile"
    grid = (B // batch_tile,)

    def _rep_spec(shape):
        # Grid-invariant (replicated) operand: fetched once; single-buffer it
        # so it does not cost 2x its size in VMEM.
        index_map = lambda i: (0,) * len(shape)
        if single_buffer_weights and hasattr(pl, "Buffered"):
            return pl.BlockSpec(shape, index_map, pipeline_mode=pl.Buffered(1))
        return pl.BlockSpec(shape, index_map)

    in_specs = [pl.BlockSpec((batch_tile, in_dim), lambda i: (i, 0))]
    flat_params = []
    for w, b in prepped_params:
        in_specs.append(_rep_spec(w.shape))
        in_specs.append(_rep_spec(b.shape))
        flat_params.extend([w, b])

    out_specs = pl.BlockSpec((batch_tile, out_pad), lambda i: (i, 0))

    # VMEM budget: resident weights/biases (duplicated per-TC under megacore;
    # x2 if double-buffered) + double-buffered x tiles (native dtype) +
    # double-buffered bf16 out tiles + f32 intermediates, with ~1.5x headroom.
    # Clamp to [32 MiB, capacity - 16 MiB] so v5e/v6e can use their 128 MiB
    # while v7x keeps headroom under its 64 MiB per-TC.
    wb_bytes = sum(w.size * w.dtype.itemsize + b.size * b.dtype.itemsize
                   for w, b in prepped_params)
    wb_bytes *= 1 if single_buffer_weights else 2
    io_bytes = (2 * batch_tile * in_dim * x.dtype.itemsize   # x tiles (2 bufs)
                + 2 * batch_tile * out_pad * 2)              # bf16 out tiles
    inter_bytes = batch_tile * sum(w.shape[1] for w, _ in prepped_params) * 4
    need = int(1.5 * (wb_bytes + io_bytes + inter_bytes)) + (2 << 20)
    cap = _vmem_capacity_bytes()
    vmem_limit = min(max(need, 32 << 20), max(cap - (16 << 20), 32 << 20))
    # Note: for much larger MLP configs, check wb_bytes << cap/2 or tile the
    # widest layer's N instead of keeping all weights resident.

    return pl.pallas_call(
        mlp_kernel,
        out_shape=jax.ShapeDtypeStruct((B, out_pad), jnp.bfloat16),
        grid_spec=pltpu.PrefetchScalarGridSpec(
            num_scalar_prefetch=0,
            grid=grid,
            in_specs=in_specs,
            out_specs=out_specs,
        ),
        compiler_params=pltpu.CompilerParams(
            dimension_semantics=("parallel",),
            vmem_limit_bytes=vmem_limit),
    )(x, *flat_params)


def init_mlp_params(key, input_size, output_size):
    """PyTorch-Linear-style init. hid_dim is overridden to input_size in
    MLP.__init__, so dims are: in -> 4*in -> 8*in -> 2*in -> in -> out.
    Weights stored transposed as (in_features, out_features), f32."""
    hid = input_size
    dims = [input_size, 4 * hid, 8 * hid, 2 * hid, hid, output_size]
    params = []
    for i in range(5):
        fan_in, fan_out = dims[i], dims[i + 1]
        key, kw, kb = jax.random.split(key, 3)
        bound = 1.0 / jnp.sqrt(fan_in)
        w = jax.random.uniform(kw, (fan_in, fan_out), jnp.float32, -bound, bound)
        b = jax.random.uniform(kb, (1, fan_out), jnp.float32, -bound, bound)
        params.append((w, b))
    return params


def mlp_reference_bf16(x, params):
    """Pure-JAX reference reproducing the kernel arithmetic: bf16 MXU operands,
    f32 accumulation, f32 bias/ReLU, dropout = identity."""
    h = x.astype(jnp.bfloat16)
    n = len(params)
    for i, (w, b) in enumerate(params):
        h = jnp.dot(h, w.astype(jnp.bfloat16),
                    preferred_element_type=jnp.float32) + b.astype(jnp.float32)
        if i < n - 1:
            h = jnp.maximum(h, 0.0).astype(jnp.bfloat16)
    return h


if __name__ == "__main__":
    key = jax.random.PRNGKey(0)
    k_x, k_p = jax.random.split(key)

    batch = 256          # small; single grid step per the batch-tile heuristic
    input_size = 32      # hid_dim = input_size per the module's __init__
    output_size = 10

    x = jax.random.normal(k_x, (batch, input_size), dtype=jnp.float32)
    params = init_mlp_params(k_p, input_size, output_size)
    prepped = prepare_params(params)

    try:
        out_padded = mlp_forward(x, prepped)
    except Exception:
        # Fallback if this Pallas version rejects single-buffered (Buffered(1))
        # BlockSpecs on the top-level grid: use default double buffering.
        out_padded = mlp_forward(x, prepped, single_buffer_weights=False)
    out_padded = jax.block_until_ready(out_padded)

    # Downstream consumers should keep the lane-padded (B, 128) bf16 slab and
    # fuse the valid-width slice into the next op; slice here only to validate.
    out = out_padded[:, :output_size].astype(jnp.float32)

    ref = mlp_reference_bf16(x, params)
    assert out_padded.shape == (batch, LANE)
    assert out.shape == (batch, output_size)
    # Tolerance widened vs the f32-output version: the final store is bf16.
    assert jnp.allclose(out, ref, atol=2e-2, rtol=2e-2), "mismatch vs JAX reference"

    print("KERNEL_OK")
</pallas_src>

<mosaic_0001>
module attributes {stable_mosaic.version = 11 : i64} {
  func.func @mlp_kernel(%arg0: i32, %arg1: memref<256x32xf32, #tpu.memory_space<vmem>>, %arg2: memref<32x128xbf16, #tpu.memory_space<vmem>>, %arg3: memref<1x128xf32, #tpu.memory_space<vmem>>, %arg4: memref<128x256xbf16, #tpu.memory_space<vmem>>, %arg5: memref<1x256xf32, #tpu.memory_space<vmem>>, %arg6: memref<256x128xbf16, #tpu.memory_space<vmem>>, %arg7: memref<1x128xf32, #tpu.memory_space<vmem>>, %arg8: memref<128x128xbf16, #tpu.memory_space<vmem>>, %arg9: memref<1x128xf32, #tpu.memory_space<vmem>>, %arg10: memref<128x128xbf16, #tpu.memory_space<vmem>>, %arg11: memref<1x128xf32, #tpu.memory_space<vmem>>, %arg12: memref<256x128xbf16, #tpu.memory_space<vmem>>) attributes {dimension_semantics = [#tpu.dimension_semantics<parallel>], iteration_bounds = array<i64: 1>, scalar_prefetch = 0 : i64, scratch_operands = 0 : i64, tpu.core_type = #tpu.core_type<tc>, window_params = [{transform_indices = @transform_0, window_bounds = array<i64: 256, 32>}, {pipeline_mode = #tpu.pipeline_mode<synchronous>, transform_indices = @transform_1, window_bounds = array<i64: 32, 128>}, {pipeline_mode = #tpu.pipeline_mode<synchronous>, transform_indices = @transform_2, window_bounds = array<i64: 1, 128>}, {pipeline_mode = #tpu.pipeline_mode<synchronous>, transform_indices = @transform_3, window_bounds = array<i64: 128, 256>}, {pipeline_mode = #tpu.pipeline_mode<synchronous>, transform_indices = @transform_4, window_bounds = array<i64: 1, 256>}, {pipeline_mode = #tpu.pipeline_mode<synchronous>, transform_indices = @transform_5, window_bounds = array<i64: 256, 128>}, {pipeline_mode = #tpu.pipeline_mode<synchronous>, transform_indices = @transform_6, window_bounds = array<i64: 1, 128>}, {pipeline_mode = #tpu.pipeline_mode<synchronous>, transform_indices = @transform_7, window_bounds = array<i64: 128, 128>}, {pipeline_mode = #tpu.pipeline_mode<synchronous>, transform_indices = @transform_8, window_bounds = array<i64: 1, 128>}, {pipeline_mode = #tpu.pipeline_mode<synchronous>, transform_indices = @transform_9, window_bounds = array<i64: 128, 128>}, {pipeline_mode = #tpu.pipeline_mode<synchronous>, transform_indices = @transform_10, window_bounds = array<i64: 1, 128>}, {transform_indices = @transform_11, window_bounds = array<i64: 256, 128>}]} {
    %c0 = arith.constant 0 : index
    %c0_0 = arith.constant 0 : index
    %0 = vector.load %arg1[%c0, %c0_0] : memref<256x32xf32, #tpu.memory_space<vmem>>, vector<256x32xf32>
    %1 = arith.truncf %0 : vector<256x32xf32> to vector<256x32xbf16>
    %c0_1 = arith.constant 0 : index
    %c0_2 = arith.constant 0 : index
    %2 = vector.load %arg2[%c0_1, %c0_2] : memref<32x128xbf16, #tpu.memory_space<vmem>>, vector<32x128xbf16>
    %cst = arith.constant dense<0.000000e+00> : vector<256x128xf32>
    %3 = tpu.matmul %1, %2, %cst {dimension_numbers = #tpu.dot_dimension_numbers<[1], [0], [0], [1], [0, 0, 1, 1], [], []>} : vector<256x32xbf16>, vector<32x128xbf16>, vector<256x128xf32> -> vector<256x128xf32>
    %c0_3 = arith.constant 0 : index
    %c0_4 = arith.constant 0 : index
    %4 = vector.load %arg3[%c0_3, %c0_4] : memref<1x128xf32, #tpu.memory_space<vmem>>, vector<1x128xf32>
    %5 = vector.broadcast %4 : vector<1x128xf32> to vector<256x128xf32>
    %6 = arith.addf %3, %5 : vector<256x128xf32>
    %cst_5 = arith.constant 0.000000e+00 : f32
    %7 = vector.broadcast %cst_5 : f32 to vector<256x128xf32>
    %8 = arith.maximumf %6, %7 : vector<256x128xf32>
    %9 = arith.truncf %8 : vector<256x128xf32> to vector<256x128xbf16>
    %c0_6 = arith.constant 0 : index
    %c0_7 = arith.constant 0 : index
    %10 = vector.load %arg4[%c0_6, %c0_7] : memref<128x256xbf16, #tpu.memory_space<vmem>>, vector<128x256xbf16>
    %cst_8 = arith.constant dense<0.000000e+00> : vector<256x256xf32>
    %11 = tpu.matmul %9, %10, %cst_8 {dimension_numbers = #tpu.dot_dimension_numbers<[1], [0], [0], [1], [0, 0, 1, 1], [], []>} : vector<256x128xbf16>, vector<128x256xbf16>, vector<256x256xf32> -> vector<256x256xf32>
    %c0_9 = arith.constant 0 : index
    %c0_10 = arith.constant 0 : index
    %12 = vector.load %arg5[%c0_9, %c0_10] : memref<1x256xf32, #tpu.memory_space<vmem>>, vector<1x256xf32>
    %13 = vector.broadcast %12 : vector<1x256xf32> to vector<256x256xf32>
    %14 = arith.addf %11, %13 : vector<256x256xf32>
    %cst_11 = arith.constant 0.000000e+00 : f32
    %15 = vector.broadcast %cst_11 : f32 to vector<256x256xf32>
    %16 = arith.maximumf %14, %15 : vector<256x256xf32>
    %17 = arith.truncf %16 : vector<256x256xf32> to vector<256x256xbf16>
    %c0_12 = arith.constant 0 : index
    %c0_13 = arith.constant 0 : index
    %18 = vector.load %arg6[%c0_12, %c0_13] : memref<256x128xbf16, #tpu.memory_space<vmem>>, vector<256x128xbf16>
    %cst_14 = arith.constant dense<0.000000e+00> : vector<256x128xf32>
    %19 = tpu.matmul %17, %18, %cst_14 {dimension_numbers = #tpu.dot_dimension_numbers<[1], [0], [0], [1], [0, 0, 1, 1], [], []>} : vector<256x256xbf16>, vector<256x128xbf16>, vector<256x128xf32> -> vector<256x128xf32>
    %c0_15 = arith.constant 0 : index
    %c0_16 = arith.constant 0 : index
    %20 = vector.load %arg7[%c0_15, %c0_16] : memref<1x128xf32, #tpu.memory_space<vmem>>, vector<1x128xf32>
    %21 = vector.broadcast %20 : vector<1x128xf32> to vector<256x128xf32>
    %22 = arith.addf %19, %21 : vector<256x128xf32>
    %cst_17 = arith.constant 0.000000e+00 : f32
    %23 = vector.broadcast %cst_17 : f32 to vector<256x128xf32>
    %24 = arith.maximumf %22, %23 : vector<256x128xf32>
    %25 = arith.truncf %24 : vector<256x128xf32> to vector<256x128xbf16>
    %c0_18 = arith.constant 0 : index
    %c0_19 = arith.constant 0 : index
    %26 = vector.load %arg8[%c0_18, %c0_19] : memref<128x128xbf16, #tpu.memory_space<vmem>>, vector<128x128xbf16>
    %cst_20 = arith.constant dense<0.000000e+00> : vector<256x128xf32>
    %27 = tpu.matmul %25, %26, %cst_20 {dimension_numbers = #tpu.dot_dimension_numbers<[1], [0], [0], [1], [0, 0, 1, 1], [], []>} : vector<256x128xbf16>, vector<128x128xbf16>, vector<256x128xf32> -> vector<256x128xf32>
    %c0_21 = arith.constant 0 : index
    %c0_22 = arith.constant 0 : index
    %28 = vector.load %arg9[%c0_21, %c0_22] : memref<1x128xf32, #tpu.memory_space<vmem>>, vector<1x128xf32>
    %29 = vector.broadcast %28 : vector<1x128xf32> to vector<256x128xf32>
    %30 = arith.addf %27, %29 : vector<256x128xf32>
    %cst_23 = arith.constant 0.000000e+00 : f32
    %31 = vector.broadcast %cst_23 : f32 to vector<256x128xf32>
    %32 = arith.maximumf %30, %31 : vector<256x128xf32>
    %33 = arith.truncf %32 : vector<256x128xf32> to vector<256x128xbf16>
    %c0_24 = arith.constant 0 : index
    %c0_25 = arith.constant 0 : index
    %34 = vector.load %arg10[%c0_24, %c0_25] : memref<128x128xbf16, #tpu.memory_space<vmem>>, vector<128x128xbf16>
    %cst_26 = arith.constant dense<0.000000e+00> : vector<256x128xf32>
    %35 = tpu.matmul %33, %34, %cst_26 {dimension_numbers = #tpu.dot_dimension_numbers<[1], [0], [0], [1], [0, 0, 1, 1], [], []>} : vector<256x128xbf16>, vector<128x128xbf16>, vector<256x128xf32> -> vector<256x128xf32>
    %c0_27 = arith.constant 0 : index
    %c0_28 = arith.constant 0 : index
    %36 = vector.load %arg11[%c0_27, %c0_28] : memref<1x128xf32, #tpu.memory_space<vmem>>, vector<1x128xf32>
    %37 = vector.broadcast %36 : vector<1x128xf32> to vector<256x128xf32>
    %38 = arith.addf %35, %37 : vector<256x128xf32>
    %39 = arith.truncf %38 : vector<256x128xf32> to vector<256x128xbf16>
    %c0_29 = arith.constant 0 : index
    %c0_30 = arith.constant 0 : index
    %40 = vector.load %arg12[%c0_29, %c0_30] : memref<256x128xbf16, #tpu.memory_space<vmem>>, vector<256x128xbf16>
    tpu.vector_store %arg12[%c0_29, %c0_30], %39 {strides = array<i32>} : memref<256x128xbf16, #tpu.memory_space<vmem>>, vector<256x128xbf16>,
    return
  }
  func.func @transform_0(%arg0: i32) -> (i32, i32) {
    %c0_i32 = arith.constant 0 : i32
    %c0_i32_0 = arith.constant 0 : i32
    return %arg0, %c0_i32 : i32, i32
  }
  func.func @transform_1(%arg0: i32) -> (i32, i32) {
    %c0_i32 = arith.constant 0 : i32
    %c0_i32_0 = arith.constant 0 : i32
    %c0_i32_1 = arith.constant 0 : i32
    return %c0_i32, %c0_i32_0 : i32, i32
  }
  func.func @transform_2(%arg0: i32) -> (i32, i32) {
    %c0_i32 = arith.constant 0 : i32
    %c0_i32_0 = arith.constant 0 : i32
    %c0_i32_1 = arith.constant 0 : i32
    return %c0_i32, %c0_i32_0 : i32, i32
  }
  func.func @transform_3(%arg0: i32) -> (i32, i32) {
    %c0_i32 = arith.constant 0 : i32
    %c0_i32_0 = arith.constant 0 : i32
    %c0_i32_1 = arith.constant 0 : i32
    return %c0_i32, %c0_i32_0 : i32, i32
  }
  func.func @transform_4(%arg0: i32) -> (i32, i32) {
    %c0_i32 = arith.constant 0 : i32
    %c0_i32_0 = arith.constant 0 : i32
    %c0_i32_1 = arith.constant 0 : i32
    return %c0_i32, %c0_i32_0 : i32, i32
  }
  func.func @transform_5(%arg0: i32) -> (i32, i32) {
    %c0_i32 = arith.constant 0 : i32
    %c0_i32_0 = arith.constant 0 : i32
    %c0_i32_1 = arith.constant 0 : i32
    return %c0_i32, %c0_i32_0 : i32, i32
  }
  func.func @transform_6(%arg0: i32) -> (i32, i32) {
    %c0_i32 = arith.constant 0 : i32
    %c0_i32_0 = arith.constant 0 : i32
    %c0_i32_1 = arith.constant 0 : i32
    return %c0_i32, %c0_i32_0 : i32, i32
  }
  func.func @transform_7(%arg0: i32) -> (i32, i32) {
    %c0_i32 = arith.constant 0 : i32
    %c0_i32_0 = arith.constant 0 : i32
    %c0_i32_1 = arith.constant 0 : i32
    return %c0_i32, %c0_i32_0 : i32, i32
  }
  func.func @transform_8(%arg0: i32) -> (i32, i32) {
    %c0_i32 = arith.constant 0 : i32
    %c0_i32_0 = arith.constant 0 : i32
    %c0_i32_1 = arith.constant 0 : i32
    return %c0_i32, %c0_i32_0 : i32, i32
  }
  func.func @transform_9(%arg0: i32) -> (i32, i32) {
    %c0_i32 = arith.constant 0 : i32
    %c0_i32_0 = arith.constant 0 : i32
    %c0_i32_1 = arith.constant 0 : i32
    return %c0_i32, %c0_i32_0 : i32, i32
  }
  func.func @transform_10(%arg0: i32) -> (i32, i32) {
    %c0_i32 = arith.constant 0 : i32
    %c0_i32_0 = arith.constant 0 : i32
    %c0_i32_1 = arith.constant 0 : i32
    return %c0_i32, %c0_i32_0 : i32, i32
  }
  func.func @transform_11(%arg0: i32) -> (i32, i32) {
    %c0_i32 = arith.constant 0 : i32
    %c0_i32_0 = arith.constant 0 : i32
    return %arg0, %c0_i32 : i32, i32
  }
}

module attributes {stable_mosaic.version = 11 : i64} {
  func.func @mlp_kernel(%arg0: i32, %arg1: memref<256x32xf32, #tpu.memory_space<vmem>>, %arg2: memref<32x128xbf16, #tpu.memory_space<vmem>>, %arg3: memref<1x128xf32, #tpu.memory_space<vmem>>, %arg4: memref<128x256xbf16, #tpu.memory_space<vmem>>, %arg5: memref<1x256xf32, #tpu.memory_space<vmem>>, %arg6: memref<256x128xbf16, #tpu.memory_space<vmem>>, %arg7: memref<1x128xf32, #tpu.memory_space<vmem>>, %arg8: memref<128x128xbf16, #tpu.memory_space<vmem>>, %arg9: memref<1x128xf32, #tpu.memory_space<vmem>>, %arg10: memref<128x128xbf16, #tpu.memory_space<vmem>>, %arg11: memref<1x128xf32, #tpu.memory_space<vmem>>, %arg12: memref<256x128xbf16, #tpu.memory_space<vmem>>) attributes {dimension_semantics = [#tpu.dimension_semantics<parallel>], iteration_bounds = array<i64: 1>, scalar_prefetch = 0 : i64, scratch_operands = 0 : i64, tpu.core_type = #tpu.core_type<tc>, window_params = [{transform_indices = @transform_0, window_bounds = array<i64: 256, 32>}, {pipeline_mode = #tpu.pipeline_mode<synchronous>, transform_indices = @transform_1, window_bounds = array<i64: 32, 128>}, {pipeline_mode = #tpu.pipeline_mode<synchronous>, transform_indices = @transform_2, window_bounds = array<i64: 1, 128>}, {pipeline_mode = #tpu.pipeline_mode<synchronous>, transform_indices = @transform_3, window_bounds = array<i64: 128, 256>}, {pipeline_mode = #tpu.pipeline_mode<synchronous>, transform_indices = @transform_4, window_bounds = array<i64: 1, 256>}, {pipeline_mode = #tpu.pipeline_mode<synchronous>, transform_indices = @transform_5, window_bounds = array<i64: 256, 128>}, {pipeline_mode = #tpu.pipeline_mode<synchronous>, transform_indices = @transform_6, window_bounds = array<i64: 1, 128>}, {pipeline_mode = #tpu.pipeline_mode<synchronous>, transform_indices = @transform_7, window_bounds = array<i64: 128, 128>}, {pipeline_mode = #tpu.pipeline_mode<synchronous>, transform_indices = @transform_8, window_bounds = array<i64: 1, 128>}, {pipeline_mode = #tpu.pipeline_mode<synchronous>, transform_indices = @transform_9, window_bounds = array<i64: 128, 128>}, {pipeline_mode = #tpu.pipeline_mode<synchronous>, transform_indices = @transform_10, window_bounds = array<i64: 1, 128>}, {transform_indices = @transform_11, window_bounds = array<i64: 256, 128>}]} {
    %c0 = arith.constant 0 : index
    %c0_0 = arith.constant 0 : index
    %0 = vector.load %arg1[%c0, %c0_0] : memref<256x32xf32, #tpu.memory_space<vmem>>, vector<256x32xf32>
    %1 = arith.truncf %0 : vector<256x32xf32> to vector<256x32xbf16>
    %c0_1 = arith.constant 0 : index
    %c0_2 = arith.constant 0 : index
    %2 = vector.load %arg2[%c0_1, %c0_2] : memref<32x128xbf16, #tpu.memory_space<vmem>>, vector<32x128xbf16>
    %cst = arith.constant dense<0.000000e+00> : vector<256x128xf32>
    %3 = tpu.matmul %1, %2, %cst {dimension_numbers = #tpu.dot_dimension_numbers<[1], [0], [0], [1], [0, 0, 1, 1], [], []>} : vector<256x32xbf16>, vector<32x128xbf16>, vector<256x128xf32> -> vector<256x128xf32>
    %c0_3 = arith.constant 0 : index
    %c0_4 = arith.constant 0 : index
    %4 = vector.load %arg3[%c0_3, %c0_4] : memref<1x128xf32, #tpu.memory_space<vmem>>, vector<1x128xf32>
    %5 = vector.broadcast %4 : vector<1x128xf32> to vector<256x128xf32>
    %6 = arith.addf %3, %5 : vector<256x128xf32>
    %cst_5 = arith.constant 0.000000e+00 : f32
    %7 = vector.broadcast %cst_5 : f32 to vector<256x128xf32>
    %8 = arith.maximumf %6, %7 : vector<256x128xf32>
    %9 = arith.truncf %8 : vector<256x128xf32> to vector<256x128xbf16>
    %c0_6 = arith.constant 0 : index
    %c0_7 = arith.constant 0 : index
    %10 = vector.load %arg4[%c0_6, %c0_7] : memref<128x256xbf16, #tpu.memory_space<vmem>>, vector<128x256xbf16>
    %cst_8 = arith.constant dense<0.000000e+00> : vector<256x256xf32>
    %11 = tpu.matmul %9, %10, %cst_8 {dimension_numbers = #tpu.dot_dimension_numbers<[1], [0], [0], [1], [0, 0, 1, 1], [], []>} : vector<256x128xbf16>, vector<128x256xbf16>, vector<256x256xf32> -> vector<256x256xf32>
    %c0_9 = arith.constant 0 : index
    %c0_10 = arith.constant 0 : index
    %12 = vector.load %arg5[%c0_9, %c0_10] : memref<1x256xf32, #tpu.memory_space<vmem>>, vector<1x256xf32>
    %13 = vector.broadcast %12 : vector<1x256xf32> to vector<256x256xf32>
    %14 = arith.addf %11, %13 : vector<256x256xf32>
    %cst_11 = arith.constant 0.000000e+00 : f32
    %15 = vector.broadcast %cst_11 : f32 to vector<256x256xf32>
    %16 = arith.maximumf %14, %15 : vector<256x256xf32>
    %17 = arith.truncf %16 : vector<256x256xf32> to vector<256x256xbf16>
    %c0_12 = arith.constant 0 : index
    %c0_13 = arith.constant 0 : index
    %18 = vector.load %arg6[%c0_12, %c0_13] : memref<256x128xbf16, #tpu.memory_space<vmem>>, vector<256x128xbf16>
    %cst_14 = arith.constant dense<0.000000e+00> : vector<256x128xf32>
    %19 = tpu.matmul %17, %18, %cst_14 {dimension_numbers = #tpu.dot_dimension_numbers<[1], [0], [0], [1], [0, 0, 1, 1], [], []>} : vector<256x256xbf16>, vector<256x128xbf16>, vector<256x128xf32> -> vector<256x128xf32>
    %c0_15 = arith.constant 0 : index
    %c0_16 = arith.constant 0 : index
    %20 = vector.load %arg7[%c0_15, %c0_16] : memref<1x128xf32, #tpu.memory_space<vmem>>, vector<1x128xf32>
    %21 = vector.broadcast %20 : vector<1x128xf32> to vector<256x128xf32>
    %22 = arith.addf %19, %21 : vector<256x128xf32>
    %cst_17 = arith.constant 0.000000e+00 : f32
    %23 = vector.broadcast %cst_17 : f32 to vector<256x128xf32>
    %24 = arith.maximumf %22, %23 : vector<256x128xf32>
    %25 = arith.truncf %24 : vector<256x128xf32> to vector<256x128xbf16>
    %c0_18 = arith.constant 0 : index
    %c0_19 = arith.constant 0 : index
    %26 = vector.load %arg8[%c0_18, %c0_19] : memref<128x128xbf16, #tpu.memory_space<vmem>>, vector<128x128xbf16>
    %cst_20 = arith.constant dense<0.000000e+00> : vector<256x128xf32>
    %27 = tpu.matmul %25, %26, %cst_20 {dimension_numbers = #tpu.dot_dimension_numbers<[1], [0], [0], [1], [0, 0, 1, 1], [], []>} : vector<256x128xbf16>, vector<128x128xbf16>, vector<256x128xf32> -> vector<256x128xf32>
    %c0_21 = arith.constant 0 : index
    %c0_22 = arith.constant 0 : index
    %28 = vector.load %arg9[%c0_21, %c0_22] : memref<1x128xf32, #tpu.memory_space<vmem>>, vector<1x128xf32>
    %29 = vector.broadcast %28 : vector<1x128xf32> to vector<256x128xf32>
    %30 = arith.addf %27, %29 : vector<256x128xf32>
    %cst_23 = arith.constant 0.000000e+00 : f32
    %31 = vector.broadcast %cst_23 : f32 to vector<256x128xf32>
    %32 = arith.maximumf %30, %31 : vector<256x128xf32>
    %33 = arith.truncf %32 : vector<256x128xf32> to vector<256x128xbf16>
    %c0_24 = arith.constant 0 : index
    %c0_25 = arith.constant 0 : index
    %34 = vector.load %arg10[%c0_24, %c0_25] : memref<128x128xbf16, #tpu.memory_space<vmem>>, vector<128x128xbf16>
    %cst_26 = arith.constant dense<0.000000e+00> : vector<256x128xf32>
    %35 = tpu.matmul %33, %34, %cst_26 {dimension_numbers = #tpu.dot_dimension_numbers<[1], [0], [0], [1], [0, 0, 1, 1], [], []>} : vector<256x128xbf16>, vector<128x128xbf16>, vector<256x128xf32> -> vector<256x128xf32>
    %c0_27 = arith.constant 0 : index
    %c0_28 = arith.constant 0 : index
    %36 = vector.load %arg11[%c0_27, %c0_28] : memref<1x128xf32, #tpu.memory_space<vmem>>, vector<1x128xf32>
    %37 = vector.broadcast %36 : vector<1x128xf32> to vector<256x128xf32>
    %38 = arith.addf %35, %37 : vector<256x128xf32>
    %39 = arith.truncf %38 : vector<256x128xf32> to vector<256x128xbf16>
    %c0_29 = arith.constant 0 : index
    %c0_30 = arith.constant 0 : index
    %40 = vector.load %arg12[%c0_29, %c0_30] : memref<256x128xbf16, #tpu.memory_space<vmem>>, vector<256x128xbf16>
    tpu.vector_store %arg12[%c0_29, %c0_30], %39 {strides = array<i32>} : memref<256x128xbf16, #tpu.memory_space<vmem>>, vector<256x128xbf16>,
    return
  }
  func.func @transform_0(%arg0: i32) -> (i32, i32) {
    %c0_i32 = arith.constant 0 : i32
    %c0_i32_0 = arith.constant 0 : i32
    return %arg0, %c0_i32 : i32, i32
  }
  func.func @transform_1(%arg0: i32) -> (i32, i32) {
    %c0_i32 = arith.constant 0 : i32
    %c0_i32_0 = arith.constant 0 : i32
    %c0_i32_1 = arith.constant 0 : i32
    return %c0_i32, %c0_i32_0 : i32, i32
  }
  func.func @transform_2(%arg0: i32) -> (i32, i32) {
    %c0_i32 = arith.constant 0 : i32
    %c0_i32_0 = arith.constant 0 : i32
    %c0_i32_1 = arith.constant 0 : i32
    return %c0_i32, %c0_i32_0 : i32, i32
  }
  func.func @transform_3(%arg0: i32) -> (i32, i32) {
    %c0_i32 = arith.constant 0 : i32
    %c0_i32_0 = arith.constant 0 : i32
    %c0_i32_1 = arith.constant 0 : i32
    return %c0_i32, %c0_i32_0 : i32, i32
  }
  func.func @transform_4(%arg0: i32) -> (i32, i32) {
    %c0_i32 = arith.constant 0 : i32
    %c0_i32_0 = arith.constant 0 : i32
    %c0_i32_1 = arith.constant 0 : i32
    return %c0_i32, %c0_i32_0 : i32, i32
  }
  func.func @transform_5(%arg0: i32) -> (i32, i32) {
    %c0_i32 = arith.constant 0 : i32
    %c0_i32_0 = arith.constant 0 : i32
    %c0_i32_1 = arith.constant 0 : i32
    return %c0_i32, %c0_i32_0 : i32, i32
  }
  func.func @transform_6(%arg0: i32) -> (i32, i32) {
    %c0_i32 = arith.constant 0 : i32
    %c0_i32_0 = arith.constant 0 : i32
    %c0_i32_1 = arith.constant 0 : i32
    return %c0_i32, %c0_i32_0 : i32, i32
  }
  func.func @transform_7(%arg0: i32) -> (i32, i32) {
    %c0_i32 = arith.constant 0 : i32
    %c0_i32_0 = arith.constant 0 : i32
    %c0_i32_1 = arith.constant 0 : i32
    return %c0_i32, %c0_i32_0 : i32, i32
  }
  func.func @transform_8(%arg0: i32) -> (i32, i32) {
    %c0_i32 = arith.constant 0 : i32
    %c0_i32_0 = arith.constant 0 : i32
    %c0_i32_1 = arith.constant 0 : i32
    return %c0_i32, %c0_i32_0 : i32, i32
  }
  func.func @transform_9(%arg0: i32) -> (i32, i32) {
    %c0_i32 = arith.constant 0 : i32
    %c0_i32_0 = arith.constant 0 : i32
    %c0_i32_1 = arith.constant 0 : i32
    return %c0_i32, %c0_i32_0 : i32, i32
  }
  func.func @transform_10(%arg0: i32) -> (i32, i32) {
    %c0_i32 = arith.constant 0 : i32
    %c0_i32_0 = arith.constant 0 : i32
    %c0_i32_1 = arith.constant 0 : i32
    return %c0_i32, %c0_i32_0 : i32, i32
  }
  func.func @transform_11(%arg0: i32) -> (i32, i32) {
    %c0_i32 = arith.constant 0 : i32
    %c0_i32_0 = arith.constant 0 : i32
    return %arg0, %c0_i32 : i32, i32
  }
}

</mosaic_0001>

<llo_original>
// kernel: mlp_forward.1
$region0: #{mlp_forward.1}
  #allocation0 [shape = 'u32[]', space=smem, size = 0x4, offset = 0x4, fixed_abs, tag = 'smem constant byte address 0x4 - core index']
  #allocation1 [shape = 'u32[144,128]{1,0:T(1,128)}', space=vmem, size = 0x12000, scoped, tag = 'internal scratch']
  %s0 = inlined_call_operand.vmem [shape: f32[256,32], index: 0, kind: input, shape index: {}]
  %s1 = inlined_call_operand.hbm [shape: bf16[32,128], index: 1, kind: input, shape index: {}]
  %s2 = inlined_call_operand.vmem [shape: f32[1,128], index: 2, kind: input, shape index: {}]
  %s3 = inlined_call_operand.vmem [shape: bf16[128,256], index: 3, kind: input, shape index: {}]
  %s4 = inlined_call_operand.vmem [shape: f32[1,256], index: 4, kind: input, shape index: {}]
  %s5 = inlined_call_operand.vmem [shape: bf16[256,128], index: 5, kind: input, shape index: {}]
  %s6 = inlined_call_operand.vmem [shape: f32[1,128], index: 6, kind: input, shape index: {}]
  %s7 = inlined_call_operand.vmem [shape: bf16[128,128], index: 7, kind: input, shape index: {}]
  %s8 = inlined_call_operand.vmem [shape: f32[1,128], index: 8, kind: input, shape index: {}]
  %s9 = inlined_call_operand.hbm [shape: bf16[128,128], index: 9, kind: input, shape index: {}]
  %s10 = inlined_call_operand.vmem [shape: f32[1,128], index: 10, kind: input, shape index: {}]
  %s11 = inlined_call_operand.hbm [shape: bf16[256,128], index: 11, kind: output, shape index: {}]
  %s12 = sld [smem:[#allocation0]]
  $region62: #{mlp_forward.1} parent=0
    _
  %s14 = ssub.s32 1, %s12
  %s15 = scalar_select 0, %s14, %s12
  $region1: #{mlp_forward.1} parent=0
    #allocation2 [shape = 'u8[8192]{0}', space=vmem, size = 0x2000, scoped, tag = 'input window, operand 1, single buffered']
    #allocation3 [shape = 's32[1]{0}', space=sflag, size = 0x4, scoped, tag = 'scoped memory for mlp_forward.1']
    #allocation4 [shape = 's32[1]{0}', space=sflag, size = 0x4, scoped, tag = 'scoped memory for mlp_forward.1']
    #allocation5 [shape = 'u8[32768]{0}', space=vmem, size = 0x8000, scoped, tag = 'input window, operand 9, single buffered']
    #allocation6 [shape = 's32[1]{0}', space=sflag, size = 0x4, scoped, tag = 'scoped memory for mlp_forward.1']
    #allocation7 [shape = 'u8[65536]{0}', space=vmem, size = 0x10000, scoped, tag = 'output window, operand 0, single buffered']
    %16 = vsyncpa [#allocation3], 0
    %17 = vsyncpa [#allocation6], 0
    %18 = vsyncpa [#allocation4], 0
    // Predicated region
    $region2: #{mlp_forward.1} parent=1 // pred_check
      _
    $region3: #{mlp_forward.1} parent=1 // pred_check_branch
      %20 = sbr.rel (0) target = $region5
    $region4: #{mlp_forward.1} parent=1 // pred_region
      _
    $region5: #{mlp_forward.1} parent=1 // pred_fallthru
      _
    // Predicated region
    $region6: #{mlp_forward.1} parent=1 // pred_check
      _
    $region7: #{mlp_forward.1} parent=1 // pred_check_branch
      %22 = sbr.rel (0) target = $region9
    $region8: #{mlp_forward.1} parent=1 // pred_region
      %s24 = ssub.s32 256, 256
      %25 = vsyncadd [#allocation3], %s24
      %s26 = sshll.u32 [#allocation2], 4
      %s27 = int_to_ptr.vmem [resolvable:$true] %s26
      %32 = dma.hbm_to_vmem [thread:$0]  %s1, 256, %s27, [#allocation3], 64, 64, 4
    $region9: #{mlp_forward.1} parent=1 // pred_fallthru
      _
    // Predicated region
    $region10: #{mlp_forward.1} parent=1 // pred_check
      _
    $region11: #{mlp_forward.1} parent=1 // pred_check_branch
      %34 = sbr.rel (0) target = $region13
    $region12: #{mlp_forward.1} parent=1 // pred_region
      _
    $region13: #{mlp_forward.1} parent=1 // pred_fallthru
      _
    // Predicated region
    $region14: #{mlp_forward.1} parent=1 // pred_check
      _
    $region15: #{mlp_forward.1} parent=1 // pred_check_branch
      %36 = sbr.rel (0) target = $region17
    $region16: #{mlp_forward.1} parent=1 // pred_region
      _
    $region17: #{mlp_forward.1} parent=1 // pred_fallthru
      _
    // Predicated region
    $region18: #{mlp_forward.1} parent=1 // pred_check
      _
    $region19: #{mlp_forward.1} parent=1 // pred_check_branch
      %38 = sbr.rel (0) target = $region21
    $region20: #{mlp_forward.1} parent=1 // pred_region
      _
    $region21: #{mlp_forward.1} parent=1 // pred_fallthru
      _
    // Predicated region
    $region22: #{mlp_forward.1} parent=1 // pred_check
      _
    $region23: #{mlp_forward.1} parent=1 // pred_check_branch
      %40 = sbr.rel (0) target = $region25
    $region24: #{mlp_forward.1} parent=1 // pred_region
      _
    $region25: #{mlp_forward.1} parent=1 // pred_fallthru
      _
    // Predicated region
    $region26: #{mlp_forward.1} parent=1 // pred_check
      _
    $region27: #{mlp_forward.1} parent=1 // pred_check_branch
      %42 = sbr.rel (0) target = $region29
    $region28: #{mlp_forward.1} parent=1 // pred_region
      _
    $region29: #{mlp_forward.1} parent=1 // pred_fallthru
      _
    // Predicated region
    $region30: #{mlp_forward.1} parent=1 // pred_check
      _
    $region31: #{mlp_forward.1} parent=1 // pred_check_branch
      %44 = sbr.rel (0) target = $region33
    $region32: #{mlp_forward.1} parent=1 // pred_region
      _
    $region33: #{mlp_forward.1} parent=1 // pred_fallthru
      _
    // Predicated region
    $region34: #{mlp_forward.1} parent=1 // pred_check
      _
    $region35: #{mlp_forward.1} parent=1 // pred_check_branch
      %46 = sbr.rel (0) target = $region37
    $region36: #{mlp_forward.1} parent=1 // pred_region
      _
    $region37: #{mlp_forward.1} parent=1 // pred_fallthru
      _
    // Predicated region
    $region38: #{mlp_forward.1} parent=1 // pred_check
      _
    $region39: #{mlp_forward.1} parent=1 // pred_check_branch
      %48 = sbr.rel (0) target = $region41
    $region40: #{mlp_forward.1} parent=1 // pred_region
      %s50 = ssub.s32 1024, 1024
      %51 = vsyncadd [#allocation6], %s50
      %s52 = sshll.u32 [#allocation5], 4
      %s53 = int_to_ptr.vmem [resolvable:$true] %s52
      %58 = dma.hbm_to_vmem [thread:$0]  %s9, 1024, %s53, [#allocation6], 64, 64, 4
    $region41: #{mlp_forward.1} parent=1 // pred_fallthru
      _
    // Predicated region
    $region42: #{mlp_forward.1} parent=1 // pred_check
      _
    $region43: #{mlp_forward.1} parent=1 // pred_check_branch
      %60 = sbr.rel (0) target = $region45
    $region44: #{mlp_forward.1} parent=1 // pred_region
      _
    $region45: #{mlp_forward.1} parent=1 // pred_fallthru
      _
    // Predicated region
    $region46: #{mlp_forward.1} parent=1 // pred_check
      _
    $region47: #{mlp_forward.1} parent=1 // pred_check_branch
      %62 = sbr.rel (0) target = $region49
    $region48: #{mlp_forward.1} parent=1 // pred_region
      %63 = dma.done [#allocation3], 256
    $region49: #{mlp_forward.1} parent=1 // pred_fallthru
      _
    // Predicated region
    $region50: #{mlp_forward.1} parent=1 // pred_check
      _
    $region51: #{mlp_forward.1} parent=1 // pred_check_branch
      %65 = sbr.rel (0) target = $region53
    $region52: #{mlp_forward.1} parent=1 // pred_region
      %66 = dma.done [#allocation6], 1024
    $region53: #{mlp_forward.1} parent=1 // pred_fallthru
      _
    %v68 = vld [vmem:[%s0] sm:$0xff]
    %v69 = vld [vmem:[%s0 + $0x8] sm:$0xff]
    %v70 = vld [vmem:[%s0 + $0x10] sm:$0xff]
    %v71 = vld [vmem:[%s0 + $0x18] sm:$0xff]
    %v72 = vld [vmem:[%s0 + $0x20] sm:$0xff]
    %v73 = vld [vmem:[%s0 + $0x28] sm:$0xff]
    %v74 = vld [vmem:[%s0 + $0x30] sm:$0xff]
    %v75 = vld [vmem:[%s0 + $0x38] sm:$0xff]
    %v76 = vld [vmem:[%s0 + $0x40] sm:$0xff]
    %v77 = vld [vmem:[%s0 + $0x48] sm:$0xff]
    %v78 = vld [vmem:[%s0 + $0x50] sm:$0xff]
    %v79 = vld [vmem:[%s0 + $0x58] sm:$0xff]
    %v80 = vld [vmem:[%s0 + $0x60] sm:$0xff]
    %v81 = vld [vmem:[%s0 + $0x68] sm:$0xff]
    %v82 = vld [vmem:[%s0 + $0x70] sm:$0xff]
    %v83 = vld [vmem:[%s0 + $0x78] sm:$0xff]
    %v84 = vld [vmem:[%s0 + $0x80] sm:$0xff]
    %v85 = vld [vmem:[%s0 + $0x88] sm:$0xff]
    %v86 = vld [vmem:[%s0 + $0x90] sm:$0xff]
    %v87 = vld [vmem:[%s0 + $0x98] sm:$0xff]
    %v88 = vld [vmem:[%s0 + $0xa0] sm:$0xff]
    %v89 = vld [vmem:[%s0 + $0xa8] sm:$0xff]
    %v90 = vld [vmem:[%s0 + $0xb0] sm:$0xff]
    %v91 = vld [vmem:[%s0 + $0xb8] sm:$0xff]
    %v92 = vld [vmem:[%s0 + $0xc0] sm:$0xff]
    %v93 = vld [vmem:[%s0 + $0xc8] sm:$0xff]
    %v94 = vld [vmem:[%s0 + $0xd0] sm:$0xff]
    %v95 = vld [vmem:[%s0 + $0xd8] sm:$0xff]
    %v96 = vld [vmem:[%s0 + $0xe0] sm:$0xff]
    %v97 = vld [vmem:[%s0 + $0xe8] sm:$0xff]
    %v98 = vld [vmem:[%s0 + $0xf0] sm:$0xff]
    %v99 = vld [vmem:[%s0 + $0xf8] sm:$0xff]
    %v100 = vpack.c.bf16 %v69, %v68
    %v101 = vpack.c.bf16 %v71, %v70
    %v102 = vpack.c.bf16 %v73, %v72
    %v103 = vpack.c.bf16 %v75, %v74
    %v104 = vpack.c.bf16 %v77, %v76
    %v105 = vpack.c.bf16 %v79, %v78
    %v106 = vpack.c.bf16 %v81, %v80
    %v107 = vpack.c.bf16 %v83, %v82
    %v108 = vpack.c.bf16 %v85, %v84
    %v109 = vpack.c.bf16 %v87, %v86
    %v110 = vpack.c.bf16 %v89, %v88
    %v111 = vpack.c.bf16 %v91, %v90
    %v112 = vpack.c.bf16 %v93, %v92
    %v113 = vpack.c.bf16 %v95, %v94
    %v114 = vpack.c.bf16 %v97, %v96
    %v115 = vpack.c.bf16 %v99, %v98
    %v116 = vld [vmem:[#allocation2] sm:$0xf]
    %v117 = vld [vmem:[#allocation2 + $0x4] sm:$0xf]
    %v118 = vld [vmem:[#allocation2 + $0x8] sm:$0xf]
    %v119 = vld [vmem:[#allocation2 + $0xc] sm:$0xf]
    %v120 = vld [vmem:[%s2] sm:$0x1]
    %v122 = vlaneseq
    %v123 = vshrl.u32 %v122, 7
    %v124 = vsub.s32 0, %v123
    %v125 = vrot.slane %v120, %v124
    %v131 = vunpack.c.l.b16 %v116
    %v132 = vunpack.c.l.b16 %v117
    %v133 = vunpack.c.l.b16 %v118
    %v134 = vunpack.c.l.b16 %v119
    %v135 = vpack.c.b16 %v132, %v131
    %v136 = vpack.c.b16 %v134, %v133
    %vm139 = vcmask 261120
    %v141 = vsel %vm139, %v100, 0
    %v144 = vsel %vm139, %v101, 0
    %v147 = vsel %vm139, %v102, 0
    %v150 = vsel %vm139, %v103, 0
    %v153 = vsel %vm139, %v104, 0
    %v156 = vsel %vm139, %v105, 0
    %v159 = vsel %vm139, %v106, 0
    %v162 = vsel %vm139, %v107, 0
    %v165 = vsel %vm139, %v108, 0
    %v168 = vsel %vm139, %v109, 0
    %v171 = vsel %vm139, %v110, 0
    %v174 = vsel %vm139, %v111, 0
    %v177 = vsel %vm139, %v112, 0
    %v180 = vsel %vm139, %v113, 0
    %v183 = vsel %vm139, %v114, 0
    %v186 = vsel %vm139, %v115, 0
    %188 = vmatprep.subr.bf16.mxu0 0
    %189 = vmatpush1.bf16.msra.mxu0 %v135
    %190 = vmatprep.subr.bf16.mxu0 0
    %191 = vmatpush1.bf16.msra.mxu0 %v136
    %192 = vmatprep.subr.bf16.mxu0 0
    %193 = vmatpush1.bf16.msra.mxu0 0
    %194 = vmatprep.subr.bf16.mxu0 0
    %195 = vmatpush1.bf16.msra.mxu0 0
    %196 = vmatprep.subr.bf16.mxu0 0
    %197 = vmatpush1.bf16.msra.mxu0 0
    %198 = vmatprep.subr.bf16.mxu0 0
    %199 = vmatpush1.bf16.msra.mxu0 0
    %200 = vmatprep.subr.bf16.mxu0 0
    %201 = vmatpush1.bf16.msra.mxu0 0
    %202 = vmatprep.subr.bf16.mxu0 0
    %203 = vmatpush1.bf16.msra.mxu0 0
    %204 = vmatprep.subr.bf16.mxu0 0
    %205 = vmatpush1.bf16.msra.mxu0 0
    %206 = vmatprep.subr.bf16.mxu0 0
    %207 = vmatpush1.bf16.msra.mxu0 0
    %208 = vmatprep.subr.bf16.mxu0 0
    %209 = vmatpush1.bf16.msra.mxu0 0
    %210 = vmatprep.subr.bf16.mxu0 0
    %211 = vmatpush1.bf16.msra.mxu0 0
    %212 = vmatprep.subr.bf16.mxu0 0
    %213 = vmatpush1.bf16.msra.mxu0 0
    %214 = vmatprep.subr.bf16.mxu0 0
    %215 = vmatpush1.bf16.msra.mxu0 0
    %216 = vmatprep.subr.bf16.mxu0 0
    %217 = vmatpush1.bf16.msra.mxu0 0
    %218 = vmatprep.subr.bf16.mxu0 0
    %219 = vmatpush1.bf16.msra.mxu0 0
    %220 = vmatprep.mubr.bf16.mxu0 0
    %221 = vmatmul.mubr.bf16.gmra.mrb[0].mxu0 %v141
    %v222 = vpop.f32.mrb[0].mxu0
    %v223 = vadd.f32 %v125, %v222
    %v224 = vpop.f32.mrb[0].mxu0
    %v225 = vpop.f32.mrb[0].mxu0
    %v226 = vadd.f32 %v125, %v225
    %v227 = vpop.f32.mrb[0].mxu0
    %228 = vmatprep.mubr.bf16.mxu0 0
    %229 = vmatmul.mubr.bf16.gmra.mrb[0].mxu0 %v144
    %v230 = vpop.f32.mrb[0].mxu0
    %v231 = vadd.f32 %v125, %v230
    %v232 = vpop.f32.mrb[0].mxu0
    %v233 = vpop.f32.mrb[0].mxu0
    %v234 = vadd.f32 %v125, %v233
    %v235 = vpop.f32.mrb[0].mxu0
    %236 = vmatprep.mubr.bf16.mxu0 0
    %237 = vmatmul.mubr.bf16.gmra.mrb[0].mxu0 %v147
    %v238 = vpop.f32.mrb[0].mxu0
    %v239 = vadd.f32 %v125, %v238
    %v240 = vpop.f32.mrb[0].mxu0
    %v241 = vpop.f32.mrb[0].mxu0
    %v242 = vadd.f32 %v125, %v241
    %v243 = vpop.f32.mrb[0].mxu0
    %244 = vmatprep.mubr.bf16.mxu0 0
    %245 = vmatmul.mubr.bf16.gmra.mrb[0].mxu0 %v150
    %v246 = vpop.f32.mrb[0].mxu0
    %v247 = vadd.f32 %v125, %v246
    %v248 = vpop.f32.mrb[0].mxu0
    %v249 = vpop.f32.mrb[0].mxu0
    %v250 = vadd.f32 %v125, %v249
    %v251 = vpop.f32.mrb[0].mxu0
    %252 = vmatprep.mubr.bf16.mxu0 0
    %253 = vmatmul.mubr.bf16.gmra.mrb[0].mxu0 %v153
    %v254 = vpop.f32.mrb[0].mxu0
    %v255 = vadd.f32 %v125, %v254
    %v256 = vpop.f32.mrb[0].mxu0
    %v257 = vpop.f32.mrb[0].mxu0
    %v258 = vadd.f32 %v125, %v257
    %v259 = vpop.f32.mrb[0].mxu0
    %260 = vmatprep.mubr.bf16.mxu0 0
    %261 = vmatmul.mubr.bf16.gmra.mrb[0].mxu0 %v156
    %v262 = vpop.f32.mrb[0].mxu0
    %v263 = vadd.f32 %v125, %v262
    %v264 = vpop.f32.mrb[0].mxu0
    %v265 = vpop.f32.mrb[0].mxu0
    %v266 = vadd.f32 %v125, %v265
    %v267 = vpop.f32.mrb[0].mxu0
    %268 = vmatprep.mubr.bf16.mxu0 0
    %269 = vmatmul.mubr.bf16.gmra.mrb[0].mxu0 %v159
    %v270 = vpop.f32.mrb[0].mxu0
    %v271 = vadd.f32 %v125, %v270
    %v272 = vpop.f32.mrb[0].mxu0
    %v273 = vpop.f32.mrb[0].mxu0
    %v274 = vadd.f32 %v125, %v273
    %v275 = vpop.f32.mrb[0].mxu0
    %276 = vmatprep.mubr.bf16.mxu0 0
    %277 = vmatmul.mubr.bf16.gmra.mrb[0].mxu0 %v162
    %v278 = vpop.f32.mrb[0].mxu0
    %v279 = vadd.f32 %v125, %v278
    %v280 = vpop.f32.mrb[0].mxu0
    %v281 = vpop.f32.mrb[0].mxu0
    %v282 = vadd.f32 %v125, %v281
    %v283 = vpop.f32.mrb[0].mxu0
    %284 = vmatprep.mubr.bf16.mxu0 0
    %285 = vmatmul.mubr.bf16.gmra.mrb[0].mxu0 %v165
    %v286 = vpop.f32.mrb[0].mxu0
    %v287 = vadd.f32 %v125, %v286
    %v288 = vpop.f32.mrb[0].mxu0
    %v289 = vpop.f32.mrb[0].mxu0
    %v290 = vadd.f32 %v125, %v289
    %v291 = vpop.f32.mrb[0].mxu0
    %292 = vmatprep.mubr.bf16.mxu0 0
    %293 = vmatmul.mubr.bf16.gmra.mrb[0].mxu0 %v168
    %v294 = vpop.f32.mrb[0].mxu0
    %v295 = vadd.f32 %v125, %v294
    %v296 = vpop.f32.mrb[0].mxu0
    %v297 = vpop.f32.mrb[0].mxu0
    %v298 = vadd.f32 %v125, %v297
    %v299 = vpop.f32.mrb[0].mxu0
    %300 = vmatprep.mubr.bf16.mxu0 0
    %301 = vmatmul.mubr.bf16.gmra.mrb[0].mxu0 %v171
    %v302 = vpop.f32.mrb[0].mxu0
    %v303 = vadd.f32 %v125, %v302
    %v304 = vpop.f32.mrb[0].mxu0
    %v305 = vpop.f32.mrb[0].mxu0
    %v306 = vadd.f32 %v125, %v305
    %v307 = vpop.f32.mrb[0].mxu0
    %308 = vmatprep.mubr.bf16.mxu0 0
    %309 = vmatmul.mubr.bf16.gmra.mrb[0].mxu0 %v174
    %v310 = vpop.f32.mrb[0].mxu0
    %v311 = vadd.f32 %v125, %v310
    %v312 = vpop.f32.mrb[0].mxu0
    %v313 = vpop.f32.mrb[0].mxu0
    %v314 = vadd.f32 %v125, %v313
    %v315 = vpop.f32.mrb[0].mxu0
    %316 = vmatprep.mubr.bf16.mxu0 0
    %317 = vmatmul.mubr.bf16.gmra.mrb[0].mxu0 %v177
    %v318 = vpop.f32.mrb[0].mxu0
    %v319 = vadd.f32 %v125, %v318
    %v320 = vpop.f32.mrb[0].mxu0
    %v321 = vpop.f32.mrb[0].mxu0
    %v322 = vadd.f32 %v125, %v321
    %v323 = vpop.f32.mrb[0].mxu0
    %324 = vmatprep.mubr.bf16.mxu0 0
    %325 = vmatmul.mubr.bf16.gmra.mrb[0].mxu0 %v180
    %v326 = vpop.f32.mrb[0].mxu0
    %v327 = vadd.f32 %v125, %v326
    %v328 = vpop.f32.mrb[0].mxu0
    %v329 = vpop.f32.mrb[0].mxu0
    %v330 = vadd.f32 %v125, %v329
    %v331 = vpop.f32.mrb[0].mxu0
    %332 = vmatprep.mubr.bf16.mxu0 0
    %333 = vmatmul.mubr.bf16.gmra.mrb[0].mxu0 %v183
    %v334 = vpop.f32.mrb[0].mxu0
    %v335 = vadd.f32 %v125, %v334
    %v336 = vpop.f32.mrb[0].mxu0
    %v337 = vpop.f32.mrb[0].mxu0
    %v338 = vadd.f32 %v125, %v337
    %v339 = vpop.f32.mrb[0].mxu0
    %340 = vmatprep.mubr.bf16.mxu0 0
    %341 = vmatmul.mubr.bf16.gmra.mrb[0].mxu0 %v186
    %v342 = vpop.f32.mrb[0].mxu0
    %v343 = vadd.f32 %v125, %v342
    %v344 = vpop.f32.mrb[0].mxu0
    %v345 = vpop.f32.mrb[0].mxu0
    %v346 = vadd.f32 %v125, %v345
    %v347 = vpop.f32.mrb[0].mxu0
    %348 = vdwg.mxu0
    %v349 = vmax.f32 %v223, 0.0
    %v350 = vmax.f32 %v226, 0.0
    %v351 = vmax.f32 %v231, 0.0
    %v352 = vmax.f32 %v234, 0.0
    %v353 = vmax.f32 %v239, 0.0
    %v354 = vmax.f32 %v242, 0.0
    %v355 = vmax.f32 %v247, 0.0
    %v356 = vmax.f32 %v250, 0.0
    %v357 = vmax.f32 %v255, 0.0
    %v358 = vmax.f32 %v258, 0.0
    %v359 = vmax.f32 %v263, 0.0
    %v360 = vmax.f32 %v266, 0.0
    %v361 = vmax.f32 %v271, 0.0
    %v362 = vmax.f32 %v274, 0.0
    %v363 = vmax.f32 %v279, 0.0
    %v364 = vmax.f32 %v282, 0.0
    %v365 = vmax.f32 %v287, 0.0
    %v366 = vmax.f32 %v290, 0.0
    %v367 = vmax.f32 %v295, 0.0
    %v368 = vmax.f32 %v298, 0.0
    %v369 = vmax.f32 %v303, 0.0
    %v370 = vmax.f32 %v306, 0.0
    %v371 = vmax.f32 %v311, 0.0
    %v372 = vmax.f32 %v314, 0.0
    %v373 = vmax.f32 %v319, 0.0
    %v374 = vmax.f32 %v322, 0.0
    %v375 = vmax.f32 %v327, 0.0
    %v376 = vmax.f32 %v330, 0.0
    %v377 = vmax.f32 %v335, 0.0
    %v378 = vmax.f32 %v338, 0.0
    %v379 = vmax.f32 %v343, 0.0
    %v380 = vmax.f32 %v346, 0.0
    %v381 = vpack.c.bf16 %v350, %v349
    %v382 = vpack.c.bf16 %v352, %v351
    %v383 = vpack.c.bf16 %v354, %v353
    %v384 = vpack.c.bf16 %v356, %v355
    %v385 = vpack.c.bf16 %v358, %v357
    %v386 = vpack.c.bf16 %v360, %v359
    %v387 = vpack.c.bf16 %v362, %v361
    %v388 = vpack.c.bf16 %v364, %v363
    %v389 = vpack.c.bf16 %v366, %v365
    %v390 = vpack.c.bf16 %v368, %v367
    %v391 = vpack.c.bf16 %v370, %v369
    %v392 = vpack.c.bf16 %v372, %v371
    %v393 = vpack.c.bf16 %v374, %v373
    %v394 = vpack.c.bf16 %v376, %v375
    %v395 = vpack.c.bf16 %v378, %v377
    %v396 = vpack.c.bf16 %v380, %v379
    %v397 = vld [vmem:[%s3] sm:$0xff]
    %v398 = vld [vmem:[%s3 + $0x8] sm:$0xff]
    %v399 = vld [vmem:[%s3 + $0x10] sm:$0xff]
    %v400 = vld [vmem:[%s3 + $0x18] sm:$0xff]
    %v401 = vld [vmem:[%s3 + $0x20] sm:$0xff]
    %v402 = vld [vmem:[%s3 + $0x28] sm:$0xff]
    %v403 = vld [vmem:[%s3 + $0x30] sm:$0xff]
    %v404 = vld [vmem:[%s3 + $0x38] sm:$0xff]
    %v405 = vld [vmem:[%s3 + $0x40] sm:$0xff]
    %v406 = vld [vmem:[%s3 + $0x48] sm:$0xff]
    %v407 = vld [vmem:[%s3 + $0x50] sm:$0xff]
    %v408 = vld [vmem:[%s3 + $0x58] sm:$0xff]
    %v409 = vld [vmem:[%s3 + $0x60] sm:$0xff]
    %v410 = vld [vmem:[%s3 + $0x68] sm:$0xff]
    %v411 = vld [vmem:[%s3 + $0x70] sm:$0xff]
    %v412 = vld [vmem:[%s3 + $0x78] sm:$0xff]
    %v413 = vld [vmem:[%s4] sm:$0x3]
    %v415 = vlaneseq
    %v416 = vshrl.u32 %v415, 7
    %v417 = vsub.s32 0, %v416
    %v418 = vrot.slane %v413, %v417
    %v419 = vlaneseq
    %v420 = vshrl.u32 %v419, 7
    %v421 = vsub.s32 1, %v420
    %v422 = vrot.slane %v413, %v421
    %v441 = vunpack.c.l.b16 %v397
    %v442 = vunpack.c.h.b16 %v397
    %v443 = vunpack.c.l.b16 %v398
    %v444 = vunpack.c.h.b16 %v398
    %v445 = vunpack.c.l.b16 %v399
    %v446 = vunpack.c.h.b16 %v399
    %v447 = vunpack.c.l.b16 %v400
    %v448 = vunpack.c.h.b16 %v400
    %v449 = vunpack.c.l.b16 %v401
    %v450 = vunpack.c.h.b16 %v401
    %v451 = vunpack.c.l.b16 %v402
    %v452 = vunpack.c.h.b16 %v402
    %v453 = vunpack.c.l.b16 %v403
    %v454 = vunpack.c.h.b16 %v403
    %v455 = vunpack.c.l.b16 %v404
    %v456 = vunpack.c.h.b16 %v404
    %v457 = vunpack.c.l.b16 %v405
    %v458 = vunpack.c.h.b16 %v405
    %v459 = vunpack.c.l.b16 %v406
    %v460 = vunpack.c.h.b16 %v406
    %v461 = vunpack.c.l.b16 %v407
    %v462 = vunpack.c.h.b16 %v407
    %v463 = vunpack.c.l.b16 %v408
    %v464 = vunpack.c.h.b16 %v408
    %v465 = vunpack.c.l.b16 %v409
    %v466 = vunpack.c.h.b16 %v409
    %v467 = vunpack.c.l.b16 %v410
    %v468 = vunpack.c.h.b16 %v410
    %v469 = vunpack.c.l.b16 %v411
    %v470 = vunpack.c.h.b16 %v411
    %v471 = vunpack.c.l.b16 %v412
    %v472 = vunpack.c.h.b16 %v412
    %v473 = vpack.c.b16 %v443, %v441
    %v474 = vpack.c.b16 %v444, %v442
    %v475 = vpack.c.b16 %v447, %v445
    %v476 = vpack.c.b16 %v448, %v446
    %v477 = vpack.c.b16 %v451, %v449
    %v478 = vpack.c.b16 %v452, %v450
    %v479 = vpack.c.b16 %v455, %v453
    %v480 = vpack.c.b16 %v456, %v454
    %v481 = vpack.c.b16 %v459, %v457
    %v482 = vpack.c.b16 %v460, %v458
    %v483 = vpack.c.b16 %v463, %v461
    %v484 = vpack.c.b16 %v464, %v462
    %v485 = vpack.c.b16 %v467, %v465
    %v486 = vpack.c.b16 %v468, %v466
    %v487 = vpack.c.b16 %v471, %v469
    %v488 = vpack.c.b16 %v472, %v470
    %505 = vmatprep.subr.bf16.mxu0 %v474
    %506 = vmatpush1.bf16.msra.mxu0 %v473
    %507 = vmatprep.subr.bf16.mxu0 %v476
    %508 = vmatpush1.bf16.msra.mxu0 %v475
    %509 = vmatprep.subr.bf16.mxu0 %v478
    %510 = vmatpush1.bf16.msra.mxu0 %v477
    %511 = vmatprep.subr.bf16.mxu0 %v480
    %512 = vmatpush1.bf16.msra.mxu0 %v479
    %513 = vmatprep.subr.bf16.mxu0 %v482
    %514 = vmatpush1.bf16.msra.mxu0 %v481
    %515 = vmatprep.subr.bf16.mxu0 %v484
    %516 = vmatpush1.bf16.msra.mxu0 %v483
    %517 = vmatprep.subr.bf16.mxu0 %v486
    %518 = vmatpush1.bf16.msra.mxu0 %v485
    %519 = vmatprep.subr.bf16.mxu0 %v488
    %520 = vmatpush1.bf16.msra.mxu0 %v487
    %521 = vmatprep.subr.bf16.mxu0 0
    %522 = vmatpush1.bf16.msra.mxu0 0
    %523 = vmatprep.subr.bf16.mxu0 0
    %524 = vmatpush1.bf16.msra.mxu0 0
    %525 = vmatprep.subr.bf16.mxu0 0
    %526 = vmatpush1.bf16.msra.mxu0 0
    %527 = vmatprep.subr.bf16.mxu0 0
    %528 = vmatpush1.bf16.msra.mxu0 0
    %529 = vmatprep.subr.bf16.mxu0 0
    %530 = vmatpush1.bf16.msra.mxu0 0
    %531 = vmatprep.subr.bf16.mxu0 0
    %532 = vmatpush1.bf16.msra.mxu0 0
    %533 = vmatprep.subr.bf16.mxu0 0
    %534 = vmatpush1.bf16.msra.mxu0 0
    %535 = vmatprep.subr.bf16.mxu0 0
    %536 = vmatpush1.bf16.msra.mxu0 0
    %537 = vmatprep.mubr.bf16.mxu0 0
    %538 = vmatmul.mubr.bf16.gmra.mrb[0].mxu0 %v381
    %v539 = vpop.f32.mrb[0].mxu0
    %v540 = vadd.f32 %v418, %v539
    %v541 = vpop.f32.mrb[0].mxu0
    %v542 = vadd.f32 %v422, %v541
    %v543 = vpop.f32.mrb[0].mxu0
    %v544 = vadd.f32 %v418, %v543
    %v545 = vpop.f32.mrb[0].mxu0
    %v546 = vadd.f32 %v422, %v545
    %547 = vmatprep.mubr.bf16.mxu0 0
    %548 = vmatmul.mubr.bf16.gmra.mrb[0].mxu0 %v382
    %v549 = vpop.f32.mrb[0].mxu0
    %v550 = vadd.f32 %v418, %v549
    %v551 = vpop.f32.mrb[0].mxu0
    %v552 = vadd.f32 %v422, %v551
    %v553 = vpop.f32.mrb[0].mxu0
    %v554 = vadd.f32 %v418, %v553
    %v555 = vpop.f32.mrb[0].mxu0
    %v556 = vadd.f32 %v422, %v555
    %557 = vmatprep.mubr.bf16.mxu0 0
    %558 = vmatmul.mubr.bf16.gmra.mrb[0].mxu0 %v383
    %v559 = vpop.f32.mrb[0].mxu0
    %v560 = vadd.f32 %v418, %v559
    %v561 = vpop.f32.mrb[0].mxu0
    %v562 = vadd.f32 %v422, %v561
    %v563 = vpop.f32.mrb[0].mxu0
    %v564 = vadd.f32 %v418, %v563
    %v565 = vpop.f32.mrb[0].mxu0
    %v566 = vadd.f32 %v422, %v565
    %567 = vmatprep.mubr.bf16.mxu0 0
    %568 = vmatmul.mubr.bf16.gmra.mrb[0].mxu0 %v384
    %v569 = vpop.f32.mrb[0].mxu0
    %v570 = vadd.f32 %v418, %v569
    %v571 = vpop.f32.mrb[0].mxu0
    %v572 = vadd.f32 %v422, %v571
    %v573 = vpop.f32.mrb[0].mxu0
    %v574 = vadd.f32 %v418, %v573
    %v575 = vpop.f32.mrb[0].mxu0
    %v576 = vadd.f32 %v422, %v575
    %577 = vmatprep.mubr.bf16.mxu0 0
    %578 = vmatmul.mubr.bf16.gmra.mrb[0].mxu0 %v385
    %v579 = vpop.f32.mrb[0].mxu0
    %v580 = vadd.f32 %v418, %v579
    %v581 = vpop.f32.mrb[0].mxu0
    %v582 = vadd.f32 %v422, %v581
    %v583 = vpop.f32.mrb[0].mxu0
    %v584 = vadd.f32 %v418, %v583
    %v585 = vpop.f32.mrb[0].mxu0
    %v586 = vadd.f32 %v422, %v585
    %587 = vmatprep.mubr.bf16.mxu0 0
    %588 = vmatmul.mubr.bf16.gmra.mrb[0].mxu0 %v386
    %v589 = vpop.f32.mrb[0].mxu0
    %v590 = vadd.f32 %v418, %v589
    %v591 = vpop.f32.mrb[0].mxu0
    %v592 = vadd.f32 %v422, %v591
    %v593 = vpop.f32.mrb[0].mxu0
    %v594 = vadd.f32 %v418, %v593
    %v595 = vpop.f32.mrb[0].mxu0
    %v596 = vadd.f32 %v422, %v595
    %597 = vmatprep.mubr.bf16.mxu0 0
    %598 = vmatmul.mubr.bf16.gmra.mrb[0].mxu0 %v387
    %v599 = vpop.f32.mrb[0].mxu0
    %v600 = vadd.f32 %v418, %v599
    %v601 = vpop.f32.mrb[0].mxu0
    %v602 = vadd.f32 %v422, %v601
    %v603 = vpop.f32.mrb[0].mxu0
    %v604 = vadd.f32 %v418, %v603
    %v605 = vpop.f32.mrb[0].mxu0
    %v606 = vadd.f32 %v422, %v605
    %607 = vmatprep.mubr.bf16.mxu0 0
    %608 = vmatmul.mubr.bf16.gmra.mrb[0].mxu0 %v388
    %v609 = vpop.f32.mrb[0].mxu0
    %v610 = vadd.f32 %v418, %v609
    %v611 = vpop.f32.mrb[0].mxu0
    %v612 = vadd.f32 %v422, %v611
    %v613 = vpop.f32.mrb[0].mxu0
    %v614 = vadd.f32 %v418, %v613
    %v615 = vpop.f32.mrb[0].mxu0
    %v616 = vadd.f32 %v422, %v615
    %617 = vmatprep.mubr.bf16.mxu0 0
    %618 = vmatmul.mubr.bf16.gmra.mrb[0].mxu0 %v389
    %v619 = vpop.f32.mrb[0].mxu0
    %v620 = vadd.f32 %v418, %v619
    %v621 = vpop.f32.mrb[0].mxu0
    %v622 = vadd.f32 %v422, %v621
    %v623 = vpop.f32.mrb[0].mxu0
    %v624 = vadd.f32 %v418, %v623
    %v625 = vpop.f32.mrb[0].mxu0
    %v626 = vadd.f32 %v422, %v625
    %627 = vmatprep.mubr.bf16.mxu0 0
    %628 = vmatmul.mubr.bf16.gmra.mrb[0].mxu0 %v390
    %v629 = vpop.f32.mrb[0].mxu0
    %v630 = vadd.f32 %v418, %v629
    %v631 = vpop.f32.mrb[0].mxu0
    %v632 = vadd.f32 %v422, %v631
    %v633 = vpop.f32.mrb[0].mxu0
    %v634 = vadd.f32 %v418, %v633
    %v635 = vpop.f32.mrb[0].mxu0
    %v636 = vadd.f32 %v422, %v635
    %637 = vmatprep.mubr.bf16.mxu0 0
    %638 = vmatmul.mubr.bf16.gmra.mrb[0].mxu0 %v391
    %v639 = vpop.f32.mrb[0].mxu0
    %v640 = vadd.f32 %v418, %v639
    %v641 = vpop.f32.mrb[0].mxu0
    %v642 = vadd.f32 %v422, %v641
    %v643 = vpop.f32.mrb[0].mxu0
    %v644 = vadd.f32 %v418, %v643
    %v645 = vpop.f32.mrb[0].mxu0
    %v646 = vadd.f32 %v422, %v645
    %647 = vmatprep.mubr.bf16.mxu0 0
    %648 = vmatmul.mubr.bf16.gmra.mrb[0].mxu0 %v392
    %v649 = vpop.f32.mrb[0].mxu0
    %v650 = vadd.f32 %v418, %v649
    %v651 = vpop.f32.mrb[0].mxu0
    %v652 = vadd.f32 %v422, %v651
    %v653 = vpop.f32.mrb[0].mxu0
    %v654 = vadd.f32 %v418, %v653
    %v655 = vpop.f32.mrb[0].mxu0
    %v656 = vadd.f32 %v422, %v655
    %657 = vmatprep.mubr.bf16.mxu0 0
    %658 = vmatmul.mubr.bf16.gmra.mrb[0].mxu0 %v393
    %v659 = vpop.f32.mrb[0].mxu0
    %v660 = vadd.f32 %v418, %v659
    %v661 = vpop.f32.mrb[0].mxu0
    %v662 = vadd.f32 %v422, %v661
    %v663 = vpop.f32.mrb[0].mxu0
    %v664 = vadd.f32 %v418, %v663
    %v665 = vpop.f32.mrb[0].mxu0
    %v666 = vadd.f32 %v422, %v665
    %667 = vmatprep.mubr.bf16.mxu0 0
    %668 = vmatmul.mubr.bf16.gmra.mrb[0].mxu0 %v394
    %v669 = vpop.f32.mrb[0].mxu0
    %v670 = vadd.f32 %v418, %v669
    %v671 = vpop.f32.mrb[0].mxu0
    %v672 = vadd.f32 %v422, %v671
    %v673 = vpop.f32.mrb[0].mxu0
    %v674 = vadd.f32 %v418, %v673
    %v675 = vpop.f32.mrb[0].mxu0
    %v676 = vadd.f32 %v422, %v675
    %677 = vmatprep.mubr.bf16.mxu0 0
    %678 = vmatmul.mubr.bf16.gmra.mrb[0].mxu0 %v395
    %v679 = vpop.f32.mrb[0].mxu0
    %v680 = vadd.f32 %v418, %v679
    %v681 = vpop.f32.mrb[0].mxu0
    %v682 = vadd.f32 %v422, %v681
    %v683 = vpop.f32.mrb[0].mxu0
    %v684 = vadd.f32 %v418, %v683
    %v685 = vpop.f32.mrb[0].mxu0
    %v686 = vadd.f32 %v422, %v685
    %687 = vmatprep.mubr.bf16.mxu0 0
    %688 = vmatmul.mubr.bf16.gmra.mrb[0].mxu0 %v396
    %v689 = vpop.f32.mrb[0].mxu0
    %v690 = vadd.f32 %v418, %v689
    %v691 = vpop.f32.mrb[0].mxu0
    %v692 = vadd.f32 %v422, %v691
    %v693 = vpop.f32.mrb[0].mxu0
    %v694 = vadd.f32 %v418, %v693
    %v695 = vpop.f32.mrb[0].mxu0
    %v696 = vadd.f32 %v422, %v695
    %697 = vdwg.mxu0
    %v698 = vmax.f32 %v540, 0.0
    %v699 = vmax.f32 %v542, 0.0
    %v700 = vmax.f32 %v544, 0.0
    %v701 = vmax.f32 %v546, 0.0
    %v702 = vmax.f32 %v550, 0.0
    %v703 = vmax.f32 %v552, 0.0
    %v704 = vmax.f32 %v554, 0.0
    %v705 = vmax.f32 %v556, 0.0
    %v706 = vmax.f32 %v560, 0.0
    %v707 = vmax.f32 %v562, 0.0
    %v708 = vmax.f32 %v564, 0.0
    %v709 = vmax.f32 %v566, 0.0
    %v710 = vmax.f32 %v570, 0.0
    %v711 = vmax.f32 %v572, 0.0
    %v712 = vmax.f32 %v574, 0.0
    %v713 = vmax.f32 %v576, 0.0
    %v714 = vmax.f32 %v580, 0.0
    %v715 = vmax.f32 %v582, 0.0
    %v716 = vmax.f32 %v584, 0.0
    %v717 = vmax.f32 %v586, 0.0
    %v718 = vmax.f32 %v590, 0.0
    %v719 = vmax.f32 %v592, 0.0
    %v720 = vmax.f32 %v594, 0.0
    %v721 = vmax.f32 %v596, 0.0
    %v722 = vmax.f32 %v600, 0.0
    %v723 = vmax.f32 %v602, 0.0
    %v724 = vmax.f32 %v604, 0.0
    %v725 = vmax.f32 %v606, 0.0
    %v726 = vmax.f32 %v610, 0.0
    %v727 = vmax.f32 %v612, 0.0
    %v728 = vmax.f32 %v614, 0.0
    %v729 = vmax.f32 %v616, 0.0
    %v730 = vmax.f32 %v620, 0.0
    %v731 = vmax.f32 %v622, 0.0
    %v732 = vmax.f32 %v624, 0.0
    %v733 = vmax.f32 %v626, 0.0
    %v734 = vmax.f32 %v630, 0.0
    %v735 = vmax.f32 %v632, 0.0
    %v736 = vmax.f32 %v634, 0.0
    %v737 = vmax.f32 %v636, 0.0
    %v738 = vmax.f32 %v640, 0.0
    %v739 = vmax.f32 %v642, 0.0
    %v740 = vmax.f32 %v644, 0.0
    %v741 = vmax.f32 %v646, 0.0
    %v742 = vmax.f32 %v650, 0.0
    %v743 = vmax.f32 %v652, 0.0
    %v744 = vmax.f32 %v654, 0.0
    %v745 = vmax.f32 %v656, 0.0
    %v746 = vmax.f32 %v660, 0.0
    %v747 = vmax.f32 %v662, 0.0
    %v748 = vmax.f32 %v664, 0.0
    %v749 = vmax.f32 %v666, 0.0
    %v750 = vmax.f32 %v670, 0.0
    %v751 = vmax.f32 %v672, 0.0
    %v752 = vmax.f32 %v674, 0.0
    %v753 = vmax.f32 %v676, 0.0
    %v754 = vmax.f32 %v680, 0.0
    %v755 = vmax.f32 %v682, 0.0
    %v756 = vmax.f32 %v684, 0.0
    %v757 = vmax.f32 %v686, 0.0
    %v758 = vmax.f32 %v690, 0.0
    %v759 = vmax.f32 %v692, 0.0
    %v760 = vmax.f32 %v694, 0.0
    %v761 = vmax.f32 %v696, 0.0
    %v762 = vpack.c.bf16 %v700, %v698
    %v763 = vpack.c.bf16 %v701, %v699
    %v764 = vpack.c.bf16 %v704, %v702
    %v765 = vpack.c.bf16 %v705, %v703
    %v766 = vpack.c.bf16 %v708, %v706
    %v767 = vpack.c.bf16 %v709, %v707
    %v768 = vpack.c.bf16 %v712, %v710
    %v769 = vpack.c.bf16 %v713, %v711
    %v770 = vpack.c.bf16 %v716, %v714
    %v771 = vpack.c.bf16 %v717, %v715
    %v772 = vpack.c.bf16 %v720, %v718
    %v773 = vpack.c.bf16 %v721, %v719
    %v774 = vpack.c.bf16 %v724, %v722
    %v775 = vpack.c.bf16 %v725, %v723
    %v776 = vpack.c.bf16 %v728, %v726
    %v777 = vpack.c.bf16 %v729, %v727
    %v778 = vpack.c.bf16 %v732, %v730
    %v779 = vpack.c.bf16 %v733, %v731
    %v780 = vpack.c.bf16 %v736, %v734
    %v781 = vpack.c.bf16 %v737, %v735
    %v782 = vpack.c.bf16 %v740, %v738
    %v783 = vpack.c.bf16 %v741, %v739
    %v784 = vpack.c.bf16 %v744, %v742
    %v785 = vpack.c.bf16 %v745, %v743
    %v786 = vpack.c.bf16 %v748, %v746
    %v787 = vpack.c.bf16 %v749, %v747
    %v788 = vpack.c.bf16 %v752, %v750
    %v789 = vpack.c.bf16 %v753, %v751
    %v790 = vpack.c.bf16 %v756, %v754
    %v791 = vpack.c.bf16 %v757, %v755
    %v792 = vpack.c.bf16 %v760, %v758
    %v793 = vpack.c.bf16 %v761, %v759
    %v794 = vld [vmem:[%s5] sm:$0xf]
    %v795 = vld [vmem:[%s5 + $0x4] sm:$0xf]
    %v796 = vld [vmem:[%s5 + $0x8] sm:$0xf]
    %v797 = vld [vmem:[%s5 + $0xc] sm:$0xf]
    %v798 = vld [vmem:[%s5 + $0x10] sm:$0xf]
    %v799 = vld [vmem:[%s5 + $0x14] sm:$0xf]
    %v800 = vld [vmem:[%s5 + $0x18] sm:$0xf]
    %v801 = vld [vmem:[%s5 + $0x1c] sm:$0xf]
    %v802 = vld [vmem:[%s5 + $0x20] sm:$0xf]
    %v803 = vld [vmem:[%s5 + $0x24] sm:$0xf]
    %v804 = vld [vmem:[%s5 + $0x28] sm:$0xf]
    %v805 = vld [vmem:[%s5 + $0x2c] sm:$0xf]
    %v806 = vld [vmem:[%s5 + $0x30] sm:$0xf]
    %v807 = vld [vmem:[%s5 + $0x34] sm:$0xf]
    %v808 = vld [vmem:[%s5 + $0x38] sm:$0xf]
    %v809 = vld [vmem:[%s5 + $0x3c] sm:$0xf]
    %v810 = vld [vmem:[%s5 + $0x40] sm:$0xf]
    %v811 = vld [vmem:[%s5 + $0x44] sm:$0xf]
    %v812 = vld [vmem:[%s5 + $0x48] sm:$0xf]
    %v813 = vld [vmem:[%s5 + $0x4c] sm:$0xf]
    %v814 = vld [vmem:[%s5 + $0x50] sm:$0xf]
    %v815 = vld [vmem:[%s5 + $0x54] sm:$0xf]
    %v816 = vld [vmem:[%s5 + $0x58] sm:$0xf]
    %v817 = vld [vmem:[%s5 + $0x5c] sm:$0xf]
    %v818 = vld [vmem:[%s5 + $0x60] sm:$0xf]
    %v819 = vld [vmem:[%s5 + $0x64] sm:$0xf]
    %v820 = vld [vmem:[%s5 + $0x68] sm:$0xf]
    %v821 = vld [vmem:[%s5 + $0x6c] sm:$0xf]
    %v822 = vld [vmem:[%s5 + $0x70] sm:$0xf]
    %v823 = vld [vmem:[%s5 + $0x74] sm:$0xf]
    %v824 = vld [vmem:[%s5 + $0x78] sm:$0xf]
    %v825 = vld [vmem:[%s5 + $0x7c] sm:$0xf]
    %v826 = vld [vmem:[%s6] sm:$0x1]
    %v828 = vlaneseq
    %v829 = vshrl.u32 %v828, 7
    %v830 = vsub.s32 0, %v829
    %v831 = vrot.slane %v826, %v830
    %v865 = vunpack.c.l.b16 %v794
    %v866 = vunpack.c.l.b16 %v795
    %v867 = vunpack.c.l.b16 %v796
    %v868 = vunpack.c.l.b16 %v797
    %v869 = vunpack.c.l.b16 %v798
    %v870 = vunpack.c.l.b16 %v799
    %v871 = vunpack.c.l.b16 %v800
    %v872 = vunpack.c.l.b16 %v801
    %v873 = vunpack.c.l.b16 %v802
    %v874 = vunpack.c.l.b16 %v803
    %v875 = vunpack.c.l.b16 %v804
    %v876 = vunpack.c.l.b16 %v805
    %v877 = vunpack.c.l.b16 %v806
    %v878 = vunpack.c.l.b16 %v807
    %v879 = vunpack.c.l.b16 %v808
    %v880 = vunpack.c.l.b16 %v809
    %v881 = vunpack.c.l.b16 %v810
    %v882 = vunpack.c.l.b16 %v811
    %v883 = vunpack.c.l.b16 %v812
    %v884 = vunpack.c.l.b16 %v813
    %v885 = vunpack.c.l.b16 %v814
    %v886 = vunpack.c.l.b16 %v815
    %v887 = vunpack.c.l.b16 %v816
    %v888 = vunpack.c.l.b16 %v817
    %v889 = vunpack.c.l.b16 %v818
    %v890 = vunpack.c.l.b16 %v819
    %v891 = vunpack.c.l.b16 %v820
    %v892 = vunpack.c.l.b16 %v821
    %v893 = vunpack.c.l.b16 %v822
    %v894 = vunpack.c.l.b16 %v823
    %v895 = vunpack.c.l.b16 %v824
    %v896 = vunpack.c.l.b16 %v825
    %v897 = vpack.c.b16 %v866, %v865
    %v898 = vpack.c.b16 %v868, %v867
    %v899 = vpack.c.b16 %v870, %v869
    %v900 = vpack.c.b16 %v872, %v871
    %v901 = vpack.c.b16 %v874, %v873
    %v902 = vpack.c.b16 %v876, %v875
    %v903 = vpack.c.b16 %v878, %v877
    %v904 = vpack.c.b16 %v880, %v879
    %v905 = vpack.c.b16 %v882, %v881
    %v906 = vpack.c.b16 %v884, %v883
    %v907 = vpack.c.b16 %v886, %v885
    %v908 = vpack.c.b16 %v888, %v887
    %v909 = vpack.c.b16 %v890, %v889
    %v910 = vpack.c.b16 %v892, %v891
    %v911 = vpack.c.b16 %v894, %v893
    %v912 = vpack.c.b16 %v896, %v895
    %929 = vmatprep.subr.bf16.mxu0 0
    %930 = vmatpush1.bf16.msra.mxu0 %v897
    %931 = vmatprep.subr.bf16.mxu0 0
    %932 = vmatpush1.bf16.msra.mxu0 %v898
    %933 = vmatprep.subr.bf16.mxu0 0
    %934 = vmatpush1.bf16.msra.mxu0 %v899
    %935 = vmatprep.subr.bf16.mxu0 0
    %936 = vmatpush1.bf16.msra.mxu0 %v900
    %937 = vmatprep.subr.bf16.mxu0 0
    %938 = vmatpush1.bf16.msra.mxu0 %v901
    %939 = vmatprep.subr.bf16.mxu0 0
    %940 = vmatpush1.bf16.msra.mxu0 %v902
    %941 = vmatprep.subr.bf16.mxu0 0
    %942 = vmatpush1.bf16.msra.mxu0 %v903
    %943 = vmatprep.subr.bf16.mxu0 0
    %944 = vmatpush1.bf16.msra.mxu0 %v904
    %945 = vmatprep.subr.bf16.mxu0 0
    %946 = vmatpush1.bf16.msra.mxu0 %v905
    %947 = vmatprep.subr.bf16.mxu0 0
    %948 = vmatpush1.bf16.msra.mxu0 %v906
    %949 = vmatprep.subr.bf16.mxu0 0
    %950 = vmatpush1.bf16.msra.mxu0 %v907
    %951 = vmatprep.subr.bf16.mxu0 0
    %952 = vmatpush1.bf16.msra.mxu0 %v908
    %953 = vmatprep.subr.bf16.mxu0 0
    %954 = vmatpush1.bf16.msra.mxu0 %v909
    %955 = vmatprep.subr.bf16.mxu0 0
    %956 = vmatpush1.bf16.msra.mxu0 %v910
    %957 = vmatprep.subr.bf16.mxu0 0
    %958 = vmatpush1.bf16.msra.mxu0 %v911
    %959 = vmatprep.subr.bf16.mxu0 0
    %960 = vmatpush1.bf16.msra.mxu0 %v912
    %961 = vmatprep.mubr.bf16.mxu0 %v763
    %962 = vmatmul.mubr.bf16.gmra.mrb[0].mxu0 %v762
    %v963 = vpop.f32.mrb[0].mxu0
    %v964 = vadd.f32 %v831, %v963
    %v965 = vpop.f32.mrb[0].mxu0
    %v966 = vpop.f32.mrb[0].mxu0
    %v967 = vadd.f32 %v831, %v966
    %v968 = vpop.f32.mrb[0].mxu0
    %969 = vmatprep.mubr.bf16.mxu0 %v765
    %970 = vmatmul.mubr.bf16.gmra.mrb[0].mxu0 %v764
    %v971 = vpop.f32.mrb[0].mxu0
    %v972 = vadd.f32 %v831, %v971
    %v973 = vpop.f32.mrb[0].mxu0
    %v974 = vpop.f32.mrb[0].mxu0
    %v975 = vadd.f32 %v831, %v974
    %v976 = vpop.f32.mrb[0].mxu0
    %977 = vmatprep.mubr.bf16.mxu0 %v767
    %978 = vmatmul.mubr.bf16.gmra.mrb[0].mxu0 %v766
    %v979 = vpop.f32.mrb[0].mxu0
    %v980 = vadd.f32 %v831, %v979
    %v981 = vpop.f32.mrb[0].mxu0
    %v982 = vpop.f32.mrb[0].mxu0
    %v983 = vadd.f32 %v831, %v982
    %v984 = vpop.f32.mrb[0].mxu0
    %985 = vmatprep.mubr.bf16.mxu0 %v769
    %986 = vmatmul.mubr.bf16.gmra.mrb[0].mxu0 %v768
    %v987 = vpop.f32.mrb[0].mxu0
    %v988 = vadd.f32 %v831, %v987
    %v989 = vpop.f32.mrb[0].mxu0
    %v990 = vpop.f32.mrb[0].mxu0
    %v991 = vadd.f32 %v831, %v990
    %v992 = vpop.f32.mrb[0].mxu0
    %993 = vmatprep.mubr.bf16.mxu0 %v771
    %994 = vmatmul.mubr.bf16.gmra.mrb[0].mxu0 %v770
    %v995 = vpop.f32.mrb[0].mxu0
    %v996 = vadd.f32 %v831, %v995
    %v997 = vpop.f32.mrb[0].mxu0
    %v998 = vpop.f32.mrb[0].mxu0
    %v999 = vadd.f32 %v831, %v998
    %v1000 = vpop.f32.mrb[0].mxu0
    %1001 = vmatprep.mubr.bf16.mxu0 %v773
    %1002 = vmatmul.mubr.bf16.gmra.mrb[0].mxu0 %v772
    %v1003 = vpop.f32.mrb[0].mxu0
    %v1004 = vadd.f32 %v831, %v1003
    %v1005 = vpop.f32.mrb[0].mxu0
    %v1006 = vpop.f32.mrb[0].mxu0
    %v1007 = vadd.f32 %v831, %v1006
    %v1008 = vpop.f32.mrb[0].mxu0
    %1009 = vmatprep.mubr.bf16.mxu0 %v775
    %1010 = vmatmul.mubr.bf16.gmra.mrb[0].mxu0 %v774
    %v1011 = vpop.f32.mrb[0].mxu0
    %v1012 = vadd.f32 %v831, %v1011
    %v1013 = vpop.f32.mrb[0].mxu0
    %v1014 = vpop.f32.mrb[0].mxu0
    %v1015 = vadd.f32 %v831, %v1014
    %v1016 = vpop.f32.mrb[0].mxu0
    %1017 = vmatprep.mubr.bf16.mxu0 %v777
    %1018 = vmatmul.mubr.bf16.gmra.mrb[0].mxu0 %v776
    %v1019 = vpop.f32.mrb[0].mxu0
    %v1020 = vadd.f32 %v831, %v1019
    %v1021 = vpop.f32.mrb[0].mxu0
    %v1022 = vpop.f32.mrb[0].mxu0
    %v1023 = vadd.f32 %v831, %v1022
    %v1024 = vpop.f32.mrb[0].mxu0
    %1025 = vmatprep.mubr.bf16.mxu0 %v779
    %1026 = vmatmul.mubr.bf16.gmra.mrb[0].mxu0 %v778
    %v1027 = vpop.f32.mrb[0].mxu0
    %v1028 = vadd.f32 %v831, %v1027
    %v1029 = vpop.f32.mrb[0].mxu0
    %v1030 = vpop.f32.mrb[0].mxu0
    %v1031 = vadd.f32 %v831, %v1030
    %v1032 = vpop.f32.mrb[0].mxu0
    %1033 = vmatprep.mubr.bf16.mxu0 %v781
    %1034 = vmatmul.mubr.bf16.gmra.mrb[0].mxu0 %v780
    %v1035 = vpop.f32.mrb[0].mxu0
    %v1036 = vadd.f32 %v831, %v1035
    %v1037 = vpop.f32.mrb[0].mxu0
    %v1038 = vpop.f32.mrb[0].mxu0
    %v1039 = vadd.f32 %v831, %v1038
    %v1040 = vpop.f32.mrb[0].mxu0
    %1041 = vmatprep.mubr.bf16.mxu0 %v783
    %1042 = vmatmul.mubr.bf16.gmra.mrb[0].mxu0 %v782
    %v1043 = vpop.f32.mrb[0].mxu0
    %v1044 = vadd.f32 %v831, %v1043
    %v1045 = vpop.f32.mrb[0].mxu0
    %v1046 = vpop.f32.mrb[0].mxu0
    %v1047 = vadd.f32 %v831, %v1046
    %v1048 = vpop.f32.mrb[0].mxu0
    %1049 = vmatprep.mubr.bf16.mxu0 %v785
    %1050 = vmatmul.mubr.bf16.gmra.mrb[0].mxu0 %v784
    %v1051 = vpop.f32.mrb[0].mxu0
    %v1052 = vadd.f32 %v831, %v1051
    %v1053 = vpop.f32.mrb[0].mxu0
    %v1054 = vpop.f32.mrb[0].mxu0
    %v1055 = vadd.f32 %v831, %v1054
    %v1056 = vpop.f32.mrb[0].mxu0
    %1057 = vmatprep.mubr.bf16.mxu0 %v787
    %1058 = vmatmul.mubr.bf16.gmra.mrb[0].mxu0 %v786
    %v1059 = vpop.f32.mrb[0].mxu0
    %v1060 = vadd.f32 %v831, %v1059
    %v1061 = vpop.f32.mrb[0].mxu0
    %v1062 = vpop.f32.mrb[0].mxu0
    %v1063 = vadd.f32 %v831, %v1062
    %v1064 = vpop.f32.mrb[0].mxu0
    %1065 = vmatprep.mubr.bf16.mxu0 %v789
    %1066 = vmatmul.mubr.bf16.gmra.mrb[0].mxu0 %v788
    %v1067 = vpop.f32.mrb[0].mxu0
    %v1068 = vadd.f32 %v831, %v1067
    %v1069 = vpop.f32.mrb[0].mxu0
    %v1070 = vpop.f32.mrb[0].mxu0
    %v1071 = vadd.f32 %v831, %v1070
    %v1072 = vpop.f32.mrb[0].mxu0
    %1073 = vmatprep.mubr.bf16.mxu0 %v791
    %1074 = vmatmul.mubr.bf16.gmra.mrb[0].mxu0 %v790
    %v1075 = vpop.f32.mrb[0].mxu0
    %v1076 = vadd.f32 %v831, %v1075
    %v1077 = vpop.f32.mrb[0].mxu0
    %v1078 = vpop.f32.mrb[0].mxu0
    %v1079 = vadd.f32 %v831, %v1078
    %v1080 = vpop.f32.mrb[0].mxu0
    %1081 = vmatprep.mubr.bf16.mxu0 %v793
    %1082 = vmatmul.mubr.bf16.gmra.mrb[0].mxu0 %v792
    %v1083 = vpop.f32.mrb[0].mxu0
    %v1084 = vadd.f32 %v831, %v1083
    %v1085 = vpop.f32.mrb[0].mxu0
    %v1086 = vpop.f32.mrb[0].mxu0
    %v1087 = vadd.f32 %v831, %v1086
    %v1088 = vpop.f32.mrb[0].mxu0
    %1089 = vdwg.mxu0
    %v1090 = vmax.f32 %v964, 0.0
    %v1091 = vmax.f32 %v967, 0.0
    %v1092 = vmax.f32 %v972, 0.0
    %v1093 = vmax.f32 %v975, 0.0
    %v1094 = vmax.f32 %v980, 0.0
    %v1095 = vmax.f32 %v983, 0.0
    %v1096 = vmax.f32 %v988, 0.0
    %v1097 = vmax.f32 %v991, 0.0
    %v1098 = vmax.f32 %v996, 0.0
    %v1099 = vmax.f32 %v999, 0.0
    %v1100 = vmax.f32 %v1004, 0.0
    %v1101 = vmax.f32 %v1007, 0.0
    %v1102 = vmax.f32 %v1012, 0.0
    %v1103 = vmax.f32 %v1015, 0.0
    %v1104 = vmax.f32 %v1020, 0.0
    %v1105 = vmax.f32 %v1023, 0.0
    %v1106 = vmax.f32 %v1028, 0.0
    %v1107 = vmax.f32 %v1031, 0.0
    %v1108 = vmax.f32 %v1036, 0.0
    %v1109 = vmax.f32 %v1039, 0.0
    %v1110 = vmax.f32 %v1044, 0.0
    %v1111 = vmax.f32 %v1047, 0.0
    %v1112 = vmax.f32 %v1052, 0.0
    %v1113 = vmax.f32 %v1055, 0.0
    %v1114 = vmax.f32 %v1060, 0.0
    %v1115 = vmax.f32 %v1063, 0.0
    %v1116 = vmax.f32 %v1068, 0.0
    %v1117 = vmax.f32 %v1071, 0.0
    %v1118 = vmax.f32 %v1076, 0.0
    %v1119 = vmax.f32 %v1079, 0.0
    %v1120 = vmax.f32 %v1084, 0.0
    %v1121 = vmax.f32 %v1087, 0.0
    %v1122 = vpack.c.bf16 %v1091, %v1090
    %v1123 = vpack.c.bf16 %v1093, %v1092
    %v1124 = vpack.c.bf16 %v1095, %v1094
    %v1125 = vpack.c.bf16 %v1097, %v1096
    %v1126 = vpack.c.bf16 %v1099, %v1098
    %v1127 = vpack.c.bf16 %v1101, %v1100
    %v1128 = vpack.c.bf16 %v1103, %v1102
    %v1129 = vpack.c.bf16 %v1105, %v1104
    %v1130 = vpack.c.bf16 %v1107, %v1106
    %v1131 = vpack.c.bf16 %v1109, %v1108
    %v1132 = vpack.c.bf16 %v1111, %v1110
    %v1133 = vpack.c.bf16 %v1113, %v1112
    %v1134 = vpack.c.bf16 %v1115, %v1114
    %v1135 = vpack.c.bf16 %v1117, %v1116
    %v1136 = vpack.c.bf16 %v1119, %v1118
    %v1137 = vpack.c.bf16 %v1121, %v1120
    %v1138 = vld [vmem:[%s7] sm:$0xf]
    %v1139 = vld [vmem:[%s7 + $0x4] sm:$0xf]
    %v1140 = vld [vmem:[%s7 + $0x8] sm:$0xf]
    %v1141 = vld [vmem:[%s7 + $0xc] sm:$0xf]
    %v1142 = vld [vmem:[%s7 + $0x10] sm:$0xf]
    %v1143 = vld [vmem:[%s7 + $0x14] sm:$0xf]
    %v1144 = vld [vmem:[%s7 + $0x18] sm:$0xf]
    %v1145 = vld [vmem:[%s7 + $0x1c] sm:$0xf]
    %v1146 = vld [vmem:[%s7 + $0x20] sm:$0xf]
    %v1147 = vld [vmem:[%s7 + $0x24] sm:$0xf]
    %v1148 = vld [vmem:[%s7 + $0x28] sm:$0xf]
    %v1149 = vld [vmem:[%s7 + $0x2c] sm:$0xf]
    %v1150 = vld [vmem:[%s7 + $0x30] sm:$0xf]
    %v1151 = vld [vmem:[%s7 + $0x34] sm:$0xf]
    %v1152 = vld [vmem:[%s7 + $0x38] sm:$0xf]
    %v1153 = vld [vmem:[%s7 + $0x3c] sm:$0xf]
    %v1154 = vld [vmem:[%s8] sm:$0x1]
    %v1156 = vlaneseq
    %v1157 = vshrl.u32 %v1156, 7
    %v1158 = vsub.s32 0, %v1157
    %v1159 = vrot.slane %v1154, %v1158
    %v1177 = vunpack.c.l.b16 %v1138
    %v1178 = vunpack.c.l.b16 %v1139
    %v1179 = vunpack.c.l.b16 %v1140
    %v1180 = vunpack.c.l.b16 %v1141
    %v1181 = vunpack.c.l.b16 %v1142
    %v1182 = vunpack.c.l.b16 %v1143
    %v1183 = vunpack.c.l.b16 %v1144
    %v1184 = vunpack.c.l.b16 %v1145
    %v1185 = vunpack.c.l.b16 %v1146
    %v1186 = vunpack.c.l.b16 %v1147
    %v1187 = vunpack.c.l.b16 %v1148
    %v1188 = vunpack.c.l.b16 %v1149
    %v1189 = vunpack.c.l.b16 %v1150
    %v1190 = vunpack.c.l.b16 %v1151
    %v1191 = vunpack.c.l.b16 %v1152
    %v1192 = vunpack.c.l.b16 %v1153
    %v1193 = vpack.c.b16 %v1178, %v1177
    %v1194 = vpack.c.b16 %v1180, %v1179
    %v1195 = vpack.c.b16 %v1182, %v1181
    %v1196 = vpack.c.b16 %v1184, %v1183
    %v1197 = vpack.c.b16 %v1186, %v1185
    %v1198 = vpack.c.b16 %v1188, %v1187
    %v1199 = vpack.c.b16 %v1190, %v1189
    %v1200 = vpack.c.b16 %v1192, %v1191
    %1209 = vmatprep.subr.bf16.mxu0 0
    %1210 = vmatpush1.bf16.msra.mxu0 %v1193
    %1211 = vmatprep.subr.bf16.mxu0 0
    %1212 = vmatpush1.bf16.msra.mxu0 %v1194
    %1213 = vmatprep.subr.bf16.mxu0 0
    %1214 = vmatpush1.bf16.msra.mxu0 %v1195
    %1215 = vmatprep.subr.bf16.mxu0 0
    %1216 = vmatpush1.bf16.msra.mxu0 %v1196
    %1217 = vmatprep.subr.bf16.mxu0 0
    %1218 = vmatpush1.bf16.msra.mxu0 %v1197
    %1219 = vmatprep.subr.bf16.mxu0 0
    %1220 = vmatpush1.bf16.msra.mxu0 %v1198
    %1221 = vmatprep.subr.bf16.mxu0 0
    %1222 = vmatpush1.bf16.msra.mxu0 %v1199
    %1223 = vmatprep.subr.bf16.mxu0 0
    %1224 = vmatpush1.bf16.msra.mxu0 %v1200
    %1225 = vmatprep.subr.bf16.mxu0 0
    %1226 = vmatpush1.bf16.msra.mxu0 0
    %1227 = vmatprep.subr.bf16.mxu0 0
    %1228 = vmatpush1.bf16.msra.mxu0 0
    %1229 = vmatprep.subr.bf16.mxu0 0
    %1230 = vmatpush1.bf16.msra.mxu0 0
    %1231 = vmatprep.subr.bf16.mxu0 0
    %1232 = vmatpush1.bf16.msra.mxu0 0
    %1233 = vmatprep.subr.bf16.mxu0 0
    %1234 = vmatpush1.bf16.msra.mxu0 0
    %1235 = vmatprep.subr.bf16.mxu0 0
    %1236 = vmatpush1.bf16.msra.mxu0 0
    %1237 = vmatprep.subr.bf16.mxu0 0
    %1238 = vmatpush1.bf16.msra.mxu0 0
    %1239 = vmatprep.subr.bf16.mxu0 0
    %1240 = vmatpush1.bf16.msra.mxu0 0
    %1241 = vmatprep.mubr.bf16.mxu0 0
    %1242 = vmatmul.mubr.bf16.gmra.mrb[0].mxu0 %v1122
    %v1243 = vpop.f32.mrb[0].mxu0
    %v1244 = vadd.f32 %v1159, %v1243
    %v1245 = vpop.f32.mrb[0].mxu0
    %v1246 = vpop.f32.mrb[0].mxu0
    %v1247 = vadd.f32 %v1159, %v1246
    %v1248 = vpop.f32.mrb[0].mxu0
    %1249 = vmatprep.mubr.bf16.mxu0 0
    %1250 = vmatmul.mubr.bf16.gmra.mrb[0].mxu0 %v1123
    %v1251 = vpop.f32.mrb[0].mxu0
    %v1252 = vadd.f32 %v1159, %v1251
    %v1253 = vpop.f32.mrb[0].mxu0
    %v1254 = vpop.f32.mrb[0].mxu0
    %v1255 = vadd.f32 %v1159, %v1254
    %v1256 = vpop.f32.mrb[0].mxu0
    %1257 = vmatprep.mubr.bf16.mxu0 0
    %1258 = vmatmul.mubr.bf16.gmra.mrb[0].mxu0 %v1124
    %v1259 = vpop.f32.mrb[0].mxu0
    %v1260 = vadd.f32 %v1159, %v1259
    %v1261 = vpop.f32.mrb[0].mxu0
    %v1262 = vpop.f32.mrb[0].mxu0
    %v1263 = vadd.f32 %v1159, %v1262
    %v1264 = vpop.f32.mrb[0].mxu0
    %1265 = vmatprep.mubr.bf16.mxu0 0
    %1266 = vmatmul.mubr.bf16.gmra.mrb[0].mxu0 %v1125
    %v1267 = vpop.f32.mrb[0].mxu0
    %v1268 = vadd.f32 %v1159, %v1267
    %v1269 = vpop.f32.mrb[0].mxu0
    %v1270 = vpop.f32.mrb[0].mxu0
    %v1271 = vadd.f32 %v1159, %v1270
    %v1272 = vpop.f32.mrb[0].mxu0
    %1273 = vmatprep.mubr.bf16.mxu0 0
    %1274 = vmatmul.mubr.bf16.gmra.mrb[0].mxu0 %v1126
    %v1275 = vpop.f32.mrb[0].mxu0
    %v1276 = vadd.f32 %v1159, %v1275
    %v1277 = vpop.f32.mrb[0].mxu0
    %v1278 = vpop.f32.mrb[0].mxu0
    %v1279 = vadd.f32 %v1159, %v1278
    %v1280 = vpop.f32.mrb[0].mxu0
    %1281 = vmatprep.mubr.bf16.mxu0 0
    %1282 = vmatmul.mubr.bf16.gmra.mrb[0].mxu0 %v1127
    %v1283 = vpop.f32.mrb[0].mxu0
    %v1284 = vadd.f32 %v1159, %v1283
    %v1285 = vpop.f32.mrb[0].mxu0
    %v1286 = vpop.f32.mrb[0].mxu0
    %v1287 = vadd.f32 %v1159, %v1286
    %v1288 = vpop.f32.mrb[0].mxu0
    %1289 = vmatprep.mubr.bf16.mxu0 0
    %1290 = vmatmul.mubr.bf16.gmra.mrb[0].mxu0 %v1128
    %v1291 = vpop.f32.mrb[0].mxu0
    %v1292 = vadd.f32 %v1159, %v1291
    %v1293 = vpop.f32.mrb[0].mxu0
    %v1294 = vpop.f32.mrb[0].mxu0
    %v1295 = vadd.f32 %v1159, %v1294
    %v1296 = vpop.f32.mrb[0].mxu0
    %1297 = vmatprep.mubr.bf16.mxu0 0
    %1298 = vmatmul.mubr.bf16.gmra.mrb[0].mxu0 %v1129
    %v1299 = vpop.f32.mrb[0].mxu0
    %v1300 = vadd.f32 %v1159, %v1299
    %v1301 = vpop.f32.mrb[0].mxu0
    %v1302 = vpop.f32.mrb[0].mxu0
    %v1303 = vadd.f32 %v1159, %v1302
    %v1304 = vpop.f32.mrb[0].mxu0
    %1305 = vmatprep.mubr.bf16.mxu0 0
    %1306 = vmatmul.mubr.bf16.gmra.mrb[0].mxu0 %v1130
    %v1307 = vpop.f32.mrb[0].mxu0
    %v1308 = vadd.f32 %v1159, %v1307
    %v1309 = vpop.f32.mrb[0].mxu0
    %v1310 = vpop.f32.mrb[0].mxu0
    %v1311 = vadd.f32 %v1159, %v1310
    %v1312 = vpop.f32.mrb[0].mxu0
    %1313 = vmatprep.mubr.bf16.mxu0 0
    %1314 = vmatmul.mubr.bf16.gmra.mrb[0].mxu0 %v1131
    %v1315 = vpop.f32.mrb[0].mxu0
    %v1316 = vadd.f32 %v1159, %v1315
    %v1317 = vpop.f32.mrb[0].mxu0
    %v1318 = vpop.f32.mrb[0].mxu0
    %v1319 = vadd.f32 %v1159, %v1318
    %v1320 = vpop.f32.mrb[0].mxu0
    %1321 = vmatprep.mubr.bf16.mxu0 0
    %1322 = vmatmul.mubr.bf16.gmra.mrb[0].mxu0 %v1132
    %v1323 = vpop.f32.mrb[0].mxu0
    %v1324 = vadd.f32 %v1159, %v1323
    %v1325 = vpop.f32.mrb[0].mxu0
    %v1326 = vpop.f32.mrb[0].mxu0
    %v1327 = vadd.f32 %v1159, %v1326
    %v1328 = vpop.f32.mrb[0].mxu0
    %1329 = vmatprep.mubr.bf16.mxu0 0
    %1330 = vmatmul.mubr.bf16.gmra.mrb[0].mxu0 %v1133
    %v1331 = vpop.f32.mrb[0].mxu0
    %v1332 = vadd.f32 %v1159, %v1331
    %v1333 = vpop.f32.mrb[0].mxu0
    %v1334 = vpop.f32.mrb[0].mxu0
    %v1335 = vadd.f32 %v1159, %v1334
    %v1336 = vpop.f32.mrb[0].mxu0
    %1337 = vmatprep.mubr.bf16.mxu0 0
    %1338 = vmatmul.mubr.bf16.gmra.mrb[0].mxu0 %v1134
    %v1339 = vpop.f32.mrb[0].mxu0
    %v1340 = vadd.f32 %v1159, %v1339
    %v1341 = vpop.f32.mrb[0].mxu0
    %v1342 = vpop.f32.mrb[0].mxu0
    %v1343 = vadd.f32 %v1159, %v1342
    %v1344 = vpop.f32.mrb[0].mxu0
    %1345 = vmatprep.mubr.bf16.mxu0 0
    %1346 = vmatmul.mubr.bf16.gmra.mrb[0].mxu0 %v1135
    %v1347 = vpop.f32.mrb[0].mxu0
    %v1348 = vadd.f32 %v1159, %v1347
    %v1349 = vpop.f32.mrb[0].mxu0
    %v1350 = vpop.f32.mrb[0].mxu0
    %v1351 = vadd.f32 %v1159, %v1350
    %v1352 = vpop.f32.mrb[0].mxu0
    %1353 = vmatprep.mubr.bf16.mxu0 0
    %1354 = vmatmul.mubr.bf16.gmra.mrb[0].mxu0 %v1136
    %v1355 = vpop.f32.mrb[0].mxu0
    %v1356 = vadd.f32 %v1159, %v1355
    %v1357 = vpop.f32.mrb[0].mxu0
    %v1358 = vpop.f32.mrb[0].mxu0
    %v1359 = vadd.f32 %v1159, %v1358
    %v1360 = vpop.f32.mrb[0].mxu0
    %1361 = vmatprep.mubr.bf16.mxu0 0
    %1362 = vmatmul.mubr.bf16.gmra.mrb[0].mxu0 %v1137
    %v1363 = vpop.f32.mrb[0].mxu0
    %v1364 = vadd.f32 %v1159, %v1363
    %v1365 = vpop.f32.mrb[0].mxu0
    %v1366 = vpop.f32.mrb[0].mxu0
    %v1367 = vadd.f32 %v1159, %v1366
    %v1368 = vpop.f32.mrb[0].mxu0
    %1369 = vdwg.mxu0
    %v1370 = vmax.f32 %v1244, 0.0
    %v1371 = vmax.f32 %v1247, 0.0
    %v1372 = vmax.f32 %v1252, 0.0
    %v1373 = vmax.f32 %v1255, 0.0
    %v1374 = vmax.f32 %v1260, 0.0
    %v1375 = vmax.f32 %v1263, 0.0
    %v1376 = vmax.f32 %v1268, 0.0
    %v1377 = vmax.f32 %v1271, 0.0
    %v1378 = vmax.f32 %v1276, 0.0
    %v1379 = vmax.f32 %v1279, 0.0
    %v1380 = vmax.f32 %v1284, 0.0
    %v1381 = vmax.f32 %v1287, 0.0
    %v1382 = vmax.f32 %v1292, 0.0
    %v1383 = vmax.f32 %v1295, 0.0
    %v1384 = vmax.f32 %v1300, 0.0
    %v1385 = vmax.f32 %v1303, 0.0
    %v1386 = vmax.f32 %v1308, 0.0
    %v1387 = vmax.f32 %v1311, 0.0
    %v1388 = vmax.f32 %v1316, 0.0
    %v1389 = vmax.f32 %v1319, 0.0
    %v1390 = vmax.f32 %v1324, 0.0
    %v1391 = vmax.f32 %v1327, 0.0
    %v1392 = vmax.f32 %v1332, 0.0
    %v1393 = vmax.f32 %v1335, 0.0
    %v1394 = vmax.f32 %v1340, 0.0
    %v1395 = vmax.f32 %v1343, 0.0
    %v1396 = vmax.f32 %v1348, 0.0
    %v1397 = vmax.f32 %v1351, 0.0
    %v1398 = vmax.f32 %v1356, 0.0
    %v1399 = vmax.f32 %v1359, 0.0
    %v1400 = vmax.f32 %v1364, 0.0
    %v1401 = vmax.f32 %v1367, 0.0
    %v1402 = vpack.c.bf16 %v1371, %v1370
    %v1403 = vpack.c.bf16 %v1373, %v1372
    %v1404 = vpack.c.bf16 %v1375, %v1374
    %v1405 = vpack.c.bf16 %v1377, %v1376
    %v1406 = vpack.c.bf16 %v1379, %v1378
    %v1407 = vpack.c.bf16 %v1381, %v1380
    %v1408 = vpack.c.bf16 %v1383, %v1382
    %v1409 = vpack.c.bf16 %v1385, %v1384
    %v1410 = vpack.c.bf16 %v1387, %v1386
    %v1411 = vpack.c.bf16 %v1389, %v1388
    %v1412 = vpack.c.bf16 %v1391, %v1390
    %v1413 = vpack.c.bf16 %v1393, %v1392
    %v1414 = vpack.c.bf16 %v1395, %v1394
    %v1415 = vpack.c.bf16 %v1397, %v1396
    %v1416 = vpack.c.bf16 %v1399, %v1398
    %v1417 = vpack.c.bf16 %v1401, %v1400
    %v1418 = vld [vmem:[#allocation5] sm:$0xf]
    %v1419 = vld [vmem:[#allocation5 + $0x4] sm:$0xf]
    %v1420 = vld [vmem:[#allocation5 + $0x8] sm:$0xf]
    %v1421 = vld [vmem:[#allocation5 + $0xc] sm:$0xf]
    %v1422 = vld [vmem:[#allocation5 + $0x10] sm:$0xf]
    %v1423 = vld [vmem:[#allocation5 + $0x14] sm:$0xf]
    %v1424 = vld [vmem:[#allocation5 + $0x18] sm:$0xf]
    %v1425 = vld [vmem:[#allocation5 + $0x1c] sm:$0xf]
    %v1426 = vld [vmem:[#allocation5 + $0x20] sm:$0xf]
    %v1427 = vld [vmem:[#allocation5 + $0x24] sm:$0xf]
    %v1428 = vld [vmem:[#allocation5 + $0x28] sm:$0xf]
    %v1429 = vld [vmem:[#allocation5 + $0x2c] sm:$0xf]
    %v1430 = vld [vmem:[#allocation5 + $0x30] sm:$0xf]
    %v1431 = vld [vmem:[#allocation5 + $0x34] sm:$0xf]
    %v1432 = vld [vmem:[#allocation5 + $0x38] sm:$0xf]
    %v1433 = vld [vmem:[#allocation5 + $0x3c] sm:$0xf]
    %v1434 = vld [vmem:[%s10] sm:$0x1]
    %v1436 = vlaneseq
    %v1437 = vshrl.u32 %v1436, 7
    %v1438 = vsub.s32 0, %v1437
    %v1439 = vrot.slane %v1434, %v1438
    %v1457 = vunpack.c.l.b16 %v1418
    %v1458 = vunpack.c.l.b16 %v1419
    %v1459 = vunpack.c.l.b16 %v1420
    %v1460 = vunpack.c.l.b16 %v1421
    %v1461 = vunpack.c.l.b16 %v1422
    %v1462 = vunpack.c.l.b16 %v1423
    %v1463 = vunpack.c.l.b16 %v1424
    %v1464 = vunpack.c.l.b16 %v1425
    %v1465 = vunpack.c.l.b16 %v1426
    %v1466 = vunpack.c.l.b16 %v1427
    %v1467 = vunpack.c.l.b16 %v1428
    %v1468 = vunpack.c.l.b16 %v1429
    %v1469 = vunpack.c.l.b16 %v1430
    %v1470 = vunpack.c.l.b16 %v1431
    %v1471 = vunpack.c.l.b16 %v1432
    %v1472 = vunpack.c.l.b16 %v1433
    %v1473 = vpack.c.b16 %v1458, %v1457
    %v1474 = vpack.c.b16 %v1460, %v1459
    %v1475 = vpack.c.b16 %v1462, %v1461
    %v1476 = vpack.c.b16 %v1464, %v1463
    %v1477 = vpack.c.b16 %v1466, %v1465
    %v1478 = vpack.c.b16 %v1468, %v1467
    %v1479 = vpack.c.b16 %v1470, %v1469
    %v1480 = vpack.c.b16 %v1472, %v1471
    %1489 = vmatprep.subr.bf16.mxu0 0
    %1490 = vmatpush1.bf16.msra.mxu0 %v1473
    %1491 = vmatprep.subr.bf16.mxu0 0
    %1492 = vmatpush1.bf16.msra.mxu0 %v1474
    %1493 = vmatprep.subr.bf16.mxu0 0
    %1494 = vmatpush1.bf16.msra.mxu0 %v1475
    %1495 = vmatprep.subr.bf16.mxu0 0
    %1496 = vmatpush1.bf16.msra.mxu0 %v1476
    %1497 = vmatprep.subr.bf16.mxu0 0
    %1498 = vmatpush1.bf16.msra.mxu0 %v1477
    %1499 = vmatprep.subr.bf16.mxu0 0
    %1500 = vmatpush1.bf16.msra.mxu0 %v1478
    %1501 = vmatprep.subr.bf16.mxu0 0
    %1502 = vmatpush1.bf16.msra.mxu0 %v1479
    %1503 = vmatprep.subr.bf16.mxu0 0
    %1504 = vmatpush1.bf16.msra.mxu0 %v1480
    %1505 = vmatprep.subr.bf16.mxu0 0
    %1506 = vmatpush1.bf16.msra.mxu0 0
    %1507 = vmatprep.subr.bf16.mxu0 0
    %1508 = vmatpush1.bf16.msra.mxu0 0
    %1509 = vmatprep.subr.bf16.mxu0 0
    %1510 = vmatpush1.bf16.msra.mxu0 0
    %1511 = vmatprep.subr.bf16.mxu0 0
    %1512 = vmatpush1.bf16.msra.mxu0 0
    %1513 = vmatprep.subr.bf16.mxu0 0
    %1514 = vmatpush1.bf16.msra.mxu0 0
    %1515 = vmatprep.subr.bf16.mxu0 0
    %1516 = vmatpush1.bf16.msra.mxu0 0
    %1517 = vmatprep.subr.bf16.mxu0 0
    %1518 = vmatpush1.bf16.msra.mxu0 0
    %1519 = vmatprep.subr.bf16.mxu0 0
    %1520 = vmatpush1.bf16.msra.mxu0 0
    %1521 = vmatprep.mubr.bf16.mxu0 0
    %1522 = vmatmul.mubr.bf16.gmra.mrb[0].mxu0 %v1402
    %v1523 = vpop.f32.mrb[0].mxu0
    %v1524 = vadd.f32 %v1439, %v1523
    %v1525 = vpop.f32.mrb[0].mxu0
    %v1526 = vpop.f32.mrb[0].mxu0
    %v1527 = vadd.f32 %v1439, %v1526
    %v1528 = vpop.f32.mrb[0].mxu0
    %1529 = vmatprep.mubr.bf16.mxu0 0
    %1530 = vmatmul.mubr.bf16.gmra.mrb[0].mxu0 %v1403
    %v1531 = vpop.f32.mrb[0].mxu0
    %v1532 = vadd.f32 %v1439, %v1531
    %v1533 = vpop.f32.mrb[0].mxu0
    %v1534 = vpop.f32.mrb[0].mxu0
    %v1535 = vadd.f32 %v1439, %v1534
    %v1536 = vpop.f32.mrb[0].mxu0
    %1537 = vmatprep.mubr.bf16.mxu0 0
    %1538 = vmatmul.mubr.bf16.gmra.mrb[0].mxu0 %v1404
    %v1539 = vpop.f32.mrb[0].mxu0
    %v1540 = vadd.f32 %v1439, %v1539
    %v1541 = vpop.f32.mrb[0].mxu0
    %v1542 = vpop.f32.mrb[0].mxu0
    %v1543 = vadd.f32 %v1439, %v1542
    %v1544 = vpop.f32.mrb[0].mxu0
    %1545 = vmatprep.mubr.bf16.mxu0 0
    %1546 = vmatmul.mubr.bf16.gmra.mrb[0].mxu0 %v1405
    %v1547 = vpop.f32.mrb[0].mxu0
    %v1548 = vadd.f32 %v1439, %v1547
    %v1549 = vpop.f32.mrb[0].mxu0
    %v1550 = vpop.f32.mrb[0].mxu0
    %v1551 = vadd.f32 %v1439, %v1550
    %v1552 = vpop.f32.mrb[0].mxu0
    %1553 = vmatprep.mubr.bf16.mxu0 0
    %1554 = vmatmul.mubr.bf16.gmra.mrb[0].mxu0 %v1406
    %v1555 = vpop.f32.mrb[0].mxu0
    %v1556 = vadd.f32 %v1439, %v1555
    %v1557 = vpop.f32.mrb[0].mxu0
    %v1558 = vpop.f32.mrb[0].mxu0
    %v1559 = vadd.f32 %v1439, %v1558
    %v1560 = vpop.f32.mrb[0].mxu0
    %1561 = vmatprep.mubr.bf16.mxu0 0
    %1562 = vmatmul.mubr.bf16.gmra.mrb[0].mxu0 %v1407
    %v1563 = vpop.f32.mrb[0].mxu0
    %v1564 = vadd.f32 %v1439, %v1563
    %v1565 = vpop.f32.mrb[0].mxu0
    %v1566 = vpop.f32.mrb[0].mxu0
    %v1567 = vadd.f32 %v1439, %v1566
    %v1568 = vpop.f32.mrb[0].mxu0
    %1569 = vmatprep.mubr.bf16.mxu0 0
    %1570 = vmatmul.mubr.bf16.gmra.mrb[0].mxu0 %v1408
    %v1571 = vpop.f32.mrb[0].mxu0
    %v1572 = vadd.f32 %v1439, %v1571
    %v1573 = vpop.f32.mrb[0].mxu0
    %v1574 = vpop.f32.mrb[0].mxu0
    %v1575 = vadd.f32 %v1439, %v1574
    %v1576 = vpop.f32.mrb[0].mxu0
    %1577 = vmatprep.mubr.bf16.mxu0 0
    %1578 = vmatmul.mubr.bf16.gmra.mrb[0].mxu0 %v1409
    %v1579 = vpop.f32.mrb[0].mxu0
    %v1580 = vadd.f32 %v1439, %v1579
    %v1581 = vpop.f32.mrb[0].mxu0
    %v1582 = vpop.f32.mrb[0].mxu0
    %v1583 = vadd.f32 %v1439, %v1582
    %v1584 = vpop.f32.mrb[0].mxu0
    %1585 = vmatprep.mubr.bf16.mxu0 0
    %1586 = vmatmul.mubr.bf16.gmra.mrb[0].mxu0 %v1410
    %v1587 = vpop.f32.mrb[0].mxu0
    %v1588 = vadd.f32 %v1439, %v1587
    %v1589 = vpop.f32.mrb[0].mxu0
    %v1590 = vpop.f32.mrb[0].mxu0
    %v1591 = vadd.f32 %v1439, %v1590
    %v1592 = vpop.f32.mrb[0].mxu0
    %1593 = vmatprep.mubr.bf16.mxu0 0
    %1594 = vmatmul.mubr.bf16.gmra.mrb[0].mxu0 %v1411
    %v1595 = vpop.f32.mrb[0].mxu0
    %v1596 = vadd.f32 %v1439, %v1595
    %v1597 = vpop.f32.mrb[0].mxu0
    %v1598 = vpop.f32.mrb[0].mxu0
    %v1599 = vadd.f32 %v1439, %v1598
    %v1600 = vpop.f32.mrb[0].mxu0
    %1601 = vmatprep.mubr.bf16.mxu0 0
    %1602 = vmatmul.mubr.bf16.gmra.mrb[0].mxu0 %v1412
    %v1603 = vpop.f32.mrb[0].mxu0
    %v1604 = vadd.f32 %v1439, %v1603
    %v1605 = vpop.f32.mrb[0].mxu0
    %v1606 = vpop.f32.mrb[0].mxu0
    %v1607 = vadd.f32 %v1439, %v1606
    %v1608 = vpop.f32.mrb[0].mxu0
    %1609 = vmatprep.mubr.bf16.mxu0 0
    %1610 = vmatmul.mubr.bf16.gmra.mrb[0].mxu0 %v1413
    %v1611 = vpop.f32.mrb[0].mxu0
    %v1612 = vadd.f32 %v1439, %v1611
    %v1613 = vpop.f32.mrb[0].mxu0
    %v1614 = vpop.f32.mrb[0].mxu0
    %v1615 = vadd.f32 %v1439, %v1614
    %v1616 = vpop.f32.mrb[0].mxu0
    %1617 = vmatprep.mubr.bf16.mxu0 0
    %1618 = vmatmul.mubr.bf16.gmra.mrb[0].mxu0 %v1414
    %v1619 = vpop.f32.mrb[0].mxu0
    %v1620 = vadd.f32 %v1439, %v1619
    %v1621 = vpop.f32.mrb[0].mxu0
    %v1622 = vpop.f32.mrb[0].mxu0
    %v1623 = vadd.f32 %v1439, %v1622
    %v1624 = vpop.f32.mrb[0].mxu0
    %1625 = vmatprep.mubr.bf16.mxu0 0
    %1626 = vmatmul.mubr.bf16.gmra.mrb[0].mxu0 %v1415
    %v1627 = vpop.f32.mrb[0].mxu0
    %v1628 = vadd.f32 %v1439, %v1627
    %v1629 = vpop.f32.mrb[0].mxu0
    %v1630 = vpop.f32.mrb[0].mxu0
    %v1631 = vadd.f32 %v1439, %v1630
    %v1632 = vpop.f32.mrb[0].mxu0
    %1633 = vmatprep.mubr.bf16.mxu0 0
    %1634 = vmatmul.mubr.bf16.gmra.mrb[0].mxu0 %v1416
    %v1635 = vpop.f32.mrb[0].mxu0
    %v1636 = vadd.f32 %v1439, %v1635
    %v1637 = vpop.f32.mrb[0].mxu0
    %v1638 = vpop.f32.mrb[0].mxu0
    %v1639 = vadd.f32 %v1439, %v1638
    %v1640 = vpop.f32.mrb[0].mxu0
    %1641 = vmatprep.mubr.bf16.mxu0 0
    %1642 = vmatmul.mubr.bf16.gmra.mrb[0].mxu0 %v1417
    %v1643 = vpop.f32.mrb[0].mxu0
    %v1644 = vadd.f32 %v1439, %v1643
    %v1645 = vpop.f32.mrb[0].mxu0
    %v1646 = vpop.f32.mrb[0].mxu0
    %v1647 = vadd.f32 %v1439, %v1646
    %v1648 = vpop.f32.mrb[0].mxu0
    %1649 = vdwg.mxu0
    %v1650 = vpack.c.bf16 %v1527, %v1524
    %v1651 = vpack.c.bf16 %v1535, %v1532
    %v1652 = vpack.c.bf16 %v1543, %v1540
    %v1653 = vpack.c.bf16 %v1551, %v1548
    %v1654 = vpack.c.bf16 %v1559, %v1556
    %v1655 = vpack.c.bf16 %v1567, %v1564
    %v1656 = vpack.c.bf16 %v1575, %v1572
    %v1657 = vpack.c.bf16 %v1583, %v1580
    %v1658 = vpack.c.bf16 %v1591, %v1588
    %v1659 = vpack.c.bf16 %v1599, %v1596
    %v1660 = vpack.c.bf16 %v1607, %v1604
    %v1661 = vpack.c.bf16 %v1615, %v1612
    %v1662 = vpack.c.bf16 %v1623, %v1620
    %v1663 = vpack.c.bf16 %v1631, %v1628
    %v1664 = vpack.c.bf16 %v1639, %v1636
    %v1665 = vpack.c.bf16 %v1647, %v1644
    %v1682 = vunpack.c.l.b16 %v1650
    %v1683 = vunpack.c.h.b16 %v1650
    %v1684 = vunpack.c.l.b16 %v1651
    %v1685 = vunpack.c.h.b16 %v1651
    %v1686 = vunpack.c.l.b16 %v1652
    %v1687 = vunpack.c.h.b16 %v1652
    %v1688 = vunpack.c.l.b16 %v1653
    %v1689 = vunpack.c.h.b16 %v1653
    %v1690 = vunpack.c.l.b16 %v1654
    %v1691 = vunpack.c.h.b16 %v1654
    %v1692 = vunpack.c.l.b16 %v1655
    %v1693 = vunpack.c.h.b16 %v1655
    %v1694 = vunpack.c.l.b16 %v1656
    %v1695 = vunpack.c.h.b16 %v1656
    %v1696 = vunpack.c.l.b16 %v1657
    %v1697 = vunpack.c.h.b16 %v1657
    %v1698 = vunpack.c.l.b16 %v1658
    %v1699 = vunpack.c.h.b16 %v1658
    %v1700 = vunpack.c.l.b16 %v1659
    %v1701 = vunpack.c.h.b16 %v1659
    %v1702 = vunpack.c.l.b16 %v1660
    %v1703 = vunpack.c.h.b16 %v1660
    %v1704 = vunpack.c.l.b16 %v1661
    %v1705 = vunpack.c.h.b16 %v1661
    %v1706 = vunpack.c.l.b16 %v1662
    %v1707 = vunpack.c.h.b16 %v1662
    %v1708 = vunpack.c.l.b16 %v1663
    %v1709 = vunpack.c.h.b16 %v1663
    %v1710 = vunpack.c.l.b16 %v1664
    %v1711 = vunpack.c.h.b16 %v1664
    %v1712 = vunpack.c.l.b16 %v1665
    %v1713 = vunpack.c.h.b16 %v1665
    %v1714 = vpack.c.b16 %v1682, %v1682
    %v1715 = vpack.c.b16 %v1683, %v1683
    %v1716 = vpack.c.b16 %v1684, %v1684
    %v1717 = vpack.c.b16 %v1685, %v1685
    %v1718 = vpack.c.b16 %v1686, %v1686
    %v1719 = vpack.c.b16 %v1687, %v1687
    %v1720 = vpack.c.b16 %v1688, %v1688
    %v1721 = vpack.c.b16 %v1689, %v1689
    %v1722 = vpack.c.b16 %v1690, %v1690
    %v1723 = vpack.c.b16 %v1691, %v1691
    %v1724 = vpack.c.b16 %v1692, %v1692
    %v1725 = vpack.c.b16 %v1693, %v1693
    %v1726 = vpack.c.b16 %v1694, %v1694
    %v1727 = vpack.c.b16 %v1695, %v1695
    %v1728 = vpack.c.b16 %v1696, %v1696
    %v1729 = vpack.c.b16 %v1697, %v1697
    %v1730 = vpack.c.b16 %v1698, %v1698
    %v1731 = vpack.c.b16 %v1699, %v1699
    %v1732 = vpack.c.b16 %v1700, %v1700
    %v1733 = vpack.c.b16 %v1701, %v1701
    %v1734 = vpack.c.b16 %v1702, %v1702
    %v1735 = vpack.c.b16 %v1703, %v1703
    %v1736 = vpack.c.b16 %v1704, %v1704
    %v1737 = vpack.c.b16 %v1705, %v1705
    %v1738 = vpack.c.b16 %v1706, %v1706
    %v1739 = vpack.c.b16 %v1707, %v1707
    %v1740 = vpack.c.b16 %v1708, %v1708
    %v1741 = vpack.c.b16 %v1709, %v1709
    %v1742 = vpack.c.b16 %v1710, %v1710
    %v1743 = vpack.c.b16 %v1711, %v1711
    %v1744 = vpack.c.b16 %v1712, %v1712
    %v1745 = vpack.c.b16 %v1713, %v1713
    %1778 = vst [vmem:[#allocation7] sm:$0xf] %v1714
    %1779 = vst [vmem:[#allocation7 + $0x4] sm:$0xf] %v1715
    %1780 = vst [vmem:[#allocation7 + $0x8] sm:$0xf] %v1716
    %1781 = vst [vmem:[#allocation7 + $0xc] sm:$0xf] %v1717
    %1782 = vst [vmem:[#allocation7 + $0x10] sm:$0xf] %v1718
    %1783 = vst [vmem:[#allocation7 + $0x14] sm:$0xf] %v1719
    %1784 = vst [vmem:[#allocation7 + $0x18] sm:$0xf] %v1720
    %1785 = vst [vmem:[#allocation7 + $0x1c] sm:$0xf] %v1721
    %1786 = vst [vmem:[#allocation7 + $0x20] sm:$0xf] %v1722
    %1787 = vst [vmem:[#allocation7 + $0x24] sm:$0xf] %v1723
    %1788 = vst [vmem:[#allocation7 + $0x28] sm:$0xf] %v1724
    %1789 = vst [vmem:[#allocation7 + $0x2c] sm:$0xf] %v1725
    %1790 = vst [vmem:[#allocation7 + $0x30] sm:$0xf] %v1726
    %1791 = vst [vmem:[#allocation7 + $0x34] sm:$0xf] %v1727
    %1792 = vst [vmem:[#allocation7 + $0x38] sm:$0xf] %v1728
    %1793 = vst [vmem:[#allocation7 + $0x3c] sm:$0xf] %v1729
    %1794 = vst [vmem:[#allocation7 + $0x40] sm:$0xf] %v1730
    %1795 = vst [vmem:[#allocation7 + $0x44] sm:$0xf] %v1731
    %1796 = vst [vmem:[#allocation7 + $0x48] sm:$0xf] %v1732
    %1797 = vst [vmem:[#allocation7 + $0x4c] sm:$0xf] %v1733
    %1798 = vst [vmem:[#allocation7 + $0x50] sm:$0xf] %v1734
    %1799 = vst [vmem:[#allocation7 + $0x54] sm:$0xf] %v1735
    %1800 = vst [vmem:[#allocation7 + $0x58] sm:$0xf] %v1736
    %1801 = vst [vmem:[#allocation7 + $0x5c] sm:$0xf] %v1737
    %1802 = vst [vmem:[#allocation7 + $0x60] sm:$0xf] %v1738
    %1803 = vst [vmem:[#allocation7 + $0x64] sm:$0xf] %v1739
    %1804 = vst [vmem:[#allocation7 + $0x68] sm:$0xf] %v1740
    %1805 = vst [vmem:[#allocation7 + $0x6c] sm:$0xf] %v1741
    %1806 = vst [vmem:[#allocation7 + $0x70] sm:$0xf] %v1742
    %1807 = vst [vmem:[#allocation7 + $0x74] sm:$0xf] %v1743
    %1808 = vst [vmem:[#allocation7 + $0x78] sm:$0xf] %v1744
    %1809 = vst [vmem:[#allocation7 + $0x7c] sm:$0xf] %v1745
    // Predicated region
    $region54: #{mlp_forward.1} parent=1 // pred_check
      _
    $region55: #{mlp_forward.1} parent=1 // pred_check_branch
      %1811 = sbr.rel (0) target = $region57
    $region56: #{mlp_forward.1} parent=1 // pred_region
      %s1813 = ssub.s32 2048, 2048
      %1814 = vsyncadd [#allocation4], %s1813
      %s1815 = sshll.u32 [#allocation7], 4
      %s1816 = int_to_ptr.vmem [resolvable:$true] %s1815
      %1821 = dma.vmem_to_hbm [thread:$0]  %s1816, 2048, %s11, [#allocation4], 64, 64, 4
    $region57: #{mlp_forward.1} parent=1 // pred_fallthru
      _
    // Predicated region
    $region58: #{mlp_forward.1} parent=1 // pred_check
      _
    $region59: #{mlp_forward.1} parent=1 // pred_check_branch
      %1823 = sbr.rel (0) target = $region61
    $region60: #{mlp_forward.1} parent=1 // pred_region
      %1824 = dma.done [#allocation4], 2048
    $region61: #{mlp_forward.1} parent=1 // pred_fallthru
      _
    %1825 = vsyncpa [#allocation3], 1
    %1826 = vsyncpa [#allocation6], 1
    %1827 = vsyncpa [#allocation4], 1

// kernel: mlp_forward.1
$region0: #{mlp_forward.1}
  #allocation0 [shape = 'u32[]', space=smem, size = 0x4, offset = 0x4, fixed_abs, tag = 'smem constant byte address 0x4 - core index']
  #allocation1 [shape = 'u32[144,128]{1,0:T(1,128)}', space=vmem, size = 0x12000, scoped, tag = 'internal scratch']
  %s0 = inlined_call_operand.vmem [shape: f32[256,32], index: 0, kind: input, shape index: {}]
  %s1 = inlined_call_operand.hbm [shape: bf16[32,128], index: 1, kind: input, shape index: {}]
  %s2 = inlined_call_operand.vmem [shape: f32[1,128], index: 2, kind: input, shape index: {}]
  %s3 = inlined_call_operand.vmem [shape: bf16[128,256], index: 3, kind: input, shape index: {}]
  %s4 = inlined_call_operand.vmem [shape: f32[1,256], index: 4, kind: input, shape index: {}]
  %s5 = inlined_call_operand.vmem [shape: bf16[256,128], index: 5, kind: input, shape index: {}]
  %s6 = inlined_call_operand.vmem [shape: f32[1,128], index: 6, kind: input, shape index: {}]
  %s7 = inlined_call_operand.vmem [shape: bf16[128,128], index: 7, kind: input, shape index: {}]
  %s8 = inlined_call_operand.vmem [shape: f32[1,128], index: 8, kind: input, shape index: {}]
  %s9 = inlined_call_operand.hbm [shape: bf16[128,128], index: 9, kind: input, shape index: {}]
  %s10 = inlined_call_operand.vmem [shape: f32[1,128], index: 10, kind: input, shape index: {}]
  %s11 = inlined_call_operand.hbm [shape: bf16[256,128], index: 11, kind: output, shape index: {}]
  %s12 = sld [smem:[#allocation0]]
  $region62: #{mlp_forward.1} parent=0
    _
  %s14 = ssub.s32 1, %s12
  %s15 = scalar_select 0, %s14, %s12
  $region1: #{mlp_forward.1} parent=0
    #allocation2 [shape = 'u8[8192]{0}', space=vmem, size = 0x2000, scoped, tag = 'input window, operand 1, single buffered']
    #allocation3 [shape = 's32[1]{0}', space=sflag, size = 0x4, scoped, tag = 'scoped memory for mlp_forward.1']
    #allocation4 [shape = 's32[1]{0}', space=sflag, size = 0x4, scoped, tag = 'scoped memory for mlp_forward.1']
    #allocation5 [shape = 'u8[32768]{0}', space=vmem, size = 0x8000, scoped, tag = 'input window, operand 9, single buffered']
    #allocation6 [shape = 's32[1]{0}', space=sflag, size = 0x4, scoped, tag = 'scoped memory for mlp_forward.1']
    #allocation7 [shape = 'u8[65536]{0}', space=vmem, size = 0x10000, scoped, tag = 'output window, operand 0, single buffered']
    %16 = vsyncpa [#allocation3], 0
    %17 = vsyncpa [#allocation6], 0
    %18 = vsyncpa [#allocation4], 0
    // Predicated region
    $region2: #{mlp_forward.1} parent=1 // pred_check
      _
    $region3: #{mlp_forward.1} parent=1 // pred_check_branch
      %20 = sbr.rel (0) target = $region5
    $region4: #{mlp_forward.1} parent=1 // pred_region
      _
    $region5: #{mlp_forward.1} parent=1 // pred_fallthru
      _
    // Predicated region
    $region6: #{mlp_forward.1} parent=1 // pred_check
      _
    $region7: #{mlp_forward.1} parent=1 // pred_check_branch
      %22 = sbr.rel (0) target = $region9
    $region8: #{mlp_forward.1} parent=1 // pred_region
      %s24 = ssub.s32 256, 256
      %25 = vsyncadd [#allocation3], %s24
      %s26 = sshll.u32 [#allocation2], 4
      %s27 = int_to_ptr.vmem [resolvable:$true] %s26
      %32 = dma.hbm_to_vmem [thread:$0]  %s1, 256, %s27, [#allocation3], 64, 64, 4
    $region9: #{mlp_forward.1} parent=1 // pred_fallthru
      _
    // Predicated region
    $region10: #{mlp_forward.1} parent=1 // pred_check
      _
    $region11: #{mlp_forward.1} parent=1 // pred_check_branch
      %34 = sbr.rel (0) target = $region13
    $region12: #{mlp_forward.1} parent=1 // pred_region
      _
    $region13: #{mlp_forward.1} parent=1 // pred_fallthru
      _
    // Predicated region
    $region14: #{mlp_forward.1} parent=1 // pred_check
      _
    $region15: #{mlp_forward.1} parent=1 // pred_check_branch
      %36 = sbr.rel (0) target = $region17
    $region16: #{mlp_forward.1} parent=1 // pred_region
      _
    $region17: #{mlp_forward.1} parent=1 // pred_fallthru
      _
    // Predicated region
    $region18: #{mlp_forward.1} parent=1 // pred_check
      _
    $region19: #{mlp_forward.1} parent=1 // pred_check_branch
      %38 = sbr.rel (0) target = $region21
    $region20: #{mlp_forward.1} parent=1 // pred_region
      _
    $region21: #{mlp_forward.1} parent=1 // pred_fallthru
      _
    // Predicated region
    $region22: #{mlp_forward.1} parent=1 // pred_check
      _
    $region23: #{mlp_forward.1} parent=1 // pred_check_branch
      %40 = sbr.rel (0) target = $region25
    $region24: #{mlp_forward.1} parent=1 // pred_region
      _
    $region25: #{mlp_forward.1} parent=1 // pred_fallthru
      _
    // Predicated region
    $region26: #{mlp_forward.1} parent=1 // pred_check
      _
    $region27: #{mlp_forward.1} parent=1 // pred_check_branch
      %42 = sbr.rel (0) target = $region29
    $region28: #{mlp_forward.1} parent=1 // pred_region
      _
    $region29: #{mlp_forward.1} parent=1 // pred_fallthru
      _
    // Predicated region
    $region30: #{mlp_forward.1} parent=1 // pred_check
      _
    $region31: #{mlp_forward.1} parent=1 // pred_check_branch
      %44 = sbr.rel (0) target = $region33
    $region32: #{mlp_forward.1} parent=1 // pred_region
      _
    $region33: #{mlp_forward.1} parent=1 // pred_fallthru
      _
    // Predicated region
    $region34: #{mlp_forward.1} parent=1 // pred_check
      _
    $region35: #{mlp_forward.1} parent=1 // pred_check_branch
      %46 = sbr.rel (0) target = $region37
    $region36: #{mlp_forward.1} parent=1 // pred_region
      _
    $region37: #{mlp_forward.1} parent=1 // pred_fallthru
      _
    // Predicated region
    $region38: #{mlp_forward.1} parent=1 // pred_check
      _
    $region39: #{mlp_forward.1} parent=1 // pred_check_branch
      %48 = sbr.rel (0) target = $region41
    $region40: #{mlp_forward.1} parent=1 // pred_region
      %s50 = ssub.s32 1024, 1024
      %51 = vsyncadd [#allocation6], %s50
      %s52 = sshll.u32 [#allocation5], 4
      %s53 = int_to_ptr.vmem [resolvable:$true] %s52
      %58 = dma.hbm_to_vmem [thread:$0]  %s9, 1024, %s53, [#allocation6], 64, 64, 4
    $region41: #{mlp_forward.1} parent=1 // pred_fallthru
      _
    // Predicated region
    $region42: #{mlp_forward.1} parent=1 // pred_check
      _
    $region43: #{mlp_forward.1} parent=1 // pred_check_branch
      %60 = sbr.rel (0) target = $region45
    $region44: #{mlp_forward.1} parent=1 // pred_region
      _
    $region45: #{mlp_forward.1} parent=1 // pred_fallthru
      _
    // Predicated region
    $region46: #{mlp_forward.1} parent=1 // pred_check
      _
    $region47: #{mlp_forward.1} parent=1 // pred_check_branch
      %62 = sbr.rel (0) target = $region49
    $region48: #{mlp_forward.1} parent=1 // pred_region
      %63 = dma.done [#allocation3], 256
    $region49: #{mlp_forward.1} parent=1 // pred_fallthru
      _
    // Predicated region
    $region50: #{mlp_forward.1} parent=1 // pred_check
      _
    $region51: #{mlp_forward.1} parent=1 // pred_check_branch
      %65 = sbr.rel (0) target = $region53
    $region52: #{mlp_forward.1} parent=1 // pred_region
      %66 = dma.done [#allocation6], 1024
    $region53: #{mlp_forward.1} parent=1 // pred_fallthru
      _
    %v68 = vld [vmem:[%s0] sm:$0xff]
    %v69 = vld [vmem:[%s0 + $0x8] sm:$0xff]
    %v70 = vld [vmem:[%s0 + $0x10] sm:$0xff]
    %v71 = vld [vmem:[%s0 + $0x18] sm:$0xff]
    %v72 = vld [vmem:[%s0 + $0x20] sm:$0xff]
    %v73 = vld [vmem:[%s0 + $0x28] sm:$0xff]
    %v74 = vld [vmem:[%s0 + $0x30] sm:$0xff]
    %v75 = vld [vmem:[%s0 + $0x38] sm:$0xff]
    %v76 = vld [vmem:[%s0 + $0x40] sm:$0xff]
    %v77 = vld [vmem:[%s0 + $0x48] sm:$0xff]
    %v78 = vld [vmem:[%s0 + $0x50] sm:$0xff]
    %v79 = vld [vmem:[%s0 + $0x58] sm:$0xff]
    %v80 = vld [vmem:[%s0 + $0x60] sm:$0xff]
    %v81 = vld [vmem:[%s0 + $0x68] sm:$0xff]
    %v82 = vld [vmem:[%s0 + $0x70] sm:$0xff]
    %v83 = vld [vmem:[%s0 + $0x78] sm:$0xff]
    %v84 = vld [vmem:[%s0 + $0x80] sm:$0xff]
    %v85 = vld [vmem:[%s0 + $0x88] sm:$0xff]
    %v86 = vld [vmem:[%s0 + $0x90] sm:$0xff]
    %v87 = vld [vmem:[%s0 + $0x98] sm:$0xff]
    %v88 = vld [vmem:[%s0 + $0xa0] sm:$0xff]
    %v89 = vld [vmem:[%s0 + $0xa8] sm:$0xff]
    %v90 = vld [vmem:[%s0 + $0xb0] sm:$0xff]
    %v91 = vld [vmem:[%s0 + $0xb8] sm:$0xff]
    %v92 = vld [vmem:[%s0 + $0xc0] sm:$0xff]
    %v93 = vld [vmem:[%s0 + $0xc8] sm:$0xff]
    %v94 = vld [vmem:[%s0 + $0xd0] sm:$0xff]
    %v95 = vld [vmem:[%s0 + $0xd8] sm:$0xff]
    %v96 = vld [vmem:[%s0 + $0xe0] sm:$0xff]
    %v97 = vld [vmem:[%s0 + $0xe8] sm:$0xff]
    %v98 = vld [vmem:[%s0 + $0xf0] sm:$0xff]
    %v99 = vld [vmem:[%s0 + $0xf8] sm:$0xff]
    %v100 = vpack.c.bf16 %v69, %v68
    %v101 = vpack.c.bf16 %v71, %v70
    %v102 = vpack.c.bf16 %v73, %v72
    %v103 = vpack.c.bf16 %v75, %v74
    %v104 = vpack.c.bf16 %v77, %v76
    %v105 = vpack.c.bf16 %v79, %v78
    %v106 = vpack.c.bf16 %v81, %v80
    %v107 = vpack.c.bf16 %v83, %v82
    %v108 = vpack.c.bf16 %v85, %v84
    %v109 = vpack.c.bf16 %v87, %v86
    %v110 = vpack.c.bf16 %v89, %v88
    %v111 = vpack.c.bf16 %v91, %v90
    %v112 = vpack.c.bf16 %v93, %v92
    %v113 = vpack.c.bf16 %v95, %v94
    %v114 = vpack.c.bf16 %v97, %v96
    %v115 = vpack.c.bf16 %v99, %v98
    %v116 = vld [vmem:[#allocation2] sm:$0xf]
    %v117 = vld [vmem:[#allocation2 + $0x4] sm:$0xf]
    %v118 = vld [vmem:[#allocation2 + $0x8] sm:$0xf]
    %v119 = vld [vmem:[#allocation2 + $0xc] sm:$0xf]
    %v120 = vld [vmem:[%s2] sm:$0x1]
    %v122 = vlaneseq
    %v123 = vshrl.u32 %v122, 7
    %v124 = vsub.s32 0, %v123
    %v125 = vrot.slane %v120, %v124
    %v131 = vunpack.c.l.b16 %v116
    %v132 = vunpack.c.l.b16 %v117
    %v133 = vunpack.c.l.b16 %v118
    %v134 = vunpack.c.l.b16 %v119
    %v135 = vpack.c.b16 %v132, %v131
    %v136 = vpack.c.b16 %v134, %v133
    %vm139 = vcmask 261120
    %v141 = vsel %vm139, %v100, 0
    %v144 = vsel %vm139, %v101, 0
    %v147 = vsel %vm139, %v102, 0
    %v150 = vsel %vm139, %v103, 0
    %v153 = vsel %vm139, %v104, 0
    %v156 = vsel %vm139, %v105, 0
    %v159 = vsel %vm139, %v106, 0
    %v162 = vsel %vm139, %v107, 0
    %v165 = vsel %vm139, %v108, 0
    %v168 = vsel %vm139, %v109, 0
    %v171 = vsel %vm139, %v110, 0
    %v174 = vsel %vm139, %v111, 0
    %v177 = vsel %vm139, %v112, 0
    %v180 = vsel %vm139, %v113, 0
    %v183 = vsel %vm139, %v114, 0
    %v186 = vsel %vm139, %v115, 0
    %188 = vmatprep.subr.bf16.mxu0 0
    %189 = vmatpush1.bf16.msra.mxu0 %v135
    %190 = vmatprep.subr.bf16.mxu0 0
    %191 = vmatpush1.bf16.msra.mxu0 %v136
    %192 = vmatprep.subr.bf16.mxu0 0
    %193 = vmatpush1.bf16.msra.mxu0 0
    %194 = vmatprep.subr.bf16.mxu0 0
    %195 = vmatpush1.bf16.msra.mxu0 0
    %196 = vmatprep.subr.bf16.mxu0 0
    %197 = vmatpush1.bf16.msra.mxu0 0
    %198 = vmatprep.subr.bf16.mxu0 0
    %199 = vmatpush1.bf16.msra.mxu0 0
    %200 = vmatprep.subr.bf16.mxu0 0
    %201 = vmatpush1.bf16.msra.mxu0 0
    %202 = vmatprep.subr.bf16.mxu0 0
    %203 = vmatpush1.bf16.msra.mxu0 0
    %204 = vmatprep.subr.bf16.mxu0 0
    %205 = vmatpush1.bf16.msra.mxu0 0
    %206 = vmatprep.subr.bf16.mxu0 0
    %207 = vmatpush1.bf16.msra.mxu0 0
    %208 = vmatprep.subr.bf16.mxu0 0
    %209 = vmatpush1.bf16.msra.mxu0 0
    %210 = vmatprep.subr.bf16.mxu0 0
    %211 = vmatpush1.bf16.msra.mxu0 0
    %212 = vmatprep.subr.bf16.mxu0 0
    %213 = vmatpush1.bf16.msra.mxu0 0
    %214 = vmatprep.subr.bf16.mxu0 0
    %215 = vmatpush1.bf16.msra.mxu0 0
    %216 = vmatprep.subr.bf16.mxu0 0
    %217 = vmatpush1.bf16.msra.mxu0 0
    %218 = vmatprep.subr.bf16.mxu0 0
    %219 = vmatpush1.bf16.msra.mxu0 0
    %220 = vmatprep.mubr.bf16.mxu0 0
    %221 = vmatmul.mubr.bf16.gmra.mrb[0].mxu0 %v141
    %v222 = vpop.f32.mrb[0].mxu0
    %v223 = vadd.f32 %v125, %v222
    %v224 = vpop.f32.mrb[0].mxu0
    %v225 = vpop.f32.mrb[0].mxu0
    %v226 = vadd.f32 %v125, %v225
    %v227 = vpop.f32.mrb[0].mxu0
    %228 = vmatprep.mubr.bf16.mxu0 0
    %229 = vmatmul.mubr.bf16.gmra.mrb[0].mxu0 %v144
    %v230 = vpop.f32.mrb[0].mxu0
    %v231 = vadd.f32 %v125, %v230
    %v232 = vpop.f32.mrb[0].mxu0
    %v233 = vpop.f32.mrb[0].mxu0
    %v234 = vadd.f32 %v125, %v233
    %v235 = vpop.f32.mrb[0].mxu0
    %236 = vmatprep.mubr.bf16.mxu0 0
    %237 = vmatmul.mubr.bf16.gmra.mrb[0].mxu0 %v147
    %v238 = vpop.f32.mrb[0].mxu0
    %v239 = vadd.f32 %v125, %v238
    %v240 = vpop.f32.mrb[0].mxu0
    %v241 = vpop.f32.mrb[0].mxu0
    %v242 = vadd.f32 %v125, %v241
    %v243 = vpop.f32.mrb[0].mxu0
    %244 = vmatprep.mubr.bf16.mxu0 0
    %245 = vmatmul.mubr.bf16.gmra.mrb[0].mxu0 %v150
    %v246 = vpop.f32.mrb[0].mxu0
    %v247 = vadd.f32 %v125, %v246
    %v248 = vpop.f32.mrb[0].mxu0
    %v249 = vpop.f32.mrb[0].mxu0
    %v250 = vadd.f32 %v125, %v249
    %v251 = vpop.f32.mrb[0].mxu0
    %252 = vmatprep.mubr.bf16.mxu0 0
    %253 = vmatmul.mubr.bf16.gmra.mrb[0].mxu0 %v153
    %v254 = vpop.f32.mrb[0].mxu0
    %v255 = vadd.f32 %v125, %v254
    %v256 = vpop.f32.mrb[0].mxu0
    %v257 = vpop.f32.mrb[0].mxu0
    %v258 = vadd.f32 %v125, %v257
    %v259 = vpop.f32.mrb[0].mxu0
    %260 = vmatprep.mubr.bf16.mxu0 0
    %261 = vmatmul.mubr.bf16.gmra.mrb[0].mxu0 %v156
    %v262 = vpop.f32.mrb[0].mxu0
    %v263 = vadd.f32 %v125, %v262
    %v264 = vpop.f32.mrb[0].mxu0
    %v265 = vpop.f32.mrb[0].mxu0
    %v266 = vadd.f32 %v125, %v265
    %v267 = vpop.f32.mrb[0].mxu0
    %268 = vmatprep.mubr.bf16.mxu0 0
    %269 = vmatmul.mubr.bf16.gmra.mrb[0].mxu0 %v159
    %v270 = vpop.f32.mrb[0].mxu0
    %v271 = vadd.f32 %v125, %v270
    %v272 = vpop.f32.mrb[0].mxu0
    %v273 = vpop.f32.mrb[0].mxu0
    %v274 = vadd.f32 %v125, %v273
    %v275 = vpop.f32.mrb[0].mxu0
    %276 = vmatprep.mubr.bf16.mxu0 0
    %277 = vmatmul.mubr.bf16.gmra.mrb[0].mxu0 %v162
    %v278 = vpop.f32.mrb[0].mxu0
    %v279 = vadd.f32 %v125, %v278
    %v280 = vpop.f32.mrb[0].mxu0
    %v281 = vpop.f32.mrb[0].mxu0
    %v282 = vadd.f32 %v125, %v281
    %v283 = vpop.f32.mrb[0].mxu0
    %284 = vmatprep.mubr.bf16.mxu0 0
    %285 = vmatmul.mubr.bf16.gmra.mrb[0].mxu0 %v165
    %v286 = vpop.f32.mrb[0].mxu0
    %v287 = vadd.f32 %v125, %v286
    %v288 = vpop.f32.mrb[0].mxu0
    %v289 = vpop.f32.mrb[0].mxu0
    %v290 = vadd.f32 %v125, %v289
    %v291 = vpop.f32.mrb[0].mxu0
    %292 = vmatprep.mubr.bf16.mxu0 0
    %293 = vmatmul.mubr.bf16.gmra.mrb[0].mxu0 %v168
    %v294 = vpop.f32.mrb[0].mxu0
    %v295 = vadd.f32 %v125, %v294
    %v296 = vpop.f32.mrb[0].mxu0
    %v297 = vpop.f32.mrb[0].mxu0
    %v298 = vadd.f32 %v125, %v297
    %v299 = vpop.f32.mrb[0].mxu0
    %300 = vmatprep.mubr.bf16.mxu0 0
    %301 = vmatmul.mubr.bf16.gmra.mrb[0].mxu0 %v171
    %v302 = vpop.f32.mrb[0].mxu0
    %v303 = vadd.f32 %v125, %v302
    %v304 = vpop.f32.mrb[0].mxu0
    %v305 = vpop.f32.mrb[0].mxu0
    %v306 = vadd.f32 %v125, %v305
    %v307 = vpop.f32.mrb[0].mxu0
    %308 = vmatprep.mubr.bf16.mxu0 0
    %309 = vmatmul.mubr.bf16.gmra.mrb[0].mxu0 %v174
    %v310 = vpop.f32.mrb[0].mxu0
    %v311 = vadd.f32 %v125, %v310
    %v312 = vpop.f32.mrb[0].mxu0
    %v313 = vpop.f32.mrb[0].mxu0
    %v314 = vadd.f32 %v125, %v313
    %v315 = vpop.f32.mrb[0].mxu0
    %316 = vmatprep.mubr.bf16.mxu0 0
    %317 = vmatmul.mubr.bf16.gmra.mrb[0].mxu0 %v177
    %v318 = vpop.f32.mrb[0].mxu0
    %v319 = vadd.f32 %v125, %v318
    %v320 = vpop.f32.mrb[0].mxu0
    %v321 = vpop.f32.mrb[0].mxu0
    %v322 = vadd.f32 %v125, %v321
    %v323 = vpop.f32.mrb[0].mxu0
    %324 = vmatprep.mubr.bf16.mxu0 0
    %325 = vmatmul.mubr.bf16.gmra.mrb[0].mxu0 %v180
    %v326 = vpop.f32.mrb[0].mxu0
    %v327 = vadd.f32 %v125, %v326
    %v328 = vpop.f32.mrb[0].mxu0
    %v329 = vpop.f32.mrb[0].mxu0
    %v330 = vadd.f32 %v125, %v329
    %v331 = vpop.f32.mrb[0].mxu0
    %332 = vmatprep.mubr.bf16.mxu0 0
    %333 = vmatmul.mubr.bf16.gmra.mrb[0].mxu0 %v183
    %v334 = vpop.f32.mrb[0].mxu0
    %v335 = vadd.f32 %v125, %v334
    %v336 = vpop.f32.mrb[0].mxu0
    %v337 = vpop.f32.mrb[0].mxu0
    %v338 = vadd.f32 %v125, %v337
    %v339 = vpop.f32.mrb[0].mxu0
    %340 = vmatprep.mubr.bf16.mxu0 0
    %341 = vmatmul.mubr.bf16.gmra.mrb[0].mxu0 %v186
    %v342 = vpop.f32.mrb[0].mxu0
    %v343 = vadd.f32 %v125, %v342
    %v344 = vpop.f32.mrb[0].mxu0
    %v345 = vpop.f32.mrb[0].mxu0
    %v346 = vadd.f32 %v125, %v345
    %v347 = vpop.f32.mrb[0].mxu0
    %348 = vdwg.mxu0
    %v349 = vmax.f32 %v223, 0.0
    %v350 = vmax.f32 %v226, 0.0
    %v351 = vmax.f32 %v231, 0.0
    %v352 = vmax.f32 %v234, 0.0
    %v353 = vmax.f32 %v239, 0.0
    %v354 = vmax.f32 %v242, 0.0
    %v355 = vmax.f32 %v247, 0.0
    %v356 = vmax.f32 %v250, 0.0
    %v357 = vmax.f32 %v255, 0.0
    %v358 = vmax.f32 %v258, 0.0
    %v359 = vmax.f32 %v263, 0.0
    %v360 = vmax.f32 %v266, 0.0
    %v361 = vmax.f32 %v271, 0.0
    %v362 = vmax.f32 %v274, 0.0
    %v363 = vmax.f32 %v279, 0.0
    %v364 = vmax.f32 %v282, 0.0
    %v365 = vmax.f32 %v287, 0.0
    %v366 = vmax.f32 %v290, 0.0
    %v367 = vmax.f32 %v295, 0.0
    %v368 = vmax.f32 %v298, 0.0
    %v369 = vmax.f32 %v303, 0.0
    %v370 = vmax.f32 %v306, 0.0
    %v371 = vmax.f32 %v311, 0.0
    %v372 = vmax.f32 %v314, 0.0
    %v373 = vmax.f32 %v319, 0.0
    %v374 = vmax.f32 %v322, 0.0
    %v375 = vmax.f32 %v327, 0.0
    %v376 = vmax.f32 %v330, 0.0
    %v377 = vmax.f32 %v335, 0.0
    %v378 = vmax.f32 %v338, 0.0
    %v379 = vmax.f32 %v343, 0.0
    %v380 = vmax.f32 %v346, 0.0
    %v381 = vpack.c.bf16 %v350, %v349
    %v382 = vpack.c.bf16 %v352, %v351
    %v383 = vpack.c.bf16 %v354, %v353
    %v384 = vpack.c.bf16 %v356, %v355
    %v385 = vpack.c.bf16 %v358, %v357
    %v386 = vpack.c.bf16 %v360, %v359
    %v387 = vpack.c.bf16 %v362, %v361
    %v388 = vpack.c.bf16 %v364, %v363
    %v389 = vpack.c.bf16 %v366, %v365
    %v390 = vpack.c.bf16 %v368, %v367
    %v391 = vpack.c.bf16 %v370, %v369
    %v392 = vpack.c.bf16 %v372, %v371
    %v393 = vpack.c.bf16 %v374, %v373
    %v394 = vpack.c.bf16 %v376, %v375
    %v395 = vpack.c.bf16 %v378, %v377
    %v396 = vpack.c.bf16 %v380, %v379
    %v397 = vld [vmem:[%s3] sm:$0xff]
    %v398 = vld [vmem:[%s3 + $0x8] sm:$0xff]
    %v399 = vld [vmem:[%s3 + $0x10] sm:$0xff]
    %v400 = vld [vmem:[%s3 + $0x18] sm:$0xff]
    %v401 = vld [vmem:[%s3 + $0x20] sm:$0xff]
    %v402 = vld [vmem:[%s3 + $0x28] sm:$0xff]
    %v403 = vld [vmem:[%s3 + $0x30] sm:$0xff]
    %v404 = vld [vmem:[%s3 + $0x38] sm:$0xff]
    %v405 = vld [vmem:[%s3 + $0x40] sm:$0xff]
    %v406 = vld [vmem:[%s3 + $0x48] sm:$0xff]
    %v407 = vld [vmem:[%s3 + $0x50] sm:$0xff]
    %v408 = vld [vmem:[%s3 + $0x58] sm:$0xff]
    %v409 = vld [vmem:[%s3 + $0x60] sm:$0xff]
    %v410 = vld [vmem:[%s3 + $0x68] sm:$0xff]
    %v411 = vld [vmem:[%s3 + $0x70] sm:$0xff]
    %v412 = vld [vmem:[%s3 + $0x78] sm:$0xff]
    %v413 = vld [vmem:[%s4] sm:$0x3]
    %v415 = vlaneseq
    %v416 = vshrl.u32 %v415, 7
    %v417 = vsub.s32 0, %v416
    %v418 = vrot.slane %v413, %v417
    %v419 = vlaneseq
    %v420 = vshrl.u32 %v419, 7
    %v421 = vsub.s32 1, %v420
    %v422 = vrot.slane %v413, %v421
    %v441 = vunpack.c.l.b16 %v397
    %v442 = vunpack.c.h.b16 %v397
    %v443 = vunpack.c.l.b16 %v398
    %v444 = vunpack.c.h.b16 %v398
    %v445 = vunpack.c.l.b16 %v399
    %v446 = vunpack.c.h.b16 %v399
    %v447 = vunpack.c.l.b16 %v400
    %v448 = vunpack.c.h.b16 %v400
    %v449 = vunpack.c.l.b16 %v401
    %v450 = vunpack.c.h.b16 %v401
    %v451 = vunpack.c.l.b16 %v402
    %v452 = vunpack.c.h.b16 %v402
    %v453 = vunpack.c.l.b16 %v403
    %v454 = vunpack.c.h.b16 %v403
    %v455 = vunpack.c.l.b16 %v404
    %v456 = vunpack.c.h.b16 %v404
    %v457 = vunpack.c.l.b16 %v405
    %v458 = vunpack.c.h.b16 %v405
    %v459 = vunpack.c.l.b16 %v406
    %v460 = vunpack.c.h.b16 %v406
    %v461 = vunpack.c.l.b16 %v407
    %v462 = vunpack.c.h.b16 %v407
    %v463 = vunpack.c.l.b16 %v408
    %v464 = vunpack.c.h.b16 %v408
    %v465 = vunpack.c.l.b16 %v409
    %v466 = vunpack.c.h.b16 %v409
    %v467 = vunpack.c.l.b16 %v410
    %v468 = vunpack.c.h.b16 %v410
    %v469 = vunpack.c.l.b16 %v411
    %v470 = vunpack.c.h.b16 %v411
    %v471 = vunpack.c.l.b16 %v412
    %v472 = vunpack.c.h.b16 %v412
    %v473 = vpack.c.b16 %v443, %v441
    %v474 = vpack.c.b16 %v444, %v442
    %v475 = vpack.c.b16 %v447, %v445
    %v476 = vpack.c.b16 %v448, %v446
    %v477 = vpack.c.b16 %v451, %v449
    %v478 = vpack.c.b16 %v452, %v450
    %v479 = vpack.c.b16 %v455, %v453
    %v480 = vpack.c.b16 %v456, %v454
    %v481 = vpack.c.b16 %v459, %v457
    %v482 = vpack.c.b16 %v460, %v458
    %v483 = vpack.c.b16 %v463, %v461
    %v484 = vpack.c.b16 %v464, %v462
    %v485 = vpack.c.b16 %v467, %v465
    %v486 = vpack.c.b16 %v468, %v466
    %v487 = vpack.c.b16 %v471, %v469
    %v488 = vpack.c.b16 %v472, %v470
    %505 = vmatprep.subr.bf16.mxu0 %v474
    %506 = vmatpush1.bf16.msra.mxu0 %v473
    %507 = vmatprep.subr.bf16.mxu0 %v476
    %508 = vmatpush1.bf16.msra.mxu0 %v475
    %509 = vmatprep.subr.bf16.mxu0 %v478
    %510 = vmatpush1.bf16.msra.mxu0 %v477
    %511 = vmatprep.subr.bf16.mxu0 %v480
    %512 = vmatpush1.bf16.msra.mxu0 %v479
    %513 = vmatprep.subr.bf16.mxu0 %v482
    %514 = vmatpush1.bf16.msra.mxu0 %v481
    %515 = vmatprep.subr.bf16.mxu0 %v484
    %516 = vmatpush1.bf16.msra.mxu0 %v483
    %517 = vmatprep.subr.bf16.mxu0 %v486
    %518 = vmatpush1.bf16.msra.mxu0 %v485
    %519 = vmatprep.subr.bf16.mxu0 %v488
    %520 = vmatpush1.bf16.msra.mxu0 %v487
    %521 = vmatprep.subr.bf16.mxu0 0
    %522 = vmatpush1.bf16.msra.mxu0 0
    %523 = vmatprep.subr.bf16.mxu0 0
    %524 = vmatpush1.bf16.msra.mxu0 0
    %525 = vmatprep.subr.bf16.mxu0 0
    %526 = vmatpush1.bf16.msra.mxu0 0
    %527 = vmatprep.subr.bf16.mxu0 0
    %528 = vmatpush1.bf16.msra.mxu0 0
    %529 = vmatprep.subr.bf16.mxu0 0
    %530 = vmatpush1.bf16.msra.mxu0 0
    %531 = vmatprep.subr.bf16.mxu0 0
    %532 = vmatpush1.bf16.msra.mxu0 0
    %533 = vmatprep.subr.bf16.mxu0 0
    %534 = vmatpush1.bf16.msra.mxu0 0
    %535 = vmatprep.subr.bf16.mxu0 0
    %536 = vmatpush1.bf16.msra.mxu0 0
    %537 = vmatprep.mubr.bf16.mxu0 0
    %538 = vmatmul.mubr.bf16.gmra.mrb[0].mxu0 %v381
    %v539 = vpop.f32.mrb[0].mxu0
    %v540 = vadd.f32 %v418, %v539
    %v541 = vpop.f32.mrb[0].mxu0
    %v542 = vadd.f32 %v422, %v541
    %v543 = vpop.f32.mrb[0].mxu0
    %v544 = vadd.f32 %v418, %v543
    %v545 = vpop.f32.mrb[0].mxu0
    %v546 = vadd.f32 %v422, %v545
    %547 = vmatprep.mubr.bf16.mxu0 0
    %548 = vmatmul.mubr.bf16.gmra.mrb[0].mxu0 %v382
    %v549 = vpop.f32.mrb[0].mxu0
    %v550 = vadd.f32 %v418, %v549
    %v551 = vpop.f32.mrb[0].mxu0
    %v552 = vadd.f32 %v422, %v551
    %v553 = vpop.f32.mrb[0].mxu0
    %v554 = vadd.f32 %v418, %v553
    %v555 = vpop.f32.mrb[0].mxu0
    %v556 = vadd.f32 %v422, %v555
    %557 = vmatprep.mubr.bf16.mxu0 0
    %558 = vmatmul.mubr.bf16.gmra.mrb[0].mxu0 %v383
    %v559 = vpop.f32.mrb[0].mxu0
    %v560 = vadd.f32 %v418, %v559
    %v561 = vpop.f32.mrb[0].mxu0
    %v562 = vadd.f32 %v422, %v561
    %v563 = vpop.f32.mrb[0].mxu0
    %v564 = vadd.f32 %v418, %v563
    %v565 = vpop.f32.mrb[0].mxu0
    %v566 = vadd.f32 %v422, %v565
    %567 = vmatprep.mubr.bf16.mxu0 0
    %568 = vmatmul.mubr.bf16.gmra.mrb[0].mxu0 %v384
    %v569 = vpop.f32.mrb[0].mxu0
    %v570 = vadd.f32 %v418, %v569
    %v571 = vpop.f32.mrb[0].mxu0
    %v572 = vadd.f32 %v422, %v571
    %v573 = vpop.f32.mrb[0].mxu0
    %v574 = vadd.f32 %v418, %v573
    %v575 = vpop.f32.mrb[0].mxu0
    %v576 = vadd.f32 %v422, %v575
    %577 = vmatprep.mubr.bf16.mxu0 0
    %578 = vmatmul.mubr.bf16.gmra.mrb[0].mxu0 %v385
    %v579 = vpop.f32.mrb[0].mxu0
    %v580 = vadd.f32 %v418, %v579
    %v581 = vpop.f32.mrb[0].mxu0
    %v582 = vadd.f32 %v422, %v581
    %v583 = vpop.f32.mrb[0].mxu0
    %v584 = vadd.f32 %v418, %v583
    %v585 = vpop.f32.mrb[0].mxu0
    %v586 = vadd.f32 %v422, %v585
    %587 = vmatprep.mubr.bf16.mxu0 0
    %588 = vmatmul.mubr.bf16.gmra.mrb[0].mxu0 %v386
    %v589 = vpop.f32.mrb[0].mxu0
    %v590 = vadd.f32 %v418, %v589
    %v591 = vpop.f32.mrb[0].mxu0
    %v592 = vadd.f32 %v422, %v591
    %v593 = vpop.f32.mrb[0].mxu0
    %v594 = vadd.f32 %v418, %v593
    %v595 = vpop.f32.mrb[0].mxu0
    %v596 = vadd.f32 %v422, %v595
    %597 = vmatprep.mubr.bf16.mxu0 0
    %598 = vmatmul.mubr.bf16.gmra.mrb[0].mxu0 %v387
    %v599 = vpop.f32.mrb[0].mxu0
    %v600 = vadd.f32 %v418, %v599
    %v601 = vpop.f32.mrb[0].mxu0
    %v602 = vadd.f32 %v422, %v601
    %v603 = vpop.f32.mrb[0].mxu0
    %v604 = vadd.f32 %v418, %v603
    %v605 = vpop.f32.mrb[0].mxu0
    %v606 = vadd.f32 %v422, %v605
    %607 = vmatprep.mubr.bf16.mxu0 0
    %608 = vmatmul.mubr.bf16.gmra.mrb[0].mxu0 %v388
    %v609 = vpop.f32.mrb[0].mxu0
    %v610 = vadd.f32 %v418, %v609
    %v611 = vpop.f32.mrb[0].mxu0
    %v612 = vadd.f32 %v422, %v611
    %v613 = vpop.f32.mrb[0].mxu0
    %v614 = vadd.f32 %v418, %v613
    %v615 = vpop.f32.mrb[0].mxu0
    %v616 = vadd.f32 %v422, %v615
    %617 = vmatprep.mubr.bf16.mxu0 0
    %618 = vmatmul.mubr.bf16.gmra.mrb[0].mxu0 %v389
    %v619 = vpop.f32.mrb[0].mxu0
    %v620 = vadd.f32 %v418, %v619
    %v621 = vpop.f32.mrb[0].mxu0
    %v622 = vadd.f32 %v422, %v621
    %v623 = vpop.f32.mrb[0].mxu0
    %v624 = vadd.f32 %v418, %v623
    %v625 = vpop.f32.mrb[0].mxu0
    %v626 = vadd.f32 %v422, %v625
    %627 = vmatprep.mubr.bf16.mxu0 0
    %628 = vmatmul.mubr.bf16.gmra.mrb[0].mxu0 %v390
    %v629 = vpop.f32.mrb[0].mxu0
    %v630 = vadd.f32 %v418, %v629
    %v631 = vpop.f32.mrb[0].mxu0
    %v632 = vadd.f32 %v422, %v631
    %v633 = vpop.f32.mrb[0].mxu0
    %v634 = vadd.f32 %v418, %v633
    %v635 = vpop.f32.mrb[0].mxu0
    %v636 = vadd.f32 %v422, %v635
    %637 = vmatprep.mubr.bf16.mxu0 0
    %638 = vmatmul.mubr.bf16.gmra.mrb[0].mxu0 %v391
    %v639 = vpop.f32.mrb[0].mxu0
    %v640 = vadd.f32 %v418, %v639
    %v641 = vpop.f32.mrb[0].mxu0
    %v642 = vadd.f32 %v422, %v641
    %v643 = vpop.f32.mrb[0].mxu0
    %v644 = vadd.f32 %v418, %v643
    %v645 = vpop.f32.mrb[0].mxu0
    %v646 = vadd.f32 %v422, %v645
    %647 = vmatprep.mubr.bf16.mxu0 0
    %648 = vmatmul.mubr.bf16.gmra.mrb[0].mxu0 %v392
    %v649 = vpop.f32.mrb[0].mxu0
    %v650 = vadd.f32 %v418, %v649
    %v651 = vpop.f32.mrb[0].mxu0
    %v652 = vadd.f32 %v422, %v651
    %v653 = vpop.f32.mrb[0].mxu0
    %v654 = vadd.f32 %v418, %v653
    %v655 = vpop.f32.mrb[0].mxu0
    %v656 = vadd.f32 %v422, %v655
    %657 = vmatprep.mubr.bf16.mxu0 0
    %658 = vmatmul.mubr.bf16.gmra.mrb[0].mxu0 %v393
    %v659 = vpop.f32.mrb[0].mxu0
    %v660 = vadd.f32 %v418, %v659
    %v661 = vpop.f32.mrb[0].mxu0
    %v662 = vadd.f32 %v422, %v661
    %v663 = vpop.f32.mrb[0].mxu0
    %v664 = vadd.f32 %v418, %v663
    %v665 = vpop.f32.mrb[0].mxu0
    %v666 = vadd.f32 %v422, %v665
    %667 = vmatprep.mubr.bf16.mxu0 0
    %668 = vmatmul.mubr.bf16.gmra.mrb[0].mxu0 %v394
    %v669 = vpop.f32.mrb[0].mxu0
    %v670 = vadd.f32 %v418, %v669
    %v671 = vpop.f32.mrb[0].mxu0
    %v672 = vadd.f32 %v422, %v671
    %v673 = vpop.f32.mrb[0].mxu0
    %v674 = vadd.f32 %v418, %v673
    %v675 = vpop.f32.mrb[0].mxu0
    %v676 = vadd.f32 %v422, %v675
    %677 = vmatprep.mubr.bf16.mxu0 0
    %678 = vmatmul.mubr.bf16.gmra.mrb[0].mxu0 %v395
    %v679 = vpop.f32.mrb[0].mxu0
    %v680 = vadd.f32 %v418, %v679
    %v681 = vpop.f32.mrb[0].mxu0
    %v682 = vadd.f32 %v422, %v681
    %v683 = vpop.f32.mrb[0].mxu0
    %v684 = vadd.f32 %v418, %v683
    %v685 = vpop.f32.mrb[0].mxu0
    %v686 = vadd.f32 %v422, %v685
    %687 = vmatprep.mubr.bf16.mxu0 0
    %688 = vmatmul.mubr.bf16.gmra.mrb[0].mxu0 %v396
    %v689 = vpop.f32.mrb[0].mxu0
    %v690 = vadd.f32 %v418, %v689
    %v691 = vpop.f32.mrb[0].mxu0
    %v692 = vadd.f32 %v422, %v691
    %v693 = vpop.f32.mrb[0].mxu0
    %v694 = vadd.f32 %v418, %v693
    %v695 = vpop.f32.mrb[0].mxu0
    %v696 = vadd.f32 %v422, %v695
    %697 = vdwg.mxu0
    %v698 = vmax.f32 %v540, 0.0
    %v699 = vmax.f32 %v542, 0.0
    %v700 = vmax.f32 %v544, 0.0
    %v701 = vmax.f32 %v546, 0.0
    %v702 = vmax.f32 %v550, 0.0
    %v703 = vmax.f32 %v552, 0.0
    %v704 = vmax.f32 %v554, 0.0
    %v705 = vmax.f32 %v556, 0.0
    %v706 = vmax.f32 %v560, 0.0
    %v707 = vmax.f32 %v562, 0.0
    %v708 = vmax.f32 %v564, 0.0
    %v709 = vmax.f32 %v566, 0.0
    %v710 = vmax.f32 %v570, 0.0
    %v711 = vmax.f32 %v572, 0.0
    %v712 = vmax.f32 %v574, 0.0
    %v713 = vmax.f32 %v576, 0.0
    %v714 = vmax.f32 %v580, 0.0
    %v715 = vmax.f32 %v582, 0.0
    %v716 = vmax.f32 %v584, 0.0
    %v717 = vmax.f32 %v586, 0.0
    %v718 = vmax.f32 %v590, 0.0
    %v719 = vmax.f32 %v592, 0.0
    %v720 = vmax.f32 %v594, 0.0
    %v721 = vmax.f32 %v596, 0.0
    %v722 = vmax.f32 %v600, 0.0
    %v723 = vmax.f32 %v602, 0.0
    %v724 = vmax.f32 %v604, 0.0
    %v725 = vmax.f32 %v606, 0.0
    %v726 = vmax.f32 %v610, 0.0
    %v727 = vmax.f32 %v612, 0.0
    %v728 = vmax.f32 %v614, 0.0
    %v729 = vmax.f32 %v616, 0.0
    %v730 = vmax.f32 %v620, 0.0
    %v731 = vmax.f32 %v622, 0.0
    %v732 = vmax.f32 %v624, 0.0
    %v733 = vmax.f32 %v626, 0.0
    %v734 = vmax.f32 %v630, 0.0
    %v735 = vmax.f32 %v632, 0.0
    %v736 = vmax.f32 %v634, 0.0
    %v737 = vmax.f32 %v636, 0.0
    %v738 = vmax.f32 %v640, 0.0
    %v739 = vmax.f32 %v642, 0.0
    %v740 = vmax.f32 %v644, 0.0
    %v741 = vmax.f32 %v646, 0.0
    %v742 = vmax.f32 %v650, 0.0
    %v743 = vmax.f32 %v652, 0.0
    %v744 = vmax.f32 %v654, 0.0
    %v745 = vmax.f32 %v656, 0.0
    %v746 = vmax.f32 %v660, 0.0
    %v747 = vmax.f32 %v662, 0.0
    %v748 = vmax.f32 %v664, 0.0
    %v749 = vmax.f32 %v666, 0.0
    %v750 = vmax.f32 %v670, 0.0
    %v751 = vmax.f32 %v672, 0.0
    %v752 = vmax.f32 %v674, 0.0
    %v753 = vmax.f32 %v676, 0.0
    %v754 = vmax.f32 %v680, 0.0
    %v755 = vmax.f32 %v682, 0.0
    %v756 = vmax.f32 %v684, 0.0
    %v757 = vmax.f32 %v686, 0.0
    %v758 = vmax.f32 %v690, 0.0
    %v759 = vmax.f32 %v692, 0.0
    %v760 = vmax.f32 %v694, 0.0
    %v761 = vmax.f32 %v696, 0.0
    %v762 = vpack.c.bf16 %v700, %v698
    %v763 = vpack.c.bf16 %v701, %v699
    %v764 = vpack.c.bf16 %v704, %v702
    %v765 = vpack.c.bf16 %v705, %v703
    %v766 = vpack.c.bf16 %v708, %v706
    %v767 = vpack.c.bf16 %v709, %v707
    %v768 = vpack.c.bf16 %v712, %v710
    %v769 = vpack.c.bf16 %v713, %v711
    %v770 = vpack.c.bf16 %v716, %v714
    %v771 = vpack.c.bf16 %v717, %v715
    %v772 = vpack.c.bf16 %v720, %v718
    %v773 = vpack.c.bf16 %v721, %v719
    %v774 = vpack.c.bf16 %v724, %v722
    %v775 = vpack.c.bf16 %v725, %v723
    %v776 = vpack.c.bf16 %v728, %v726
    %v777 = vpack.c.bf16 %v729, %v727
    %v778 = vpack.c.bf16 %v732, %v730
    %v779 = vpack.c.bf16 %v733, %v731
    %v780 = vpack.c.bf16 %v736, %v734
    %v781 = vpack.c.bf16 %v737, %v735
    %v782 = vpack.c.bf16 %v740, %v738
    %v783 = vpack.c.bf16 %v741, %v739
    %v784 = vpack.c.bf16 %v744, %v742
    %v785 = vpack.c.bf16 %v745, %v743
    %v786 = vpack.c.bf16 %v748, %v746
    %v787 = vpack.c.bf16 %v749, %v747
    %v788 = vpack.c.bf16 %v752, %v750
    %v789 = vpack.c.bf16 %v753, %v751
    %v790 = vpack.c.bf16 %v756, %v754
    %v791 = vpack.c.bf16 %v757, %v755
    %v792 = vpack.c.bf16 %v760, %v758
    %v793 = vpack.c.bf16 %v761, %v759
    %v794 = vld [vmem:[%s5] sm:$0xf]
    %v795 = vld [vmem:[%s5 + $0x4] sm:$0xf]
    %v796 = vld [vmem:[%s5 + $0x8] sm:$0xf]
    %v797 = vld [vmem:[%s5 + $0xc] sm:$0xf]
    %v798 = vld [vmem:[%s5 + $0x10] sm:$0xf]
    %v799 = vld [vmem:[%s5 + $0x14] sm:$0xf]
    %v800 = vld [vmem:[%s5 + $0x18] sm:$0xf]
    %v801 = vld [vmem:[%s5 + $0x1c] sm:$0xf]
    %v802 = vld [vmem:[%s5 + $0x20] sm:$0xf]
    %v803 = vld [vmem:[%s5 + $0x24] sm:$0xf]
    %v804 = vld [vmem:[%s5 + $0x28] sm:$0xf]
    %v805 = vld [vmem:[%s5 + $0x2c] sm:$0xf]
    %v806 = vld [vmem:[%s5 + $0x30] sm:$0xf]
    %v807 = vld [vmem:[%s5 + $0x34] sm:$0xf]
    %v808 = vld [vmem:[%s5 + $0x38] sm:$0xf]
    %v809 = vld [vmem:[%s5 + $0x3c] sm:$0xf]
    %v810 = vld [vmem:[%s5 + $0x40] sm:$0xf]
    %v811 = vld [vmem:[%s5 + $0x44] sm:$0xf]
    %v812 = vld [vmem:[%s5 + $0x48] sm:$0xf]
    %v813 = vld [vmem:[%s5 + $0x4c] sm:$0xf]
    %v814 = vld [vmem:[%s5 + $0x50] sm:$0xf]
    %v815 = vld [vmem:[%s5 + $0x54] sm:$0xf]
    %v816 = vld [vmem:[%s5 + $0x58] sm:$0xf]
    %v817 = vld [vmem:[%s5 + $0x5c] sm:$0xf]
    %v818 = vld [vmem:[%s5 + $0x60] sm:$0xf]
    %v819 = vld [vmem:[%s5 + $0x64] sm:$0xf]
    %v820 = vld [vmem:[%s5 + $0x68] sm:$0xf]
    %v821 = vld [vmem:[%s5 + $0x6c] sm:$0xf]
    %v822 = vld [vmem:[%s5 + $0x70] sm:$0xf]
    %v823 = vld [vmem:[%s5 + $0x74] sm:$0xf]
    %v824 = vld [vmem:[%s5 + $0x78] sm:$0xf]
    %v825 = vld [vmem:[%s5 + $0x7c] sm:$0xf]
    %v826 = vld [vmem:[%s6] sm:$0x1]
    %v828 = vlaneseq
    %v829 = vshrl.u32 %v828, 7
    %v830 = vsub.s32 0, %v829
    %v831 = vrot.slane %v826, %v830
    %v865 = vunpack.c.l.b16 %v794
    %v866 = vunpack.c.l.b16 %v795
    %v867 = vunpack.c.l.b16 %v796
    %v868 = vunpack.c.l.b16 %v797
    %v869 = vunpack.c.l.b16 %v798
    %v870 = vunpack.c.l.b16 %v799
    %v871 = vunpack.c.l.b16 %v800
    %v872 = vunpack.c.l.b16 %v801
    %v873 = vunpack.c.l.b16 %v802
    %v874 = vunpack.c.l.b16 %v803
    %v875 = vunpack.c.l.b16 %v804
    %v876 = vunpack.c.l.b16 %v805
    %v877 = vunpack.c.l.b16 %v806
    %v878 = vunpack.c.l.b16 %v807
    %v879 = vunpack.c.l.b16 %v808
    %v880 = vunpack.c.l.b16 %v809
    %v881 = vunpack.c.l.b16 %v810
    %v882 = vunpack.c.l.b16 %v811
    %v883 = vunpack.c.l.b16 %v812
    %v884 = vunpack.c.l.b16 %v813
    %v885 = vunpack.c.l.b16 %v814
    %v886 = vunpack.c.l.b16 %v815
    %v887 = vunpack.c.l.b16 %v816
    %v888 = vunpack.c.l.b16 %v817
    %v889 = vunpack.c.l.b16 %v818
    %v890 = vunpack.c.l.b16 %v819
    %v891 = vunpack.c.l.b16 %v820
    %v892 = vunpack.c.l.b16 %v821
    %v893 = vunpack.c.l.b16 %v822
    %v894 = vunpack.c.l.b16 %v823
    %v895 = vunpack.c.l.b16 %v824
    %v896 = vunpack.c.l.b16 %v825
    %v897 = vpack.c.b16 %v866, %v865
    %v898 = vpack.c.b16 %v868, %v867
    %v899 = vpack.c.b16 %v870, %v869
    %v900 = vpack.c.b16 %v872, %v871
    %v901 = vpack.c.b16 %v874, %v873
    %v902 = vpack.c.b16 %v876, %v875
    %v903 = vpack.c.b16 %v878, %v877
    %v904 = vpack.c.b16 %v880, %v879
    %v905 = vpack.c.b16 %v882, %v881
    %v906 = vpack.c.b16 %v884, %v883
    %v907 = vpack.c.b16 %v886, %v885
    %v908 = vpack.c.b16 %v888, %v887
    %v909 = vpack.c.b16 %v890, %v889
    %v910 = vpack.c.b16 %v892, %v891
    %v911 = vpack.c.b16 %v894, %v893
    %v912 = vpack.c.b16 %v896, %v895
    %929 = vmatprep.subr.bf16.mxu0 0
    %930 = vmatpush1.bf16.msra.mxu0 %v897
    %931 = vmatprep.subr.bf16.mxu0 0
    %932 = vmatpush1.bf16.msra.mxu0 %v898
    %933 = vmatprep.subr.bf16.mxu0 0
    %934 = vmatpush1.bf16.msra.mxu0 %v899
    %935 = vmatprep.subr.bf16.mxu0 0
    %936 = vmatpush1.bf16.msra.mxu0 %v900
    %937 = vmatprep.subr.bf16.mxu0 0
    %938 = vmatpush1.bf16.msra.mxu0 %v901
    %939 = vmatprep.subr.bf16.mxu0 0
    %940 = vmatpush1.bf16.msra.mxu0 %v902
    %941 = vmatprep.subr.bf16.mxu0 0
    %942 = vmatpush1.bf16.msra.mxu0 %v903
    %943 = vmatprep.subr.bf16.mxu0 0
    %944 = vmatpush1.bf16.msra.mxu0 %v904
    %945 = vmatprep.subr.bf16.mxu0 0
    %946 = vmatpush1.bf16.msra.mxu0 %v905
    %947 = vmatprep.subr.bf16.mxu0 0
    %948 = vmatpush1.bf16.msra.mxu0 %v906
    %949 = vmatprep.subr.bf16.mxu0 0
    %950 = vmatpush1.bf16.msra.mxu0 %v907
    %951 = vmatprep.subr.bf16.mxu0 0
    %952 = vmatpush1.bf16.msra.mxu0 %v908
    %953 = vmatprep.subr.bf16.mxu0 0
    %954 = vmatpush1.bf16.msra.mxu0 %v909
    %955 = vmatprep.subr.bf16.mxu0 0
    %956 = vmatpush1.bf16.msra.mxu0 %v910
    %957 = vmatprep.subr.bf16.mxu0 0
    %958 = vmatpush1.bf16.msra.mxu0 %v911
    %959 = vmatprep.subr.bf16.mxu0 0
    %960 = vmatpush1.bf16.msra.mxu0 %v912
    %961 = vmatprep.mubr.bf16.mxu0 %v763
    %962 = vmatmul.mubr.bf16.gmra.mrb[0].mxu0 %v762
    %v963 = vpop.f32.mrb[0].mxu0
    %v964 = vadd.f32 %v831, %v963
    %v965 = vpop.f32.mrb[0].mxu0
    %v966 = vpop.f32.mrb[0].mxu0
    %v967 = vadd.f32 %v831, %v966
    %v968 = vpop.f32.mrb[0].mxu0
    %969 = vmatprep.mubr.bf16.mxu0 %v765
    %970 = vmatmul.mubr.bf16.gmra.mrb[0].mxu0 %v764
    %v971 = vpop.f32.mrb[0].mxu0
    %v972 = vadd.f32 %v831, %v971
    %v973 = vpop.f32.mrb[0].mxu0
    %v974 = vpop.f32.mrb[0].mxu0
    %v975 = vadd.f32 %v831, %v974
    %v976 = vpop.f32.mrb[0].mxu0
    %977 = vmatprep.mubr.bf16.mxu0 %v767
    %978 = vmatmul.mubr.bf16.gmra.mrb[0].mxu0 %v766
    %v979 = vpop.f32.mrb[0].mxu0
    %v980 = vadd.f32 %v831, %v979
    %v981 = vpop.f32.mrb[0].mxu0
    %v982 = vpop.f32.mrb[0].mxu0
    %v983 = vadd.f32 %v831, %v982
    %v984 = vpop.f32.mrb[0].mxu0
    %985 = vmatprep.mubr.bf16.mxu0 %v769
    %986 = vmatmul.mubr.bf16.gmra.mrb[0].mxu0 %v768
    %v987 = vpop.f32.mrb[0].mxu0
    %v988 = vadd.f32 %v831, %v987
    %v989 = vpop.f32.mrb[0].mxu0
    %v990 = vpop.f32.mrb[0].mxu0
    %v991 = vadd.f32 %v831, %v990
    %v992 = vpop.f32.mrb[0].mxu0
    %993 = vmatprep.mubr.bf16.mxu0 %v771
    %994 = vmatmul.mubr.bf16.gmra.mrb[0].mxu0 %v770
    %v995 = vpop.f32.mrb[0].mxu0
    %v996 = vadd.f32 %v831, %v995
    %v997 = vpop.f32.mrb[0].mxu0
    %v998 = vpop.f32.mrb[0].mxu0
    %v999 = vadd.f32 %v831, %v998
    %v1000 = vpop.f32.mrb[0].mxu0
    %1001 = vmatprep.mubr.bf16.mxu0 %v773
    %1002 = vmatmul.mubr.bf16.gmra.mrb[0].mxu0 %v772
    %v1003 = vpop.f32.mrb[0].mxu0
    %v1004 = vadd.f32 %v831, %v1003
    %v1005 = vpop.f32.mrb[0].mxu0
    %v1006 = vpop.f32.mrb[0].mxu0
    %v1007 = vadd.f32 %v831, %v1006
    %v1008 = vpop.f32.mrb[0].mxu0
    %1009 = vmatprep.mubr.bf16.mxu0 %v775
    %1010 = vmatmul.mubr.bf16.gmra.mrb[0].mxu0 %v774
    %v1011 = vpop.f32.mrb[0].mxu0
    %v1012 = vadd.f32 %v831, %v1011
    %v1013 = vpop.f32.mrb[0].mxu0
    %v1014 = vpop.f32.mrb[0].mxu0
    %v1015 = vadd.f32 %v831, %v1014
    %v1016 = vpop.f32.mrb[0].mxu0
    %1017 = vmatprep.mubr.bf16.mxu0 %v777
    %1018 = vmatmul.mubr.bf16.gmra.mrb[0].mxu0 %v776
    %v1019 = vpop.f32.mrb[0].mxu0
    %v1020 = vadd.f32 %v831, %v1019
    %v1021 = vpop.f32.mrb[0].mxu0
    %v1022 = vpop.f32.mrb[0].mxu0
    %v1023 = vadd.f32 %v831, %v1022
    %v1024 = vpop.f32.mrb[0].mxu0
    %1025 = vmatprep.mubr.bf16.mxu0 %v779
    %1026 = vmatmul.mubr.bf16.gmra.mrb[0].mxu0 %v778
    %v1027 = vpop.f32.mrb[0].mxu0
    %v1028 = vadd.f32 %v831, %v1027
    %v1029 = vpop.f32.mrb[0].mxu0
    %v1030 = vpop.f32.mrb[0].mxu0
    %v1031 = vadd.f32 %v831, %v1030
    %v1032 = vpop.f32.mrb[0].mxu0
    %1033 = vmatprep.mubr.bf16.mxu0 %v781
    %1034 = vmatmul.mubr.bf16.gmra.mrb[0].mxu0 %v780
    %v1035 = vpop.f32.mrb[0].mxu0
    %v1036 = vadd.f32 %v831, %v1035
    %v1037 = vpop.f32.mrb[0].mxu0
    %v1038 = vpop.f32.mrb[0].mxu0
    %v1039 = vadd.f32 %v831, %v1038
    %v1040 = vpop.f32.mrb[0].mxu0
    %1041 = vmatprep.mubr.bf16.mxu0 %v783
    %1042 = vmatmul.mubr.bf16.gmra.mrb[0].mxu0 %v782
    %v1043 = vpop.f32.mrb[0].mxu0
    %v1044 = vadd.f32 %v831, %v1043
    %v1045 = vpop.f32.mrb[0].mxu0
    %v1046 = vpop.f32.mrb[0].mxu0
    %v1047 = vadd.f32 %v831, %v1046
    %v1048 = vpop.f32.mrb[0].mxu0
    %1049 = vmatprep.mubr.bf16.mxu0 %v785
    %1050 = vmatmul.mubr.bf16.gmra.mrb[0].mxu0 %v784
    %v1051 = vpop.f32.mrb[0].mxu0
    %v1052 = vadd.f32 %v831, %v1051
    %v1053 = vpop.f32.mrb[0].mxu0
    %v1054 = vpop.f32.mrb[0].mxu0
    %v1055 = vadd.f32 %v831, %v1054
    %v1056 = vpop.f32.mrb[0].mxu0
    %1057 = vmatprep.mubr.bf16.mxu0 %v787
    %1058 = vmatmul.mubr.bf16.gmra.mrb[0].mxu0 %v786
    %v1059 = vpop.f32.mrb[0].mxu0
    %v1060 = vadd.f32 %v831, %v1059
    %v1061 = vpop.f32.mrb[0].mxu0
    %v1062 = vpop.f32.mrb[0].mxu0
    %v1063 = vadd.f32 %v831, %v1062
    %v1064 = vpop.f32.mrb[0].mxu0
    %1065 = vmatprep.mubr.bf16.mxu0 %v789
    %1066 = vmatmul.mubr.bf16.gmra.mrb[0].mxu0 %v788
    %v1067 = vpop.f32.mrb[0].mxu0
    %v1068 = vadd.f32 %v831, %v1067
    %v1069 = vpop.f32.mrb[0].mxu0
    %v1070 = vpop.f32.mrb[0].mxu0
    %v1071 = vadd.f32 %v831, %v1070
    %v1072 = vpop.f32.mrb[0].mxu0
    %1073 = vmatprep.mubr.bf16.mxu0 %v791
    %1074 = vmatmul.mubr.bf16.gmra.mrb[0].mxu0 %v790
    %v1075 = vpop.f32.mrb[0].mxu0
    %v1076 = vadd.f32 %v831, %v1075
    %v1077 = vpop.f32.mrb[0].mxu0
    %v1078 = vpop.f32.mrb[0].mxu0
    %v1079 = vadd.f32 %v831, %v1078
    %v1080 = vpop.f32.mrb[0].mxu0
    %1081 = vmatprep.mubr.bf16.mxu0 %v793
    %1082 = vmatmul.mubr.bf16.gmra.mrb[0].mxu0 %v792
    %v1083 = vpop.f32.mrb[0].mxu0
    %v1084 = vadd.f32 %v831, %v1083
    %v1085 = vpop.f32.mrb[0].mxu0
    %v1086 = vpop.f32.mrb[0].mxu0
    %v1087 = vadd.f32 %v831, %v1086
    %v1088 = vpop.f32.mrb[0].mxu0
    %1089 = vdwg.mxu0
    %v1090 = vmax.f32 %v964, 0.0
    %v1091 = vmax.f32 %v967, 0.0
    %v1092 = vmax.f32 %v972, 0.0
    %v1093 = vmax.f32 %v975, 0.0
    %v1094 = vmax.f32 %v980, 0.0
    %v1095 = vmax.f32 %v983, 0.0
    %v1096 = vmax.f32 %v988, 0.0
    %v1097 = vmax.f32 %v991, 0.0
    %v1098 = vmax.f32 %v996, 0.0
    %v1099 = vmax.f32 %v999, 0.0
    %v1100 = vmax.f32 %v1004, 0.0
    %v1101 = vmax.f32 %v1007, 0.0
    %v1102 = vmax.f32 %v1012, 0.0
    %v1103 = vmax.f32 %v1015, 0.0
    %v1104 = vmax.f32 %v1020, 0.0
    %v1105 = vmax.f32 %v1023, 0.0
    %v1106 = vmax.f32 %v1028, 0.0
    %v1107 = vmax.f32 %v1031, 0.0
    %v1108 = vmax.f32 %v1036, 0.0
    %v1109 = vmax.f32 %v1039, 0.0
    %v1110 = vmax.f32 %v1044, 0.0
    %v1111 = vmax.f32 %v1047, 0.0
    %v1112 = vmax.f32 %v1052, 0.0
    %v1113 = vmax.f32 %v1055, 0.0
    %v1114 = vmax.f32 %v1060, 0.0
    %v1115 = vmax.f32 %v1063, 0.0
    %v1116 = vmax.f32 %v1068, 0.0
    %v1117 = vmax.f32 %v1071, 0.0
    %v1118 = vmax.f32 %v1076, 0.0
    %v1119 = vmax.f32 %v1079, 0.0
    %v1120 = vmax.f32 %v1084, 0.0
    %v1121 = vmax.f32 %v1087, 0.0
    %v1122 = vpack.c.bf16 %v1091, %v1090
    %v1123 = vpack.c.bf16 %v1093, %v1092
    %v1124 = vpack.c.bf16 %v1095, %v1094
    %v1125 = vpack.c.bf16 %v1097, %v1096
    %v1126 = vpack.c.bf16 %v1099, %v1098
    %v1127 = vpack.c.bf16 %v1101, %v1100
    %v1128 = vpack.c.bf16 %v1103, %v1102
    %v1129 = vpack.c.bf16 %v1105, %v1104
    %v1130 = vpack.c.bf16 %v1107, %v1106
    %v1131 = vpack.c.bf16 %v1109, %v1108
    %v1132 = vpack.c.bf16 %v1111, %v1110
    %v1133 = vpack.c.bf16 %v1113, %v1112
    %v1134 = vpack.c.bf16 %v1115, %v1114
    %v1135 = vpack.c.bf16 %v1117, %v1116
    %v1136 = vpack.c.bf16 %v1119, %v1118
    %v1137 = vpack.c.bf16 %v1121, %v1120
    %v1138 = vld [vmem:[%s7] sm:$0xf]
    %v1139 = vld [vmem:[%s7 + $0x4] sm:$0xf]
    %v1140 = vld [vmem:[%s7 + $0x8] sm:$0xf]
    %v1141 = vld [vmem:[%s7 + $0xc] sm:$0xf]
    %v1142 = vld [vmem:[%s7 + $0x10] sm:$0xf]
    %v1143 = vld [vmem:[%s7 + $0x14] sm:$0xf]
    %v1144 = vld [vmem:[%s7 + $0x18] sm:$0xf]
    %v1145 = vld [vmem:[%s7 + $0x1c] sm:$0xf]
    %v1146 = vld [vmem:[%s7 + $0x20] sm:$0xf]
    %v1147 = vld [vmem:[%s7 + $0x24] sm:$0xf]
    %v1148 = vld [vmem:[%s7 + $0x28] sm:$0xf]
    %v1149 = vld [vmem:[%s7 + $0x2c] sm:$0xf]
    %v1150 = vld [vmem:[%s7 + $0x30] sm:$0xf]
    %v1151 = vld [vmem:[%s7 + $0x34] sm:$0xf]
    %v1152 = vld [vmem:[%s7 + $0x38] sm:$0xf]
    %v1153 = vld [vmem:[%s7 + $0x3c] sm:$0xf]
    %v1154 = vld [vmem:[%s8] sm:$0x1]
    %v1156 = vlaneseq
    %v1157 = vshrl.u32 %v1156, 7
    %v1158 = vsub.s32 0, %v1157
    %v1159 = vrot.slane %v1154, %v1158
    %v1177 = vunpack.c.l.b16 %v1138
    %v1178 = vunpack.c.l.b16 %v1139
    %v1179 = vunpack.c.l.b16 %v1140
    %v1180 = vunpack.c.l.b16 %v1141
    %v1181 = vunpack.c.l.b16 %v1142
    %v1182 = vunpack.c.l.b16 %v1143
    %v1183 = vunpack.c.l.b16 %v1144
    %v1184 = vunpack.c.l.b16 %v1145
    %v1185 = vunpack.c.l.b16 %v1146
    %v1186 = vunpack.c.l.b16 %v1147
    %v1187 = vunpack.c.l.b16 %v1148
    %v1188 = vunpack.c.l.b16 %v1149
    %v1189 = vunpack.c.l.b16 %v1150
    %v1190 = vunpack.c.l.b16 %v1151
    %v1191 = vunpack.c.l.b16 %v1152
    %v1192 = vunpack.c.l.b16 %v1153
    %v1193 = vpack.c.b16 %v1178, %v1177
    %v1194 = vpack.c.b16 %v1180, %v1179
    %v1195 = vpack.c.b16 %v1182, %v1181
    %v1196 = vpack.c.b16 %v1184, %v1183
    %v1197 = vpack.c.b16 %v1186, %v1185
    %v1198 = vpack.c.b16 %v1188, %v1187
    %v1199 = vpack.c.b16 %v1190, %v1189
    %v1200 = vpack.c.b16 %v1192, %v1191
    %1209 = vmatprep.subr.bf16.mxu0 0
    %1210 = vmatpush1.bf16.msra.mxu0 %v1193
    %1211 = vmatprep.subr.bf16.mxu0 0
    %1212 = vmatpush1.bf16.msra.mxu0 %v1194
    %1213 = vmatprep.subr.bf16.mxu0 0
    %1214 = vmatpush1.bf16.msra.mxu0 %v1195
    %1215 = vmatprep.subr.bf16.mxu0 0
    %1216 = vmatpush1.bf16.msra.mxu0 %v1196
    %1217 = vmatprep.subr.bf16.mxu0 0
    %1218 = vmatpush1.bf16.msra.mxu0 %v1197
    %1219 = vmatprep.subr.bf16.mxu0 0
    %1220 = vmatpush1.bf16.msra.mxu0 %v1198
    %1221 = vmatprep.subr.bf16.mxu0 0
    %1222 = vmatpush1.bf16.msra.mxu0 %v1199
    %1223 = vmatprep.subr.bf16.mxu0 0
    %1224 = vmatpush1.bf16.msra.mxu0 %v1200
    %1225 = vmatprep.subr.bf16.mxu0 0
    %1226 = vmatpush1.bf16.msra.mxu0 0
    %1227 = vmatprep.subr.bf16.mxu0 0
    %1228 = vmatpush1.bf16.msra.mxu0 0
    %1229 = vmatprep.subr.bf16.mxu0 0
    %1230 = vmatpush1.bf16.msra.mxu0 0
    %1231 = vmatprep.subr.bf16.mxu0 0
    %1232 = vmatpush1.bf16.msra.mxu0 0
    %1233 = vmatprep.subr.bf16.mxu0 0
    %1234 = vmatpush1.bf16.msra.mxu0 0
    %1235 = vmatprep.subr.bf16.mxu0 0
    %1236 = vmatpush1.bf16.msra.mxu0 0
    %1237 = vmatprep.subr.bf16.mxu0 0
    %1238 = vmatpush1.bf16.msra.mxu0 0
    %1239 = vmatprep.subr.bf16.mxu0 0
    %1240 = vmatpush1.bf16.msra.mxu0 0
    %1241 = vmatprep.mubr.bf16.mxu0 0
    %1242 = vmatmul.mubr.bf16.gmra.mrb[0].mxu0 %v1122
    %v1243 = vpop.f32.mrb[0].mxu0
    %v1244 = vadd.f32 %v1159, %v1243
    %v1245 = vpop.f32.mrb[0].mxu0
    %v1246 = vpop.f32.mrb[0].mxu0
    %v1247 = vadd.f32 %v1159, %v1246
    %v1248 = vpop.f32.mrb[0].mxu0
    %1249 = vmatprep.mubr.bf16.mxu0 0
    %1250 = vmatmul.mubr.bf16.gmra.mrb[0].mxu0 %v1123
    %v1251 = vpop.f32.mrb[0].mxu0
    %v1252 = vadd.f32 %v1159, %v1251
    %v1253 = vpop.f32.mrb[0].mxu0
    %v1254 = vpop.f32.mrb[0].mxu0
    %v1255 = vadd.f32 %v1159, %v1254
    %v1256 = vpop.f32.mrb[0].mxu0
    %1257 = vmatprep.mubr.bf16.mxu0 0
    %1258 = vmatmul.mubr.bf16.gmra.mrb[0].mxu0 %v1124
    %v1259 = vpop.f32.mrb[0].mxu0
    %v1260 = vadd.f32 %v1159, %v1259
    %v1261 = vpop.f32.mrb[0].mxu0
    %v1262 = vpop.f32.mrb[0].mxu0
    %v1263 = vadd.f32 %v1159, %v1262
    %v1264 = vpop.f32.mrb[0].mxu0
    %1265 = vmatprep.mubr.bf16.mxu0 0
    %1266 = vmatmul.mubr.bf16.gmra.mrb[0].mxu0 %v1125
    %v1267 = vpop.f32.mrb[0].mxu0
    %v1268 = vadd.f32 %v1159, %v1267
    %v1269 = vpop.f32.mrb[0].mxu0
    %v1270 = vpop.f32.mrb[0].mxu0
    %v1271 = vadd.f32 %v1159, %v1270
    %v1272 = vpop.f32.mrb[0].mxu0
    %1273 = vmatprep.mubr.bf16.mxu0 0
    %1274 = vmatmul.mubr.bf16.gmra.mrb[0].mxu0 %v1126
    %v1275 = vpop.f32.mrb[0].mxu0
    %v1276 = vadd.f32 %v1159, %v1275
    %v1277 = vpop.f32.mrb[0].mxu0
    %v1278 = vpop.f32.mrb[0].mxu0
    %v1279 = vadd.f32 %v1159, %v1278
    %v1280 = vpop.f32.mrb[0].mxu0
    %1281 = vmatprep.mubr.bf16.mxu0 0
    %1282 = vmatmul.mubr.bf16.gmra.mrb[0].mxu0 %v1127
    %v1283 = vpop.f32.mrb[0].mxu0
    %v1284 = vadd.f32 %v1159, %v1283
    %v1285 = vpop.f32.mrb[0].mxu0
    %v1286 = vpop.f32.mrb[0].mxu0
    %v1287 = vadd.f32 %v1159, %v1286
    %v1288 = vpop.f32.mrb[0].mxu0
    %1289 = vmatprep.mubr.bf16.mxu0 0
    %1290 = vmatmul.mubr.bf16.gmra.mrb[0].mxu0 %v1128
    %v1291 = vpop.f32.mrb[0].mxu0
    %v1292 = vadd.f32 %v1159, %v1291
    %v1293 = vpop.f32.mrb[0].mxu0
    %v1294 = vpop.f32.mrb[0].mxu0
    %v1295 = vadd.f32 %v1159, %v1294
    %v1296 = vpop.f32.mrb[0].mxu0
    %1297 = vmatprep.mubr.bf16.mxu0 0
    %1298 = vmatmul.mubr.bf16.gmra.mrb[0].mxu0 %v1129
    %v1299 = vpop.f32.mrb[0].mxu0
    %v1300 = vadd.f32 %v1159, %v1299
    %v1301 = vpop.f32.mrb[0].mxu0
    %v1302 = vpop.f32.mrb[0].mxu0
    %v1303 = vadd.f32 %v1159, %v1302
    %v1304 = vpop.f32.mrb[0].mxu0
    %1305 = vmatprep.mubr.bf16.mxu0 0
    %1306 = vmatmul.mubr.bf16.gmra.mrb[0].mxu0 %v1130
    %v1307 = vpop.f32.mrb[0].mxu0
    %v1308 = vadd.f32 %v1159, %v1307
    %v1309 = vpop.f32.mrb[0].mxu0
    %v1310 = vpop.f32.mrb[0].mxu0
    %v1311 = vadd.f32 %v1159, %v1310
    %v1312 = vpop.f32.mrb[0].mxu0
    %1313 = vmatprep.mubr.bf16.mxu0 0
    %1314 = vmatmul.mubr.bf16.gmra.mrb[0].mxu0 %v1131
    %v1315 = vpop.f32.mrb[0].mxu0
    %v1316 = vadd.f32 %v1159, %v1315
    %v1317 = vpop.f32.mrb[0].mxu0
    %v1318 = vpop.f32.mrb[0].mxu0
    %v1319 = vadd.f32 %v1159, %v1318
    %v1320 = vpop.f32.mrb[0].mxu0
    %1321 = vmatprep.mubr.bf16.mxu0 0
    %1322 = vmatmul.mubr.bf16.gmra.mrb[0].mxu0 %v1132
    %v1323 = vpop.f32.mrb[0].mxu0
    %v1324 = vadd.f32 %v1159, %v1323
    %v1325 = vpop.f32.mrb[0].mxu0
    %v1326 = vpop.f32.mrb[0].mxu0
    %v1327 = vadd.f32 %v1159, %v1326
    %v1328 = vpop.f32.mrb[0].mxu0
    %1329 = vmatprep.mubr.bf16.mxu0 0
    %1330 = vmatmul.mubr.bf16.gmra.mrb[0].mxu0 %v1133
    %v1331 = vpop.f32.mrb[0].mxu0
    %v1332 = vadd.f32 %v1159, %v1331
    %v1333 = vpop.f32.mrb[0].mxu0
    %v1334 = vpop.f32.mrb[0].mxu0
    %v1335 = vadd.f32 %v1159, %v1334
    %v1336 = vpop.f32.mrb[0].mxu0
    %1337 = vmatprep.mubr.bf16.mxu0 0
    %1338 = vmatmul.mubr.bf16.gmra.mrb[0].mxu0 %v1134
    %v1339 = vpop.f32.mrb[0].mxu0
    %v1340 = vadd.f32 %v1159, %v1339
    %v1341 = vpop.f32.mrb[0].mxu0
    %v1342 = vpop.f32.mrb[0].mxu0
    %v1343 = vadd.f32 %v1159, %v1342
    %v1344 = vpop.f32.mrb[0].mxu0
    %1345 = vmatprep.mubr.bf16.mxu0 0
    %1346 = vmatmul.mubr.bf16.gmra.mrb[0].mxu0 %v1135
    %v1347 = vpop.f32.mrb[0].mxu0
    %v1348 = vadd.f32 %v1159, %v1347
    %v1349 = vpop.f32.mrb[0].mxu0
    %v1350 = vpop.f32.mrb[0].mxu0
    %v1351 = vadd.f32 %v1159, %v1350
    %v1352 = vpop.f32.mrb[0].mxu0
    %1353 = vmatprep.mubr.bf16.mxu0 0
    %1354 = vmatmul.mubr.bf16.gmra.mrb[0].mxu0 %v1136
    %v1355 = vpop.f32.mrb[0].mxu0
    %v1356 = vadd.f32 %v1159, %v1355
    %v1357 = vpop.f32.mrb[0].mxu0
    %v1358 = vpop.f32.mrb[0].mxu0
    %v1359 = vadd.f32 %v1159, %v1358
    %v1360 = vpop.f32.mrb[0].mxu0
    %1361 = vmatprep.mubr.bf16.mxu0 0
    %1362 = vmatmul.mubr.bf16.gmra.mrb[0].mxu0 %v1137
    %v1363 = vpop.f32.mrb[0].mxu0
    %v1364 = vadd.f32 %v1159, %v1363
    %v1365 = vpop.f32.mrb[0].mxu0
    %v1366 = vpop.f32.mrb[0].mxu0
    %v1367 = vadd.f32 %v1159, %v1366
    %v1368 = vpop.f32.mrb[0].mxu0
    %1369 = vdwg.mxu0
    %v1370 = vmax.f32 %v1244, 0.0
    %v1371 = vmax.f32 %v1247, 0.0
    %v1372 = vmax.f32 %v1252, 0.0
    %v1373 = vmax.f32 %v1255, 0.0
    %v1374 = vmax.f32 %v1260, 0.0
    %v1375 = vmax.f32 %v1263, 0.0
    %v1376 = vmax.f32 %v1268, 0.0
    %v1377 = vmax.f32 %v1271, 0.0
    %v1378 = vmax.f32 %v1276, 0.0
    %v1379 = vmax.f32 %v1279, 0.0
    %v1380 = vmax.f32 %v1284, 0.0
    %v1381 = vmax.f32 %v1287, 0.0
    %v1382 = vmax.f32 %v1292, 0.0
    %v1383 = vmax.f32 %v1295, 0.0
    %v1384 = vmax.f32 %v1300, 0.0
    %v1385 = vmax.f32 %v1303, 0.0
    %v1386 = vmax.f32 %v1308, 0.0
    %v1387 = vmax.f32 %v1311, 0.0
    %v1388 = vmax.f32 %v1316, 0.0
    %v1389 = vmax.f32 %v1319, 0.0
    %v1390 = vmax.f32 %v1324, 0.0
    %v1391 = vmax.f32 %v1327, 0.0
    %v1392 = vmax.f32 %v1332, 0.0
    %v1393 = vmax.f32 %v1335, 0.0
    %v1394 = vmax.f32 %v1340, 0.0
    %v1395 = vmax.f32 %v1343, 0.0
    %v1396 = vmax.f32 %v1348, 0.0
    %v1397 = vmax.f32 %v1351, 0.0
    %v1398 = vmax.f32 %v1356, 0.0
    %v1399 = vmax.f32 %v1359, 0.0
    %v1400 = vmax.f32 %v1364, 0.0
    %v1401 = vmax.f32 %v1367, 0.0
    %v1402 = vpack.c.bf16 %v1371, %v1370
    %v1403 = vpack.c.bf16 %v1373, %v1372
    %v1404 = vpack.c.bf16 %v1375, %v1374
    %v1405 = vpack.c.bf16 %v1377, %v1376
    %v1406 = vpack.c.bf16 %v1379, %v1378
    %v1407 = vpack.c.bf16 %v1381, %v1380
    %v1408 = vpack.c.bf16 %v1383, %v1382
    %v1409 = vpack.c.bf16 %v1385, %v1384
    %v1410 = vpack.c.bf16 %v1387, %v1386
    %v1411 = vpack.c.bf16 %v1389, %v1388
    %v1412 = vpack.c.bf16 %v1391, %v1390
    %v1413 = vpack.c.bf16 %v1393, %v1392
    %v1414 = vpack.c.bf16 %v1395, %v1394
    %v1415 = vpack.c.bf16 %v1397, %v1396
    %v1416 = vpack.c.bf16 %v1399, %v1398
    %v1417 = vpack.c.bf16 %v1401, %v1400
    %v1418 = vld [vmem:[#allocation5] sm:$0xf]
    %v1419 = vld [vmem:[#allocation5 + $0x4] sm:$0xf]
    %v1420 = vld [vmem:[#allocation5 + $0x8] sm:$0xf]
    %v1421 = vld [vmem:[#allocation5 + $0xc] sm:$0xf]
    %v1422 = vld [vmem:[#allocation5 + $0x10] sm:$0xf]
    %v1423 = vld [vmem:[#allocation5 + $0x14] sm:$0xf]
    %v1424 = vld [vmem:[#allocation5 + $0x18] sm:$0xf]
    %v1425 = vld [vmem:[#allocation5 + $0x1c] sm:$0xf]
    %v1426 = vld [vmem:[#allocation5 + $0x20] sm:$0xf]
    %v1427 = vld [vmem:[#allocation5 + $0x24] sm:$0xf]
    %v1428 = vld [vmem:[#allocation5 + $0x28] sm:$0xf]
    %v1429 = vld [vmem:[#allocation5 + $0x2c] sm:$0xf]
    %v1430 = vld [vmem:[#allocation5 + $0x30] sm:$0xf]
    %v1431 = vld [vmem:[#allocation5 + $0x34] sm:$0xf]
    %v1432 = vld [vmem:[#allocation5 + $0x38] sm:$0xf]
    %v1433 = vld [vmem:[#allocation5 + $0x3c] sm:$0xf]
    %v1434 = vld [vmem:[%s10] sm:$0x1]
    %v1436 = vlaneseq
    %v1437 = vshrl.u32 %v1436, 7
    %v1438 = vsub.s32 0, %v1437
    %v1439 = vrot.slane %v1434, %v1438
    %v1457 = vunpack.c.l.b16 %v1418
    %v1458 = vunpack.c.l.b16 %v1419
    %v1459 = vunpack.c.l.b16 %v1420
    %v1460 = vunpack.c.l.b16 %v1421
    %v1461 = vunpack.c.l.b16 %v1422
    %v1462 = vunpack.c.l.b16 %v1423
    %v1463 = vunpack.c.l.b16 %v1424
    %v1464 = vunpack.c.l.b16 %v1425
    %v1465 = vunpack.c.l.b16 %v1426
    %v1466 = vunpack.c.l.b16 %v1427
    %v1467 = vunpack.c.l.b16 %v1428
    %v1468 = vunpack.c.l.b16 %v1429
    %v1469 = vunpack.c.l.b16 %v1430
    %v1470 = vunpack.c.l.b16 %v1431
    %v1471 = vunpack.c.l.b16 %v1432
    %v1472 = vunpack.c.l.b16 %v1433
    %v1473 = vpack.c.b16 %v1458, %v1457
    %v1474 = vpack.c.b16 %v1460, %v1459
    %v1475 = vpack.c.b16 %v1462, %v1461
    %v1476 = vpack.c.b16 %v1464, %v1463
    %v1477 = vpack.c.b16 %v1466, %v1465
    %v1478 = vpack.c.b16 %v1468, %v1467
    %v1479 = vpack.c.b16 %v1470, %v1469
    %v1480 = vpack.c.b16 %v1472, %v1471
    %1489 = vmatprep.subr.bf16.mxu0 0
    %1490 = vmatpush1.bf16.msra.mxu0 %v1473
    %1491 = vmatprep.subr.bf16.mxu0 0
    %1492 = vmatpush1.bf16.msra.mxu0 %v1474
    %1493 = vmatprep.subr.bf16.mxu0 0
    %1494 = vmatpush1.bf16.msra.mxu0 %v1475
    %1495 = vmatprep.subr.bf16.mxu0 0
    %1496 = vmatpush1.bf16.msra.mxu0 %v1476
    %1497 = vmatprep.subr.bf16.mxu0 0
    %1498 = vmatpush1.bf16.msra.mxu0 %v1477
    %1499 = vmatprep.subr.bf16.mxu0 0
    %1500 = vmatpush1.bf16.msra.mxu0 %v1478
    %1501 = vmatprep.subr.bf16.mxu0 0
    %1502 = vmatpush1.bf16.msra.mxu0 %v1479
    %1503 = vmatprep.subr.bf16.mxu0 0
    %1504 = vmatpush1.bf16.msra.mxu0 %v1480
    %1505 = vmatprep.subr.bf16.mxu0 0
    %1506 = vmatpush1.bf16.msra.mxu0 0
    %1507 = vmatprep.subr.bf16.mxu0 0
    %1508 = vmatpush1.bf16.msra.mxu0 0
    %1509 = vmatprep.subr.bf16.mxu0 0
    %1510 = vmatpush1.bf16.msra.mxu0 0
    %1511 = vmatprep.subr.bf16.mxu0 0
    %1512 = vmatpush1.bf16.msra.mxu0 0
    %1513 = vmatprep.subr.bf16.mxu0 0
    %1514 = vmatpush1.bf16.msra.mxu0 0
    %1515 = vmatprep.subr.bf16.mxu0 0
    %1516 = vmatpush1.bf16.msra.mxu0 0
    %1517 = vmatprep.subr.bf16.mxu0 0
    %1518 = vmatpush1.bf16.msra.mxu0 0
    %1519 = vmatprep.subr.bf16.mxu0 0
    %1520 = vmatpush1.bf16.msra.mxu0 0
    %1521 = vmatprep.mubr.bf16.mxu0 0
    %1522 = vmatmul.mubr.bf16.gmra.mrb[0].mxu0 %v1402
    %v1523 = vpop.f32.mrb[0].mxu0
    %v1524 = vadd.f32 %v1439, %v1523
    %v1525 = vpop.f32.mrb[0].mxu0
    %v1526 = vpop.f32.mrb[0].mxu0
    %v1527 = vadd.f32 %v1439, %v1526
    %v1528 = vpop.f32.mrb[0].mxu0
    %1529 = vmatprep.mubr.bf16.mxu0 0
    %1530 = vmatmul.mubr.bf16.gmra.mrb[0].mxu0 %v1403
    %v1531 = vpop.f32.mrb[0].mxu0
    %v1532 = vadd.f32 %v1439, %v1531
    %v1533 = vpop.f32.mrb[0].mxu0
    %v1534 = vpop.f32.mrb[0].mxu0
    %v1535 = vadd.f32 %v1439, %v1534
    %v1536 = vpop.f32.mrb[0].mxu0
    %1537 = vmatprep.mubr.bf16.mxu0 0
    %1538 = vmatmul.mubr.bf16.gmra.mrb[0].mxu0 %v1404
    %v1539 = vpop.f32.mrb[0].mxu0
    %v1540 = vadd.f32 %v1439, %v1539
    %v1541 = vpop.f32.mrb[0].mxu0
    %v1542 = vpop.f32.mrb[0].mxu0
    %v1543 = vadd.f32 %v1439, %v1542
    %v1544 = vpop.f32.mrb[0].mxu0
    %1545 = vmatprep.mubr.bf16.mxu0 0
    %1546 = vmatmul.mubr.bf16.gmra.mrb[0].mxu0 %v1405
    %v1547 = vpop.f32.mrb[0].mxu0
    %v1548 = vadd.f32 %v1439, %v1547
    %v1549 = vpop.f32.mrb[0].mxu0
    %v1550 = vpop.f32.mrb[0].mxu0
    %v1551 = vadd.f32 %v1439, %v1550
    %v1552 = vpop.f32.mrb[0].mxu0
    %1553 = vmatprep.mubr.bf16.mxu0 0
    %1554 = vmatmul.mubr.bf16.gmra.mrb[0].mxu0 %v1406
    %v1555 = vpop.f32.mrb[0].mxu0
    %v1556 = vadd.f32 %v1439, %v1555
    %v1557 = vpop.f32.mrb[0].mxu0
    %v1558 = vpop.f32.mrb[0].mxu0
    %v1559 = vadd.f32 %v1439, %v1558
    %v1560 = vpop.f32.mrb[0].mxu0
    %1561 = vmatprep.mubr.bf16.mxu0 0
    %1562 = vmatmul.mubr.bf16.gmra.mrb[0].mxu0 %v1407
    %v1563 = vpop.f32.mrb[0].mxu0
    %v1564 = vadd.f32 %v1439, %v1563
    %v1565 = vpop.f32.mrb[0].mxu0
    %v1566 = vpop.f32.mrb[0].mxu0
    %v1567 = vadd.f32 %v1439, %v1566
    %v1568 = vpop.f32.mrb[0].mxu0
    %1569 = vmatprep.mubr.bf16.mxu0 0
    %1570 = vmatmul.mubr.bf16.gmra.mrb[0].mxu0 %v1408
    %v1571 = vpop.f32.mrb[0].mxu0
    %v1572 = vadd.f32 %v1439, %v1571
    %v1573 = vpop.f32.mrb[0].mxu0
    %v1574 = vpop.f32.mrb[0].mxu0
    %v1575 = vadd.f32 %v1439, %v1574
    %v1576 = vpop.f32.mrb[0].mxu0
    %1577 = vmatprep.mubr.bf16.mxu0 0
    %1578 = vmatmul.mubr.bf16.gmra.mrb[0].mxu0 %v1409
    %v1579 = vpop.f32.mrb[0].mxu0
    %v1580 = vadd.f32 %v1439, %v1579
    %v1581 = vpop.f32.mrb[0].mxu0
    %v1582 = vpop.f32.mrb[0].mxu0
    %v1583 = vadd.f32 %v1439, %v1582
    %v1584 = vpop.f32.mrb[0].mxu0
    %1585 = vmatprep.mubr.bf16.mxu0 0
    %1586 = vmatmul.mubr.bf16.gmra.mrb[0].mxu0 %v1410
    %v1587 = vpop.f32.mrb[0].mxu0
    %v1588 = vadd.f32 %v1439, %v1587
    %v1589 = vpop.f32.mrb[0].mxu0
    %v1590 = vpop.f32.mrb[0].mxu0
    %v1591 = vadd.f32 %v1439, %v1590
    %v1592 = vpop.f32.mrb[0].mxu0
    %1593 = vmatprep.mubr.bf16.mxu0 0
    %1594 = vmatmul.mubr.bf16.gmra.mrb[0].mxu0 %v1411
    %v1595 = vpop.f32.mrb[0].mxu0
    %v1596 = vadd.f32 %v1439, %v1595
    %v1597 = vpop.f32.mrb[0].mxu0
    %v1598 = vpop.f32.mrb[0].mxu0
    %v1599 = vadd.f32 %v1439, %v1598
    %v1600 = vpop.f32.mrb[0].mxu0
    %1601 = vmatprep.mubr.bf16.mxu0 0
    %1602 = vmatmul.mubr.bf16.gmra.mrb[0].mxu0 %v1412
    %v1603 = vpop.f32.mrb[0].mxu0
    %v1604 = vadd.f32 %v1439, %v1603
    %v1605 = vpop.f32.mrb[0].mxu0
    %v1606 = vpop.f32.mrb[0].mxu0
    %v1607 = vadd.f32 %v1439, %v1606
    %v1608 = vpop.f32.mrb[0].mxu0
    %1609 = vmatprep.mubr.bf16.mxu0 0
    %1610 = vmatmul.mubr.bf16.gmra.mrb[0].mxu0 %v1413
    %v1611 = vpop.f32.mrb[0].mxu0
    %v1612 = vadd.f32 %v1439, %v1611
    %v1613 = vpop.f32.mrb[0].mxu0
    %v1614 = vpop.f32.mrb[0].mxu0
    %v1615 = vadd.f32 %v1439, %v1614
    %v1616 = vpop.f32.mrb[0].mxu0
    %1617 = vmatprep.mubr.bf16.mxu0 0
    %1618 = vmatmul.mubr.bf16.gmra.mrb[0].mxu0 %v1414
    %v1619 = vpop.f32.mrb[0].mxu0
    %v1620 = vadd.f32 %v1439, %v1619
    %v1621 = vpop.f32.mrb[0].mxu0
    %v1622 = vpop.f32.mrb[0].mxu0
    %v1623 = vadd.f32 %v1439, %v1622
    %v1624 = vpop.f32.mrb[0].mxu0
    %1625 = vmatprep.mubr.bf16.mxu0 0
    %1626 = vmatmul.mubr.bf16.gmra.mrb[0].mxu0 %v1415
    %v1627 = vpop.f32.mrb[0].mxu0
    %v1628 = vadd.f32 %v1439, %v1627
    %v1629 = vpop.f32.mrb[0].mxu0
    %v1630 = vpop.f32.mrb[0].mxu0
    %v1631 = vadd.f32 %v1439, %v1630
    %v1632 = vpop.f32.mrb[0].mxu0
    %1633 = vmatprep.mubr.bf16.mxu0 0
    %1634 = vmatmul.mubr.bf16.gmra.mrb[0].mxu0 %v1416
    %v1635 = vpop.f32.mrb[0].mxu0
    %v1636 = vadd.f32 %v1439, %v1635
    %v1637 = vpop.f32.mrb[0].mxu0
    %v1638 = vpop.f32.mrb[0].mxu0
    %v1639 = vadd.f32 %v1439, %v1638
    %v1640 = vpop.f32.mrb[0].mxu0
    %1641 = vmatprep.mubr.bf16.mxu0 0
    %1642 = vmatmul.mubr.bf16.gmra.mrb[0].mxu0 %v1417
    %v1643 = vpop.f32.mrb[0].mxu0
    %v1644 = vadd.f32 %v1439, %v1643
    %v1645 = vpop.f32.mrb[0].mxu0
    %v1646 = vpop.f32.mrb[0].mxu0
    %v1647 = vadd.f32 %v1439, %v1646
    %v1648 = vpop.f32.mrb[0].mxu0
    %1649 = vdwg.mxu0
    %v1650 = vpack.c.bf16 %v1527, %v1524
    %v1651 = vpack.c.bf16 %v1535, %v1532
    %v1652 = vpack.c.bf16 %v1543, %v1540
    %v1653 = vpack.c.bf16 %v1551, %v1548
    %v1654 = vpack.c.bf16 %v1559, %v1556
    %v1655 = vpack.c.bf16 %v1567, %v1564
    %v1656 = vpack.c.bf16 %v1575, %v1572
    %v1657 = vpack.c.bf16 %v1583, %v1580
    %v1658 = vpack.c.bf16 %v1591, %v1588
    %v1659 = vpack.c.bf16 %v1599, %v1596
    %v1660 = vpack.c.bf16 %v1607, %v1604
    %v1661 = vpack.c.bf16 %v1615, %v1612
    %v1662 = vpack.c.bf16 %v1623, %v1620
    %v1663 = vpack.c.bf16 %v1631, %v1628
    %v1664 = vpack.c.bf16 %v1639, %v1636
    %v1665 = vpack.c.bf16 %v1647, %v1644
    %v1682 = vunpack.c.l.b16 %v1650
    %v1683 = vunpack.c.h.b16 %v1650
    %v1684 = vunpack.c.l.b16 %v1651
    %v1685 = vunpack.c.h.b16 %v1651
    %v1686 = vunpack.c.l.b16 %v1652
    %v1687 = vunpack.c.h.b16 %v1652
    %v1688 = vunpack.c.l.b16 %v1653
    %v1689 = vunpack.c.h.b16 %v1653
    %v1690 = vunpack.c.l.b16 %v1654
    %v1691 = vunpack.c.h.b16 %v1654
    %v1692 = vunpack.c.l.b16 %v1655
    %v1693 = vunpack.c.h.b16 %v1655
    %v1694 = vunpack.c.l.b16 %v1656
    %v1695 = vunpack.c.h.b16 %v1656
    %v1696 = vunpack.c.l.b16 %v1657
    %v1697 = vunpack.c.h.b16 %v1657
    %v1698 = vunpack.c.l.b16 %v1658
    %v1699 = vunpack.c.h.b16 %v1658
    %v1700 = vunpack.c.l.b16 %v1659
    %v1701 = vunpack.c.h.b16 %v1659
    %v1702 = vunpack.c.l.b16 %v1660
    %v1703 = vunpack.c.h.b16 %v1660
    %v1704 = vunpack.c.l.b16 %v1661
    %v1705 = vunpack.c.h.b16 %v1661
    %v1706 = vunpack.c.l.b16 %v1662
    %v1707 = vunpack.c.h.b16 %v1662
    %v1708 = vunpack.c.l.b16 %v1663
    %v1709 = vunpack.c.h.b16 %v1663
    %v1710 = vunpack.c.l.b16 %v1664
    %v1711 = vunpack.c.h.b16 %v1664
    %v1712 = vunpack.c.l.b16 %v1665
    %v1713 = vunpack.c.h.b16 %v1665
    %v1714 = vpack.c.b16 %v1682, %v1682
    %v1715 = vpack.c.b16 %v1683, %v1683
    %v1716 = vpack.c.b16 %v1684, %v1684
    %v1717 = vpack.c.b16 %v1685, %v1685
    %v1718 = vpack.c.b16 %v1686, %v1686
    %v1719 = vpack.c.b16 %v1687, %v1687
    %v1720 = vpack.c.b16 %v1688, %v1688
    %v1721 = vpack.c.b16 %v1689, %v1689
    %v1722 = vpack.c.b16 %v1690, %v1690
    %v1723 = vpack.c.b16 %v1691, %v1691
    %v1724 = vpack.c.b16 %v1692, %v1692
    %v1725 = vpack.c.b16 %v1693, %v1693
    %v1726 = vpack.c.b16 %v1694, %v1694
    %v1727 = vpack.c.b16 %v1695, %v1695
    %v1728 = vpack.c.b16 %v1696, %v1696
    %v1729 = vpack.c.b16 %v1697, %v1697
    %v1730 = vpack.c.b16 %v1698, %v1698
    %v1731 = vpack.c.b16 %v1699, %v1699
    %v1732 = vpack.c.b16 %v1700, %v1700
    %v1733 = vpack.c.b16 %v1701, %v1701
    %v1734 = vpack.c.b16 %v1702, %v1702
    %v1735 = vpack.c.b16 %v1703, %v1703
    %v1736 = vpack.c.b16 %v1704, %v1704
    %v1737 = vpack.c.b16 %v1705, %v1705
    %v1738 = vpack.c.b16 %v1706, %v1706
    %v1739 = vpack.c.b16 %v1707, %v1707
    %v1740 = vpack.c.b16 %v1708, %v1708
    %v1741 = vpack.c.b16 %v1709, %v1709
    %v1742 = vpack.c.b16 %v1710, %v1710
    %v1743 = vpack.c.b16 %v1711, %v1711
    %v1744 = vpack.c.b16 %v1712, %v1712
    %v1745 = vpack.c.b16 %v1713, %v1713
    %1778 = vst [vmem:[#allocation7] sm:$0xf] %v1714
    %1779 = vst [vmem:[#allocation7 + $0x4] sm:$0xf] %v1715
    %1780 = vst [vmem:[#allocation7 + $0x8] sm:$0xf] %v1716
    %1781 = vst [vmem:[#allocation7 + $0xc] sm:$0xf] %v1717
    %1782 = vst [vmem:[#allocation7 + $0x10] sm:$0xf] %v1718
    %1783 = vst [vmem:[#allocation7 + $0x14] sm:$0xf] %v1719
    %1784 = vst [vmem:[#allocation7 + $0x18] sm:$0xf] %v1720
    %1785 = vst [vmem:[#allocation7 + $0x1c] sm:$0xf] %v1721
    %1786 = vst [vmem:[#allocation7 + $0x20] sm:$0xf] %v1722
    %1787 = vst [vmem:[#allocation7 + $0x24] sm:$0xf] %v1723
    %1788 = vst [vmem:[#allocation7 + $0x28] sm:$0xf] %v1724
    %1789 = vst [vmem:[#allocation7 + $0x2c] sm:$0xf] %v1725
    %1790 = vst [vmem:[#allocation7 + $0x30] sm:$0xf] %v1726
    %1791 = vst [vmem:[#allocation7 + $0x34] sm:$0xf] %v1727
    %1792 = vst [vmem:[#allocation7 + $0x38] sm:$0xf] %v1728
    %1793 = vst [vmem:[#allocation7 + $0x3c] sm:$0xf] %v1729
    %1794 = vst [vmem:[#allocation7 + $0x40] sm:$0xf] %v1730
    %1795 = vst [vmem:[#allocation7 + $0x44] sm:$0xf] %v1731
    %1796 = vst [vmem:[#allocation7 + $0x48] sm:$0xf] %v1732
    %1797 = vst [vmem:[#allocation7 + $0x4c] sm:$0xf] %v1733
    %1798 = vst [vmem:[#allocation7 + $0x50] sm:$0xf] %v1734
    %1799 = vst [vmem:[#allocation7 + $0x54] sm:$0xf] %v1735
    %1800 = vst [vmem:[#allocation7 + $0x58] sm:$0xf] %v1736
    %1801 = vst [vmem:[#allocation7 + $0x5c] sm:$0xf] %v1737
    %1802 = vst [vmem:[#allocation7 + $0x60] sm:$0xf] %v1738
    %1803 = vst [vmem:[#allocation7 + $0x64] sm:$0xf] %v1739
    %1804 = vst [vmem:[#allocation7 + $0x68] sm:$0xf] %v1740
    %1805 = vst [vmem:[#allocation7 + $0x6c] sm:$0xf] %v1741
    %1806 = vst [vmem:[#allocation7 + $0x70] sm:$0xf] %v1742
    %1807 = vst [vmem:[#allocation7 + $0x74] sm:$0xf] %v1743
    %1808 = vst [vmem:[#allocation7 + $0x78] sm:$0xf] %v1744
    %1809 = vst [vmem:[#allocation7 + $0x7c] sm:$0xf] %v1745
    // Predicated region
    $region54: #{mlp_forward.1} parent=1 // pred_check
      _
    $region55: #{mlp_forward.1} parent=1 // pred_check_branch
      %1811 = sbr.rel (0) target = $region57
    $region56: #{mlp_forward.1} parent=1 // pred_region
      %s1813 = ssub.s32 2048, 2048
      %1814 = vsyncadd [#allocation4], %s1813
      %s1815 = sshll.u32 [#allocation7], 4
      %s1816 = int_to_ptr.vmem [resolvable:$true] %s1815
      %1821 = dma.vmem_to_hbm [thread:$0]  %s1816, 2048, %s11, [#allocation4], 64, 64, 4
    $region57: #{mlp_forward.1} parent=1 // pred_fallthru
      _
    // Predicated region
    $region58: #{mlp_forward.1} parent=1 // pred_check
      _
    $region59: #{mlp_forward.1} parent=1 // pred_check_branch
      %1823 = sbr.rel (0) target = $region61
    $region60: #{mlp_forward.1} parent=1 // pred_region
      %1824 = dma.done [#allocation4], 2048
    $region61: #{mlp_forward.1} parent=1 // pred_fallthru
      _
    %1825 = vsyncpa [#allocation3], 1
    %1826 = vsyncpa [#allocation6], 1
    %1827 = vsyncpa [#allocation4], 1

</llo_original>
